<compile_context>
chip_gen: v7x
topology: tpu7x:2x2x1
jax: 0.10.0
libtpu: 0.0.40
codegen_flags: <defaults>
</compile_context>

<pallas_src>
import functools

import jax
import jax.numpy as jnp
from jax import lax
from jax.experimental import pallas as pl
from jax.experimental.pallas import tpu as pltpu

LANE = 128   # TPU lane width


def _round_up(x, m):
    return (x + m - 1) // m * m


def _pad_to(a, axis, target):
    pad = target - a.shape[axis]
    if pad == 0:
        return a
    cfg = [(0, 0)] * a.ndim
    cfg[axis] = (0, pad)
    return jnp.pad(a, cfg)


# ----------------------------------------------------------------------------
# Pallas kernel: one image per grid step, all three convs + BN + ReLU +
# identity residual fused.  1x1 convs are lane-dense bf16 matmuls; the 3x3
# conv is im2col over a zero-haloed VMEM scratch followed by one K=9*Pp matmul.
# ----------------------------------------------------------------------------
def bottleneck_kernel(x_ref, w1_ref, b1_ref, w2_ref, b2_ref, w3_ref, b3_ref,
                      o_ref, xz_ref, pad_ref, col_ref,
                      *, H, W, Cin, Cp, Pp, Cop, Wp2):
    cdt = jnp.bfloat16
    HW = H * W

    # ---- lane-pad the input activation inside VMEM --------------------------
    # x comes from HBM unpadded (Cin lanes); zero only the padded-lane tail.
    # xz doubles as the conv1 LHS and the f32 identity residual (Cop == Cp).
    xm = x_ref[0].reshape(HW, Cin)                      # (H*W, Cin) f32
    if Cp > Cin:
        xz_ref[:, Cin:Cp] = jnp.zeros((HW, Cp - Cin), jnp.float32)
    xz_ref[:, 0:Cin] = xm
    xz = xz_ref[...]                                    # (H*W, Cp) f32

    # ---- conv1 (1x1) + folded BN1 + ReLU ------------------------------------
    y1 = jnp.dot(xz.astype(cdt), w1_ref[...],
                 preferred_element_type=jnp.float32)
    y1 = jnp.maximum(y1 + b1_ref[...], 0.0)             # (H*W, Pp) f32

    # ---- conv2 (3x3, stride 1, pad 1) + folded BN2 + ReLU -------------------
    # Re-zero only the 1-pixel halo; the interior is fully overwritten below.
    zrow = jnp.zeros((1, Wp2, Pp), cdt)
    zcol = jnp.zeros((H + 2, 1, Pp), cdt)
    pad_ref[0:1, :, :] = zrow
    pad_ref[H + 1:H + 2, :, :] = zrow
    pad_ref[:, 0:1, :] = zcol
    pad_ref[:, W + 1:W + 2, :] = zcol
    pad_ref[1:H + 1, 1:W + 1, :] = y1.reshape(H, W, Pp).astype(cdt)

    # im2col: hoist the misaligned W (sublane) shift; ky slices are cheap
    # leading-dim offsets.  Column blocks are 128-lane aligned stores.
    for kx in range(3):
        shifted = pad_ref[:, kx:kx + W, :]              # (H+2, W, Pp) bf16
        for ky in range(3):
            t = ky * 3 + kx                             # matches w2 (ky-major)
            col_ref[:, t * Pp:(t + 1) * Pp] = (
                shifted[ky:ky + H].reshape(HW, Pp))

    y2 = jnp.dot(col_ref[...], w2_ref[...],             # (H*W,9Pp) x (9Pp,Pp)
                 preferred_element_type=jnp.float32)
    y2 = jnp.maximum(y2 + b2_ref[...], 0.0)             # (H*W, Pp) f32

    # ---- conv3 (1x1) + folded BN3 + identity residual + ReLU ----------------
    y3 = jnp.dot(y2.astype(cdt), w3_ref[...],
                 preferred_element_type=jnp.float32)
    out = jnp.maximum(y3 + b3_ref[...] + xz, 0.0)       # f32 epilogue
    o_ref[0] = out.reshape(H, W, Cop)


def bottleneck_pallas(x_nhwc, w1, b1, w2f, b2, w3, b3):
    N, H, W, Cin = x_nhwc.shape
    Cp, Pp = w1.shape
    Cop = w3.shape[1]
    assert Cop == Cp, "identity residual requires Cout == Cin (downsample=None)"
    Wp2 = _round_up(W + 2, 8)                           # sublane-aligned scratch

    kernel = functools.partial(bottleneck_kernel, H=H, W=W, Cin=Cin, Cp=Cp,
                               Pp=Pp, Cop=Cop, Wp2=Wp2)

    flops = 2 * N * H * W * (Cp * Pp + 9 * Pp * Pp + Pp * Cop)
    bytes_acc = int(x_nhwc.size * 4 + N * H * W * Cop * 4
                    + (w1.size + w2f.size + w3.size) * 2
                    + (b1.size + b2.size + b3.size) * 4)

    return pl.pallas_call(
        kernel,
        out_shape=jax.ShapeDtypeStruct((N, H, W, Cop), jnp.float32),
        grid_spec=pltpu.PrefetchScalarGridSpec(
            num_scalar_prefetch=0,
            grid=(N,),
            in_specs=[
                pl.BlockSpec((1, H, W, Cin), lambda n: (n, 0, 0, 0)),
                pl.BlockSpec((Cp, Pp),       lambda n: (0, 0)),
                pl.BlockSpec((1, Pp),        lambda n: (0, 0)),
                pl.BlockSpec((9 * Pp, Pp),   lambda n: (0, 0)),
                pl.BlockSpec((1, Pp),        lambda n: (0, 0)),
                pl.BlockSpec((Pp, Cop),      lambda n: (0, 0)),
                pl.BlockSpec((1, Cop),       lambda n: (0, 0)),
            ],
            out_specs=pl.BlockSpec((1, H, W, Cop), lambda n: (n, 0, 0, 0)),
            scratch_shapes=[
                pltpu.VMEM((H * W, Cp), jnp.float32),         # lane-padded x
                pltpu.VMEM((H + 2, Wp2, Pp), jnp.bfloat16),   # zero-haloed y1
                pltpu.VMEM((H * W, 9 * Pp), jnp.bfloat16),    # im2col slab
            ]),
        compiler_params=pltpu.CompilerParams(
            dimension_semantics=("parallel",)),    # batch axis → 2 TCs on v7x
        cost_estimate=pl.CostEstimate(flops=flops, transcendentals=0,
                                      bytes_accessed=bytes_acc),
    )(x_nhwc, w1, b1, w2f, b2, w3, b3)


# ----------------------------------------------------------------------------
# Parameter glue: deterministic init + BN folding + 128-lane padding + bf16.
# ----------------------------------------------------------------------------
def make_params(key, inplanes, planes, expansion=4):
    ks = jax.random.split(key, 16)
    cout = planes * expansion
    p = {}
    p["w_conv1"] = 0.1 * jax.random.normal(ks[0], (planes, inplanes, 1, 1), jnp.float32)
    p["w_conv2"] = 0.1 * jax.random.normal(ks[1], (planes, planes, 3, 3), jnp.float32)
    p["w_conv3"] = 0.1 * jax.random.normal(ks[2], (cout, planes, 1, 1), jnp.float32)
    for i, c in zip(range(3), (planes, planes, cout)):
        p[f"bn{i+1}_gamma"] = 0.5 + jax.random.uniform(ks[3 + 4 * i], (c,), jnp.float32)
        p[f"bn{i+1}_beta"]  = 0.1 * jax.random.normal(ks[4 + 4 * i], (c,), jnp.float32)
        p[f"bn{i+1}_mean"]  = 0.1 * jax.random.normal(ks[5 + 4 * i], (c,), jnp.float32)
        p[f"bn{i+1}_var"]   = 0.5 + jax.random.uniform(ks[6 + 4 * i], (c,), jnp.float32)
    return p


def kernel_params(p, eps=1e-5):
    """Fold BN into conv weights/bias, pad channels to 128 lanes, cast to bf16."""
    # conv1: OIHW (P, Cin, 1, 1) -> (Cin, P)
    w1 = jnp.transpose(p["w_conv1"][:, :, 0, 0], (1, 0))
    s1 = p["bn1_gamma"] / jnp.sqrt(p["bn1_var"] + eps)
    b1 = (p["bn1_beta"] - p["bn1_mean"] * s1)[None, :]
    w1 = w1 * s1[None, :]
    # conv2: (P, P, 3, 3) -> (3, 3, Pin, Pout)
    w2 = jnp.transpose(p["w_conv2"], (2, 3, 1, 0))
    s2 = p["bn2_gamma"] / jnp.sqrt(p["bn2_var"] + eps)
    b2 = (p["bn2_beta"] - p["bn2_mean"] * s2)[None, :]
    w2 = w2 * s2[None, None, None, :]
    # conv3: (Cout, P, 1, 1) -> (P, Cout)
    w3 = jnp.transpose(p["w_conv3"][:, :, 0, 0], (1, 0))
    s3 = p["bn3_gamma"] / jnp.sqrt(p["bn3_var"] + eps)
    b3 = (p["bn3_beta"] - p["bn3_mean"] * s3)[None, :]
    w3 = w3 * s3[None, :]

    Cin, P = w1.shape
    Cout = w3.shape[1]
    Cp, Pp, Cop = (_round_up(c, LANE) for c in (Cin, P, Cout))

    w1 = _pad_to(_pad_to(w1, 0, Cp), 1, Pp).astype(jnp.bfloat16)
    w2 = _pad_to(_pad_to(w2, 2, Pp), 3, Pp).reshape(9 * Pp, Pp).astype(jnp.bfloat16)
    w3 = _pad_to(_pad_to(w3, 0, Pp), 1, Cop).astype(jnp.bfloat16)
    b1 = _pad_to(b1, 1, Pp).astype(jnp.float32)
    b2 = _pad_to(b2, 1, Pp).astype(jnp.float32)
    b3 = _pad_to(b3, 1, Cop).astype(jnp.float32)
    return w1, b1, w2, b2, w3, b3


# ----------------------------------------------------------------------------
# Pure-JAX reference (NCHW, un-folded BN, f32) used to validate the kernel.
# ----------------------------------------------------------------------------
def reference_bottleneck(x, p, eps=1e-5):
    def conv(y, w, pad):
        return lax.conv_general_dilated(
            y, w, (1, 1), [(pad, pad), (pad, pad)],
            dimension_numbers=("NCHW", "OIHW", "NCHW"))

    def bn(y, g, b, m, v):
        sh = (1, -1, 1, 1)
        return (y - m.reshape(sh)) / jnp.sqrt(v.reshape(sh) + eps) \
               * g.reshape(sh) + b.reshape(sh)

    out = jnp.maximum(bn(conv(x, p["w_conv1"], 0),
                         p["bn1_gamma"], p["bn1_beta"], p["bn1_mean"], p["bn1_var"]), 0.0)
    out = jnp.maximum(bn(conv(out, p["w_conv2"], 1),
                         p["bn2_gamma"], p["bn2_beta"], p["bn2_mean"], p["bn2_var"]), 0.0)
    out = bn(conv(out, p["w_conv3"], 0),
             p["bn3_gamma"], p["bn3_beta"], p["bn3_mean"], p["bn3_var"])
    return jnp.maximum(out + x, 0.0)


if __name__ == "__main__":
    # Bottleneck(inplanes=16, planes=4) -> out channels = 4*4 = 16 == inplanes,
    # so the identity residual is valid (downsample=None, stride=1).
    N, inplanes, H, W = 2, 16, 16, 16
    planes = 4
    Cout = planes * 4

    key = jax.random.PRNGKey(0)
    k_x, k_p = jax.random.split(key)
    x_nchw = jax.random.normal(k_x, (N, inplanes, H, W), jnp.float32)
    params = make_params(k_p, inplanes, planes)

    w1, b1, w2, b2, w3, b3 = kernel_params(params)
    x_nhwc = jnp.transpose(x_nchw, (0, 2, 3, 1))                  # NCHW -> NHWC

    out_pad = bottleneck_pallas(x_nhwc, w1, b1, w2, b2, w3, b3)
    out_nchw = jnp.transpose(out_pad[..., :Cout], (0, 3, 1, 2))   # back to NCHW
    jax.block_until_ready(out_nchw)

    ref = reference_bottleneck(x_nchw, params)
    assert out_nchw.shape == ref.shape == (N, inplanes, H, W)
    max_err = float(jnp.max(jnp.abs(out_nchw - ref)))
    # bf16 matmul operands (f32 accumulation) -> slightly looser tolerance.
    assert jnp.allclose(out_nchw, ref, atol=3e-2, rtol=3e-2), max_err

    print("KERNEL_OK")
</pallas_src>

<mosaic_0001>
module attributes {stable_mosaic.version = 11 : i64} {
  func.func @bottleneck_kernel(%arg0: i32, %arg1: memref<1x16x16x16xf32, #tpu.memory_space<vmem>>, %arg2: memref<128x128xbf16, #tpu.memory_space<vmem>>, %arg3: memref<1x128xf32, #tpu.memory_space<vmem>>, %arg4: memref<1152x128xbf16, #tpu.memory_space<vmem>>, %arg5: memref<1x128xf32, #tpu.memory_space<vmem>>, %arg6: memref<128x128xbf16, #tpu.memory_space<vmem>>, %arg7: memref<1x128xf32, #tpu.memory_space<vmem>>, %arg8: memref<1x16x16x128xf32, #tpu.memory_space<vmem>>, %arg9: memref<256x128xf32, #tpu.memory_space<vmem>>, %arg10: memref<18x24x128xbf16, #tpu.memory_space<vmem>>, %arg11: memref<256x1152xbf16, #tpu.memory_space<vmem>>) attributes {dimension_semantics = [#tpu.dimension_semantics<parallel>], iteration_bounds = array<i64: 2>, scalar_prefetch = 0 : i64, scratch_operands = 3 : i64, tpu.core_type = #tpu.core_type<tc>, window_params = [{transform_indices = @transform_0, window_bounds = array<i64: 1, 16, 16, 16>}, {pipeline_mode = #tpu.pipeline_mode<synchronous>, transform_indices = @transform_1, window_bounds = array<i64: 128, 128>}, {pipeline_mode = #tpu.pipeline_mode<synchronous>, transform_indices = @transform_2, window_bounds = array<i64: 1, 128>}, {pipeline_mode = #tpu.pipeline_mode<synchronous>, transform_indices = @transform_3, window_bounds = array<i64: 1152, 128>}, {pipeline_mode = #tpu.pipeline_mode<synchronous>, transform_indices = @transform_4, window_bounds = array<i64: 1, 128>}, {pipeline_mode = #tpu.pipeline_mode<synchronous>, transform_indices = @transform_5, window_bounds = array<i64: 128, 128>}, {pipeline_mode = #tpu.pipeline_mode<synchronous>, transform_indices = @transform_6, window_bounds = array<i64: 1, 128>}, {transform_indices = @transform_7, window_bounds = array<i64: 1, 16, 16, 128>}]} {
    %c0 = arith.constant 0 : index
    %c0_0 = arith.constant 0 : index
    %c0_1 = arith.constant 0 : index
    %c0_2 = arith.constant 0 : index
    %0 = vector.load %arg1[%c0, %c0_0, %c0_1, %c0_2] : memref<1x16x16x16xf32, #tpu.memory_space<vmem>>, vector<1x16x16x16xf32>
    %1 = vector.shape_cast %0 : vector<1x16x16x16xf32> to vector<16x16x16xf32>
    %2 = vector.shape_cast %1 : vector<16x16x16xf32> to vector<256x16xf32>
    %cst = arith.constant 0.000000e+00 : f32
    %3 = vector.broadcast %cst : f32 to vector<256x112xf32>
    %c0_3 = arith.constant 0 : index
    %c16 = arith.constant 16 : index
    %4 = vector.load %arg9[%c0_3, %c16] : memref<256x128xf32, #tpu.memory_space<vmem>>, vector<256x112xf32>
    tpu.vector_store %arg9[%c0_3, %c16], %3 {strides = array<i32>} : memref<256x128xf32, #tpu.memory_space<vmem>>, vector<256x112xf32>,
    %c0_4 = arith.constant 0 : index
    %c0_5 = arith.constant 0 : index
    %5 = vector.load %arg9[%c0_4, %c0_5] : memref<256x128xf32, #tpu.memory_space<vmem>>, vector<256x16xf32>
    tpu.vector_store %arg9[%c0_4, %c0_5], %2 {strides = array<i32>} : memref<256x128xf32, #tpu.memory_space<vmem>>, vector<256x16xf32>,
    %c0_6 = arith.constant 0 : index
    %c0_7 = arith.constant 0 : index
    %6 = vector.load %arg9[%c0_6, %c0_7] : memref<256x128xf32, #tpu.memory_space<vmem>>, vector<256x128xf32>
    %7 = arith.truncf %6 : vector<256x128xf32> to vector<256x128xbf16>
    %c0_8 = arith.constant 0 : index
    %c0_9 = arith.constant 0 : index
    %8 = vector.load %arg2[%c0_8, %c0_9] : memref<128x128xbf16, #tpu.memory_space<vmem>>, vector<128x128xbf16>
    %cst_10 = arith.constant dense<0.000000e+00> : vector<256x128xf32>
    %9 = tpu.matmul %7, %8, %cst_10 {dimension_numbers = #tpu.dot_dimension_numbers<[1], [0], [0], [1], [0, 0, 1, 1], [], []>} : vector<256x128xbf16>, vector<128x128xbf16>, vector<256x128xf32> -> vector<256x128xf32>
    %c0_11 = arith.constant 0 : index
    %c0_12 = arith.constant 0 : index
    %10 = vector.load %arg3[%c0_11, %c0_12] : memref<1x128xf32, #tpu.memory_space<vmem>>, vector<1x128xf32>
    %11 = vector.broadcast %10 : vector<1x128xf32> to vector<256x128xf32>
    %12 = arith.addf %9, %11 : vector<256x128xf32>
    %cst_13 = arith.constant 0.000000e+00 : f32
    %13 = vector.broadcast %cst_13 : f32 to vector<256x128xf32>
    %14 = arith.maximumf %12, %13 : vector<256x128xf32>
    %cst_14 = arith.constant 0.000000e+00 : bf16
    %15 = vector.broadcast %cst_14 : bf16 to vector<1x24x128xbf16>
    %cst_15 = arith.constant 0.000000e+00 : bf16
    %16 = vector.broadcast %cst_15 : bf16 to vector<18x1x128xbf16>
    %c0_16 = arith.constant 0 : index
    %c0_17 = arith.constant 0 : index
    %c0_18 = arith.constant 0 : index
    %17 = vector.load %arg10[%c0_16, %c0_17, %c0_18] : memref<18x24x128xbf16, #tpu.memory_space<vmem>>, vector<1x24x128xbf16>
    tpu.vector_store %arg10[%c0_16, %c0_17, %c0_18], %15 {strides = array<i32>} : memref<18x24x128xbf16, #tpu.memory_space<vmem>>, vector<1x24x128xbf16>,
    %c17 = arith.constant 17 : index
    %c0_19 = arith.constant 0 : index
    %c0_20 = arith.constant 0 : index
    %18 = vector.load %arg10[%c17, %c0_19, %c0_20] : memref<18x24x128xbf16, #tpu.memory_space<vmem>>, vector<1x24x128xbf16>
    tpu.vector_store %arg10[%c17, %c0_19, %c0_20], %15 {strides = array<i32>} : memref<18x24x128xbf16, #tpu.memory_space<vmem>>, vector<1x24x128xbf16>,
    %c0_21 = arith.constant 0 : index
    %c0_22 = arith.constant 0 : index
    %c0_23 = arith.constant 0 : index
    %19 = vector.load %arg10[%c0_21, %c0_22, %c0_23] : memref<18x24x128xbf16, #tpu.memory_space<vmem>>, vector<18x1x128xbf16>
    tpu.vector_store %arg10[%c0_21, %c0_22, %c0_23], %16 {strides = array<i32>} : memref<18x24x128xbf16, #tpu.memory_space<vmem>>, vector<18x1x128xbf16>,
    %c0_24 = arith.constant 0 : index
    %c17_25 = arith.constant 17 : index
    %c0_26 = arith.constant 0 : index
    %20 = vector.load %arg10[%c0_24, %c17_25, %c0_26] : memref<18x24x128xbf16, #tpu.memory_space<vmem>>, vector<18x1x128xbf16>
    tpu.vector_store %arg10[%c0_24, %c17_25, %c0_26], %16 {strides = array<i32>} : memref<18x24x128xbf16, #tpu.memory_space<vmem>>, vector<18x1x128xbf16>,
    %21 = vector.shape_cast %14 : vector<256x128xf32> to vector<16x16x128xf32>
    %22 = arith.truncf %21 : vector<16x16x128xf32> to vector<16x16x128xbf16>
    %c1 = arith.constant 1 : index
    %c1_27 = arith.constant 1 : index
    %c0_28 = arith.constant 0 : index
    %23 = vector.load %arg10[%c1, %c1_27, %c0_28] : memref<18x24x128xbf16, #tpu.memory_space<vmem>>, vector<16x16x128xbf16>
    tpu.vector_store %arg10[%c1, %c1_27, %c0_28], %22 {strides = array<i32>} : memref<18x24x128xbf16, #tpu.memory_space<vmem>>, vector<16x16x128xbf16>,
    %c0_29 = arith.constant 0 : index
    %c0_30 = arith.constant 0 : index
    %c0_31 = arith.constant 0 : index
    %24 = vector.load %arg10[%c0_29, %c0_30, %c0_31] : memref<18x24x128xbf16, #tpu.memory_space<vmem>>, vector<18x16x128xbf16>
    %25 = vector.extract_strided_slice %24 {offsets = [0, 0, 0], sizes = [16, 16, 128], strides = [1, 1, 1]} : vector<18x16x128xbf16> to vector<16x16x128xbf16>
    %26 = vector.shape_cast %25 : vector<16x16x128xbf16> to vector<256x128xbf16>
    %c0_32 = arith.constant 0 : index
    %c0_33 = arith.constant 0 : index
    %27 = vector.load %arg11[%c0_32, %c0_33] : memref<256x1152xbf16, #tpu.memory_space<vmem>>, vector<256x128xbf16>
    tpu.vector_store %arg11[%c0_32, %c0_33], %26 {strides = array<i32>} : memref<256x1152xbf16, #tpu.memory_space<vmem>>, vector<256x128xbf16>,
    %28 = vector.extract_strided_slice %24 {offsets = [1, 0, 0], sizes = [16, 16, 128], strides = [1, 1, 1]} : vector<18x16x128xbf16> to vector<16x16x128xbf16>
    %29 = vector.shape_cast %28 : vector<16x16x128xbf16> to vector<256x128xbf16>
    %c0_34 = arith.constant 0 : index
    %c384 = arith.constant 384 : index
    %30 = vector.load %arg11[%c0_34, %c384] : memref<256x1152xbf16, #tpu.memory_space<vmem>>, vector<256x128xbf16>
    tpu.vector_store %arg11[%c0_34, %c384], %29 {strides = array<i32>} : memref<256x1152xbf16, #tpu.memory_space<vmem>>, vector<256x128xbf16>,
    %31 = vector.extract_strided_slice %24 {offsets = [2, 0, 0], sizes = [16, 16, 128], strides = [1, 1, 1]} : vector<18x16x128xbf16> to vector<16x16x128xbf16>
    %32 = vector.shape_cast %31 : vector<16x16x128xbf16> to vector<256x128xbf16>
    %c0_35 = arith.constant 0 : index
    %c768 = arith.constant 768 : index
    %33 = vector.load %arg11[%c0_35, %c768] : memref<256x1152xbf16, #tpu.memory_space<vmem>>, vector<256x128xbf16>
    tpu.vector_store %arg11[%c0_35, %c768], %32 {strides = array<i32>} : memref<256x1152xbf16, #tpu.memory_space<vmem>>, vector<256x128xbf16>,
    %c0_36 = arith.constant 0 : index
    %c1_37 = arith.constant 1 : index
    %c0_38 = arith.constant 0 : index
    %34 = vector.load %arg10[%c0_36, %c1_37, %c0_38] : memref<18x24x128xbf16, #tpu.memory_space<vmem>>, vector<18x16x128xbf16>
    %35 = vector.extract_strided_slice %34 {offsets = [0, 0, 0], sizes = [16, 16, 128], strides = [1, 1, 1]} : vector<18x16x128xbf16> to vector<16x16x128xbf16>
    %36 = vector.shape_cast %35 : vector<16x16x128xbf16> to vector<256x128xbf16>
    %c0_39 = arith.constant 0 : index
    %c128 = arith.constant 128 : index
    %37 = vector.load %arg11[%c0_39, %c128] : memref<256x1152xbf16, #tpu.memory_space<vmem>>, vector<256x128xbf16>
    tpu.vector_store %arg11[%c0_39, %c128], %36 {strides = array<i32>} : memref<256x1152xbf16, #tpu.memory_space<vmem>>, vector<256x128xbf16>,
    %38 = vector.extract_strided_slice %34 {offsets = [1, 0, 0], sizes = [16, 16, 128], strides = [1, 1, 1]} : vector<18x16x128xbf16> to vector<16x16x128xbf16>
    %39 = vector.shape_cast %38 : vector<16x16x128xbf16> to vector<256x128xbf16>
    %c0_40 = arith.constant 0 : index
    %c512 = arith.constant 512 : index
    %40 = vector.load %arg11[%c0_40, %c512] : memref<256x1152xbf16, #tpu.memory_space<vmem>>, vector<256x128xbf16>
    tpu.vector_store %arg11[%c0_40, %c512], %39 {strides = array<i32>} : memref<256x1152xbf16, #tpu.memory_space<vmem>>, vector<256x128xbf16>,
    %41 = vector.extract_strided_slice %34 {offsets = [2, 0, 0], sizes = [16, 16, 128], strides = [1, 1, 1]} : vector<18x16x128xbf16> to vector<16x16x128xbf16>
    %42 = vector.shape_cast %41 : vector<16x16x128xbf16> to vector<256x128xbf16>
    %c0_41 = arith.constant 0 : index
    %c896 = arith.constant 896 : index
    %43 = vector.load %arg11[%c0_41, %c896] : memref<256x1152xbf16, #tpu.memory_space<vmem>>, vector<256x128xbf16>
    tpu.vector_store %arg11[%c0_41, %c896], %42 {strides = array<i32>} : memref<256x1152xbf16, #tpu.memory_space<vmem>>, vector<256x128xbf16>,
    %c0_42 = arith.constant 0 : index
    %c2 = arith.constant 2 : index
    %c0_43 = arith.constant 0 : index
    %44 = vector.load %arg10[%c0_42, %c2, %c0_43] : memref<18x24x128xbf16, #tpu.memory_space<vmem>>, vector<18x16x128xbf16>
    %45 = vector.extract_strided_slice %44 {offsets = [0, 0, 0], sizes = [16, 16, 128], strides = [1, 1, 1]} : vector<18x16x128xbf16> to vector<16x16x128xbf16>
    %46 = vector.shape_cast %45 : vector<16x16x128xbf16> to vector<256x128xbf16>
    %c0_44 = arith.constant 0 : index
    %c256 = arith.constant 256 : index
    %47 = vector.load %arg11[%c0_44, %c256] : memref<256x1152xbf16, #tpu.memory_space<vmem>>, vector<256x128xbf16>
    tpu.vector_store %arg11[%c0_44, %c256], %46 {strides = array<i32>} : memref<256x1152xbf16, #tpu.memory_space<vmem>>, vector<256x128xbf16>,
    %48 = vector.extract_strided_slice %44 {offsets = [1, 0, 0], sizes = [16, 16, 128], strides = [1, 1, 1]} : vector<18x16x128xbf16> to vector<16x16x128xbf16>
    %49 = vector.shape_cast %48 : vector<16x16x128xbf16> to vector<256x128xbf16>
    %c0_45 = arith.constant 0 : index
    %c640 = arith.constant 640 : index
    %50 = vector.load %arg11[%c0_45, %c640] : memref<256x1152xbf16, #tpu.memory_space<vmem>>, vector<256x128xbf16>
    tpu.vector_store %arg11[%c0_45, %c640], %49 {strides = array<i32>} : memref<256x1152xbf16, #tpu.memory_space<vmem>>, vector<256x128xbf16>,
    %51 = vector.extract_strided_slice %44 {offsets = [2, 0, 0], sizes = [16, 16, 128], strides = [1, 1, 1]} : vector<18x16x128xbf16> to vector<16x16x128xbf16>
    %52 = vector.shape_cast %51 : vector<16x16x128xbf16> to vector<256x128xbf16>
    %c0_46 = arith.constant 0 : index
    %c1024 = arith.constant 1024 : index
    %53 = vector.load %arg11[%c0_46, %c1024] : memref<256x1152xbf16, #tpu.memory_space<vmem>>, vector<256x128xbf16>
    tpu.vector_store %arg11[%c0_46, %c1024], %52 {strides = array<i32>} : memref<256x1152xbf16, #tpu.memory_space<vmem>>, vector<256x128xbf16>,
    %c0_47 = arith.constant 0 : index
    %c0_48 = arith.constant 0 : index
    %54 = vector.load %arg11[%c0_47, %c0_48] : memref<256x1152xbf16, #tpu.memory_space<vmem>>, vector<256x1152xbf16>
    %c0_49 = arith.constant 0 : index
    %c0_50 = arith.constant 0 : index
    %55 = vector.load %arg4[%c0_49, %c0_50] : memref<1152x128xbf16, #tpu.memory_space<vmem>>, vector<1152x128xbf16>
    %cst_51 = arith.constant dense<0.000000e+00> : vector<256x128xf32>
    %56 = tpu.matmul %54, %55, %cst_51 {dimension_numbers = #tpu.dot_dimension_numbers<[1], [0], [0], [1], [0, 0, 1, 1], [], []>} : vector<256x1152xbf16>, vector<1152x128xbf16>, vector<256x128xf32> -> vector<256x128xf32>
    %c0_52 = arith.constant 0 : index
    %c0_53 = arith.constant 0 : index
    %57 = vector.load %arg5[%c0_52, %c0_53] : memref<1x128xf32, #tpu.memory_space<vmem>>, vector<1x128xf32>
    %58 = vector.broadcast %57 : vector<1x128xf32> to vector<256x128xf32>
    %59 = arith.addf %56, %58 : vector<256x128xf32>
    %cst_54 = arith.constant 0.000000e+00 : f32
    %60 = vector.broadcast %cst_54 : f32 to vector<256x128xf32>
    %61 = arith.maximumf %59, %60 : vector<256x128xf32>
    %62 = arith.truncf %61 : vector<256x128xf32> to vector<256x128xbf16>
    %c0_55 = arith.constant 0 : index
    %c0_56 = arith.constant 0 : index
    %63 = vector.load %arg6[%c0_55, %c0_56] : memref<128x128xbf16, #tpu.memory_space<vmem>>, vector<128x128xbf16>
    %cst_57 = arith.constant dense<0.000000e+00> : vector<256x128xf32>
    %64 = tpu.matmul %62, %63, %cst_57 {dimension_numbers = #tpu.dot_dimension_numbers<[1], [0], [0], [1], [0, 0, 1, 1], [], []>} : vector<256x128xbf16>, vector<128x128xbf16>, vector<256x128xf32> -> vector<256x128xf32>
    %c0_58 = arith.constant 0 : index
    %c0_59 = arith.constant 0 : index
    %65 = vector.load %arg7[%c0_58, %c0_59] : memref<1x128xf32, #tpu.memory_space<vmem>>, vector<1x128xf32>
    %66 = vector.broadcast %65 : vector<1x128xf32> to vector<256x128xf32>
    %67 = arith.addf %64, %66 : vector<256x128xf32>
    %68 = arith.addf %67, %6 : vector<256x128xf32>
    %cst_60 = arith.constant 0.000000e+00 : f32
    %69 = vector.broadcast %cst_60 : f32 to vector<256x128xf32>
    %70 = arith.maximumf %68, %69 : vector<256x128xf32>
    %71 = vector.shape_cast %70 : vector<256x128xf32> to vector<16x16x128xf32>
    %c0_61 = arith.constant 0 : index
    %c0_62 = arith.constant 0 : index
    %c0_63 = arith.constant 0 : index
    %c0_64 = arith.constant 0 : index
    %72 = vector.load %arg8[%c0_61, %c0_62, %c0_63, %c0_64] : memref<1x16x16x128xf32, #tpu.memory_space<vmem>>, vector<1x16x16x128xf32>
    %73 = vector.shape_cast %72 : vector<1x16x16x128xf32> to vector<16x16x128xf32>
    %74 = vector.shape_cast %71 : vector<16x16x128xf32> to vector<1x16x16x128xf32>
    tpu.vector_store %arg8[%c0_61, %c0_62, %c0_63, %c0_64], %74 {strides = array<i32>} : memref<1x16x16x128xf32, #tpu.memory_space<vmem>>, vector<1x16x16x128xf32>,
    return
  }
  func.func @transform_0(%arg0: i32) -> (i32, i32, i32, i32) {
    %c0_i32 = arith.constant 0 : i32
    %c0_i32_0 = arith.constant 0 : i32
    %c0_i32_1 = arith.constant 0 : i32
    %c0_i32_2 = arith.constant 0 : i32
    return %arg0, %c0_i32, %c0_i32_0, %c0_i32_1 : i32, i32, i32, i32
  }
  func.func @transform_1(%arg0: i32) -> (i32, i32) {
    %c0_i32 = arith.constant 0 : i32
    %c0_i32_0 = arith.constant 0 : i32
    %c0_i32_1 = arith.constant 0 : i32
    return %c0_i32, %c0_i32_0 : i32, i32
  }
  func.func @transform_2(%arg0: i32) -> (i32, i32) {
    %c0_i32 = arith.constant 0 : i32
    %c0_i32_0 = arith.constant 0 : i32
    %c0_i32_1 = arith.constant 0 : i32
    return %c0_i32, %c0_i32_0 : i32, i32
  }
  func.func @transform_3(%arg0: i32) -> (i32, i32) {
    %c0_i32 = arith.constant 0 : i32
    %c0_i32_0 = arith.constant 0 : i32
    %c0_i32_1 = arith.constant 0 : i32
    return %c0_i32, %c0_i32_0 : i32, i32
  }
  func.func @transform_4(%arg0: i32) -> (i32, i32) {
    %c0_i32 = arith.constant 0 : i32
    %c0_i32_0 = arith.constant 0 : i32
    %c0_i32_1 = arith.constant 0 : i32
    return %c0_i32, %c0_i32_0 : i32, i32
  }
  func.func @transform_5(%arg0: i32) -> (i32, i32) {
    %c0_i32 = arith.constant 0 : i32
    %c0_i32_0 = arith.constant 0 : i32
    %c0_i32_1 = arith.constant 0 : i32
    return %c0_i32, %c0_i32_0 : i32, i32
  }
  func.func @transform_6(%arg0: i32) -> (i32, i32) {
    %c0_i32 = arith.constant 0 : i32
    %c0_i32_0 = arith.constant 0 : i32
    %c0_i32_1 = arith.constant 0 : i32
    return %c0_i32, %c0_i32_0 : i32, i32
  }
  func.func @transform_7(%arg0: i32) -> (i32, i32, i32, i32) {
    %c0_i32 = arith.constant 0 : i32
    %c0_i32_0 = arith.constant 0 : i32
    %c0_i32_1 = arith.constant 0 : i32
    %c0_i32_2 = arith.constant 0 : i32
    return %arg0, %c0_i32, %c0_i32_0, %c0_i32_1 : i32, i32, i32, i32
  }
}

</mosaic_0001>

<llo_original>
// kernel: tpu_custom_call.1
$region0: #{tpu_custom_call.1}
  #allocation0 [shape = 'u32[]', space=smem, size = 0x4, offset = 0x4, fixed_abs, tag = 'smem constant byte address 0x4 - core index']
  #allocation1 [shape = 'u32[144,128]{1,0:T(1,128)}', space=vmem, size = 0x12000, scoped, tag = 'internal scratch']
  #allocation2 [shape = 'f32[256,128]{1,0:T(8,128)}', space=vmem, size = 0x20000, scoped, tag = 'scratch operand']
  #allocation3 [shape = 'bf16[18,24,128]{2,1,0:T(8,128)(2,1)}', space=vmem, size = 0x1b000, scoped, tag = 'scratch operand']
  #allocation4 [shape = 'bf16[256,1152]{1,0:T(16,128)(2,1)}', space=vmem, size = 0x90000, scoped, tag = 'scratch operand']
  %s0 = inlined_call_operand.hbm [shape: f32[2,16,16,16], index: 0, kind: input, shape index: {}]
  %s1 = inlined_call_operand.hbm [shape: bf16[128,128], index: 1, kind: input, shape index: {}]
  %s2 = inlined_call_operand.vmem [shape: f32[1,128], index: 2, kind: input, shape index: {}]
  %s3 = inlined_call_operand.hbm [shape: bf16[1152,128], index: 3, kind: input, shape index: {}]
  %s4 = inlined_call_operand.vmem [shape: f32[1,128], index: 4, kind: input, shape index: {}]
  %s5 = inlined_call_operand.hbm [shape: bf16[128,128], index: 5, kind: input, shape index: {}]
  %s6 = inlined_call_operand.vmem [shape: f32[1,128], index: 6, kind: input, shape index: {}]
  %s7 = inlined_call_operand.hbm [shape: f32[2,16,16,128], index: 7, kind: output, shape index: {}]
  %s8 = sld [smem:[#allocation0]]
  $region77: #{tpu_custom_call.1} parent=0
    _
  %s10 = ssub.s32 1, %s8
  %s11 = scalar_select 0, %s10, %s8
  $region1: #{tpu_custom_call.1} parent=0
    #allocation5 [shape = 'u8[262144]{0}', space=vmem, size = 0x40000, scoped, tag = 'input window, operand 0']
    #allocation6 [shape = 's32[2]{0}', space=sflag, size = 0x8, scoped, tag = 'scoped memory for tpu_custom_call.1']
    #allocation7 [shape = 's32[2]{0}', space=sflag, size = 0x8, scoped, tag = 'scoped memory for tpu_custom_call.1']
    #allocation8 [shape = 'u8[32768]{0}', space=vmem, size = 0x8000, scoped, tag = 'input window, operand 1, single buffered']
    #allocation9 [shape = 's32[1]{0}', space=sflag, size = 0x4, scoped, tag = 'scoped memory for tpu_custom_call.1']
    #allocation10 [shape = 'u8[294912]{0}', space=vmem, size = 0x48000, scoped, tag = 'input window, operand 3, single buffered']
    #allocation11 [shape = 'u8[32768]{0}', space=vmem, size = 0x8000, scoped, tag = 'input window, operand 5, single buffered']
    #allocation12 [shape = 's32[1]{0}', space=sflag, size = 0x4, scoped, tag = 'scoped memory for tpu_custom_call.1']
    #allocation13 [shape = 'u8[262144]{0}', space=vmem, size = 0x40000, scoped, tag = 'output window, operand 0']
    %12 = vsyncpa [#allocation6], 0
    %s13 = scalar_lea.sflag [#allocation6], 1
    %14 = vsyncpa %s13, 0
    %15 = vsyncpa [#allocation9], 0
    %16 = vsyncpa [#allocation12], 0
    %17 = vsyncpa [#allocation7], 0
    %s18 = scalar_lea.sflag [#allocation7], 1
    %19 = vsyncpa %s18, 0
    loop: start=0, step=1, limit=4
    $region2: #{tpu_custom_call.1} parent=1 // loop_pre_header
      _
    $region3: #{tpu_custom_call.1} parent=1 // loop_header
      %s21 = sphi 0, %s25
      %p22 = scmp.ge.s32.totalorder %s21, 4
      %s31 = sphi 0, %s33
      %s34 = sphi 0, %s31
      %s35 = sphi 0, %s34
      %s51 = sphi 0, %s35
      %s55 = sphi 0, %s55
      %s57 = sphi 0, %s55
      %s58 = sphi 0, %s57
      %s72 = sphi 0, %s58
      %s76 = sphi 0, %s76
      %s78 = sphi 0, %s76
      %s79 = sphi 0, %s78
      %s93 = sphi 0, %s79
      %s97 = sphi 0, %s97
      %s99 = sphi 0, %s97
      %s100 = sphi 0, %s99
      %s114 = sphi 0, %s100
      %s118 = sphi 0, %s118
      %s120 = sphi 0, %s118
      %s121 = sphi 0, %s120
      %s135 = sphi 0, %s121
      %s139 = sphi 0, %s139
      %s141 = sphi 0, %s139
      %s142 = sphi 0, %s141
      %s156 = sphi 0, %s142
      %s160 = sphi 0, %s160
      %s162 = sphi 0, %s160
      %s163 = sphi 0, %s162
      %s177 = sphi 0, %s163
      %s183 = sphi 0, %s185
      %s186 = sphi 0, %s183
      %s187 = sphi 0, %s186
      %s203 = sphi 0, %s187
    $region4: #{tpu_custom_call.1} parent=1 // loop_header_branch
      %24 = sbr.rel (%p22) target = $region8
    $region5: #{tpu_custom_call.1} parent=1 // loop_body
      %s26 = ssub.s32 %s21, 1
      %s27 = ssub.s32 %s21, 2
      %s28 = sadd.s32 %s21, 1
      %s29 = ssub.s32 %s21, %s28
      %p30 = scmp.eq.s32.totalorder %s29, 0
      %s32 = sadd.s32 %s31, 1
      %s33 = scalar_select %p30, %s31, %s32
      %p36 = pneg %p30
      %p37 = scmp.eq.s32.totalorder %s21, 1
      %p38 = por %p36, %p37
      %p39 = scmp.ne.s32.totalorder %s31, %s34
      %p40 = scmp.eq.s32.totalorder %s21, 0
      %p41 = por %p39, %p40
      %p42 = scmp.ne.s32.totalorder %s31, %s34
      %p43 = scmp.eq.s32.totalorder %s26, 1
      %p44 = por %p42, %p43
      %p45 = scmp.ne.s32.totalorder %s34, %s35
      %p46 = scmp.eq.s32.totalorder %s26, 0
      %p47 = por %p45, %p46
      %p48 = scmp.ne.s32.totalorder %s34, %s35
      %p49 = scmp.eq.s32.totalorder %s27, 1
      %p50 = por %p48, %p49
      %p52 = scmp.ne.s32.totalorder %s35, %s51
      %p53 = scmp.eq.s32.totalorder %s27, 0
      %p54 = por %p52, %p53
      %s56 = sadd.s32 %s55, 1
      %p59 = scmp.eq.s32.totalorder %s21, 1
      %p60 = scmp.ne.s32.totalorder %s55, %s57
      %p61 = scmp.eq.s32.totalorder %s21, 0
      %p62 = por %p60, %p61
      %p63 = scmp.ne.s32.totalorder %s55, %s57
      %p64 = scmp.eq.s32.totalorder %s26, 1
      %p65 = por %p63, %p64
      %p66 = scmp.ne.s32.totalorder %s57, %s58
      %p67 = scmp.eq.s32.totalorder %s26, 0
      %p68 = por %p66, %p67
      %p69 = scmp.ne.s32.totalorder %s57, %s58
      %p70 = scmp.eq.s32.totalorder %s27, 1
      %p71 = por %p69, %p70
      %p73 = scmp.ne.s32.totalorder %s58, %s72
      %p74 = scmp.eq.s32.totalorder %s27, 0
      %p75 = por %p73, %p74
      %s77 = sadd.s32 %s76, 1
      %p80 = scmp.eq.s32.totalorder %s21, 1
      %p81 = scmp.ne.s32.totalorder %s76, %s78
      %p82 = scmp.eq.s32.totalorder %s21, 0
      %p83 = por %p81, %p82
      %p84 = scmp.ne.s32.totalorder %s76, %s78
      %p85 = scmp.eq.s32.totalorder %s26, 1
      %p86 = por %p84, %p85
      %p87 = scmp.ne.s32.totalorder %s78, %s79
      %p88 = scmp.eq.s32.totalorder %s26, 0
      %p89 = por %p87, %p88
      %p90 = scmp.ne.s32.totalorder %s78, %s79
      %p91 = scmp.eq.s32.totalorder %s27, 1
      %p92 = por %p90, %p91
      %p94 = scmp.ne.s32.totalorder %s79, %s93
      %p95 = scmp.eq.s32.totalorder %s27, 0
      %p96 = por %p94, %p95
      %s98 = sadd.s32 %s97, 1
      %p101 = scmp.eq.s32.totalorder %s21, 1
      %p102 = scmp.ne.s32.totalorder %s97, %s99
      %p103 = scmp.eq.s32.totalorder %s21, 0
      %p104 = por %p102, %p103
      %p105 = scmp.ne.s32.totalorder %s97, %s99
      %p106 = scmp.eq.s32.totalorder %s26, 1
      %p107 = por %p105, %p106
      %p108 = scmp.ne.s32.totalorder %s99, %s100
      %p109 = scmp.eq.s32.totalorder %s26, 0
      %p110 = por %p108, %p109
      %p111 = scmp.ne.s32.totalorder %s99, %s100
      %p112 = scmp.eq.s32.totalorder %s27, 1
      %p113 = por %p111, %p112
      %p115 = scmp.ne.s32.totalorder %s100, %s114
      %p116 = scmp.eq.s32.totalorder %s27, 0
      %p117 = por %p115, %p116
      %s119 = sadd.s32 %s118, 1
      %p122 = scmp.eq.s32.totalorder %s21, 1
      %p123 = scmp.ne.s32.totalorder %s118, %s120
      %p124 = scmp.eq.s32.totalorder %s21, 0
      %p125 = por %p123, %p124
      %p126 = scmp.ne.s32.totalorder %s118, %s120
      %p127 = scmp.eq.s32.totalorder %s26, 1
      %p128 = por %p126, %p127
      %p129 = scmp.ne.s32.totalorder %s120, %s121
      %p130 = scmp.eq.s32.totalorder %s26, 0
      %p131 = por %p129, %p130
      %p132 = scmp.ne.s32.totalorder %s120, %s121
      %p133 = scmp.eq.s32.totalorder %s27, 1
      %p134 = por %p132, %p133
      %p136 = scmp.ne.s32.totalorder %s121, %s135
      %p137 = scmp.eq.s32.totalorder %s27, 0
      %p138 = por %p136, %p137
      %s140 = sadd.s32 %s139, 1
      %p143 = scmp.eq.s32.totalorder %s21, 1
      %p144 = scmp.ne.s32.totalorder %s139, %s141
      %p145 = scmp.eq.s32.totalorder %s21, 0
      %p146 = por %p144, %p145
      %p147 = scmp.ne.s32.totalorder %s139, %s141
      %p148 = scmp.eq.s32.totalorder %s26, 1
      %p149 = por %p147, %p148
      %p150 = scmp.ne.s32.totalorder %s141, %s142
      %p151 = scmp.eq.s32.totalorder %s26, 0
      %p152 = por %p150, %p151
      %p153 = scmp.ne.s32.totalorder %s141, %s142
      %p154 = scmp.eq.s32.totalorder %s27, 1
      %p155 = por %p153, %p154
      %p157 = scmp.ne.s32.totalorder %s142, %s156
      %p158 = scmp.eq.s32.totalorder %s27, 0
      %p159 = por %p157, %p158
      %s161 = sadd.s32 %s160, 1
      %p164 = scmp.eq.s32.totalorder %s21, 1
      %p165 = scmp.ne.s32.totalorder %s160, %s162
      %p166 = scmp.eq.s32.totalorder %s21, 0
      %p167 = por %p165, %p166
      %p168 = scmp.ne.s32.totalorder %s160, %s162
      %p169 = scmp.eq.s32.totalorder %s26, 1
      %p170 = por %p168, %p169
      %p171 = scmp.ne.s32.totalorder %s162, %s163
      %p172 = scmp.eq.s32.totalorder %s26, 0
      %p173 = por %p171, %p172
      %p174 = scmp.ne.s32.totalorder %s162, %s163
      %p175 = scmp.eq.s32.totalorder %s27, 1
      %p176 = por %p174, %p175
      %p178 = scmp.ne.s32.totalorder %s163, %s177
      %p179 = scmp.eq.s32.totalorder %s27, 0
      %p180 = por %p178, %p179
      %s181 = ssub.s32 %s21, %s28
      %p182 = scmp.eq.s32.totalorder %s181, 0
      %s184 = sadd.s32 %s183, 1
      %s185 = scalar_select %p182, %s183, %s184
      %p188 = pneg %p182
      %p189 = scmp.eq.s32.totalorder %s21, 1
      %p190 = por %p188, %p189
      %p191 = scmp.ne.s32.totalorder %s183, %s186
      %p192 = scmp.eq.s32.totalorder %s21, 0
      %p193 = por %p191, %p192
      %p194 = scmp.ne.s32.totalorder %s183, %s186
      %p195 = scmp.eq.s32.totalorder %s26, 1
      %p196 = por %p194, %p195
      %p197 = scmp.ne.s32.totalorder %s186, %s187
      %p198 = scmp.eq.s32.totalorder %s26, 0
      %p199 = por %p197, %p198
      %p200 = scmp.ne.s32.totalorder %s186, %s187
      %p201 = scmp.eq.s32.totalorder %s27, 1
      %p202 = por %p200, %p201
      %p204 = scmp.ne.s32.totalorder %s187, %s203
      %p205 = scmp.eq.s32.totalorder %s27, 0
      %p206 = por %p204, %p205
      %p207 = scmp.le.s32.totalorder 1, %s21
      %p208 = scmp.lt.s32.totalorder %s21, 3
      %p209 = pnand %p207, %p208
      %p210 = pneg %p209
      // Predicated region
      $region9: #{tpu_custom_call.1} parent=5 // pred_check
        _
      $region10: #{tpu_custom_call.1} parent=5 // pred_check_branch
        %212 = sbr.rel (%p209) target = $region12
      $region11: #{tpu_custom_call.1} parent=5 // pred_region
        %s213 = ssub.s32 %s21, 1
        // Predicated region
        $region13: #{tpu_custom_call.1} parent=11 // pred_check
          %p214 = pneg %p68
        $region14: #{tpu_custom_call.1} parent=11 // pred_check_branch
          %216 = sbr.rel (%p214) target = $region16
        $region15: #{tpu_custom_call.1} parent=11 // pred_region
          %s218 = ssub.s32 1024, 1024
          %219 = vsyncadd [#allocation9], %s218
          %s220 = sshll.u32 [#allocation8], 4
          %s221 = int_to_ptr.vmem [resolvable:$true] %s220
          %226 = dma.hbm_to_vmem [thread:$0]  %s1, 1024, %s221, [#allocation9], 64, 64, 4
        $region16: #{tpu_custom_call.1} parent=11 // pred_fallthru
          _
        // Predicated region
        $region17: #{tpu_custom_call.1} parent=11 // pred_check
          %p227 = pneg %p89
        $region18: #{tpu_custom_call.1} parent=11 // pred_check_branch
          %229 = sbr.rel (%p227) target = $region20
        $region19: #{tpu_custom_call.1} parent=11 // pred_region
          _
        $region20: #{tpu_custom_call.1} parent=11 // pred_fallthru
          _
        // Predicated region
        $region21: #{tpu_custom_call.1} parent=11 // pred_check
          %p230 = pneg %p110
        $region22: #{tpu_custom_call.1} parent=11 // pred_check_branch
          %232 = sbr.rel (%p230) target = $region24
        $region23: #{tpu_custom_call.1} parent=11 // pred_region
          %s234 = ssub.s32 9216, 9216
          %235 = vsyncadd [#allocation9], %s234
          %s236 = sshll.u32 [#allocation10], 4
          %s237 = int_to_ptr.vmem [resolvable:$true] %s236
          %242 = dma.hbm_to_vmem [thread:$0]  %s3, 9216, %s237, [#allocation9], 64, 64, 4
        $region24: #{tpu_custom_call.1} parent=11 // pred_fallthru
          _
        // Predicated region
        $region25: #{tpu_custom_call.1} parent=11 // pred_check
          %p243 = pneg %p131
        $region26: #{tpu_custom_call.1} parent=11 // pred_check_branch
          %245 = sbr.rel (%p243) target = $region28
        $region27: #{tpu_custom_call.1} parent=11 // pred_region
          _
        $region28: #{tpu_custom_call.1} parent=11 // pred_fallthru
          _
        // Predicated region
        $region29: #{tpu_custom_call.1} parent=11 // pred_check
          %p246 = pneg %p152
        $region30: #{tpu_custom_call.1} parent=11 // pred_check_branch
          %248 = sbr.rel (%p246) target = $region32
        $region31: #{tpu_custom_call.1} parent=11 // pred_region
          %s250 = ssub.s32 1024, 1024
          %251 = vsyncadd [#allocation12], %s250
          %s252 = sshll.u32 [#allocation11], 4
          %s253 = int_to_ptr.vmem [resolvable:$true] %s252
          %258 = dma.hbm_to_vmem [thread:$0]  %s5, 1024, %s253, [#allocation12], 64, 64, 4
        $region32: #{tpu_custom_call.1} parent=11 // pred_fallthru
          _
        // Predicated region
        $region33: #{tpu_custom_call.1} parent=11 // pred_check
          %p259 = pneg %p173
        $region34: #{tpu_custom_call.1} parent=11 // pred_check_branch
          %261 = sbr.rel (%p259) target = $region36
        $region35: #{tpu_custom_call.1} parent=11 // pred_region
          _
        $region36: #{tpu_custom_call.1} parent=11 // pred_fallthru
          _
      $region12: #{tpu_custom_call.1} parent=5 // pred_fallthru
        _
      %p262 = scmp.lt.s32.totalorder %s21, 2
      // Predicated region
      $region37: #{tpu_custom_call.1} parent=5 // pred_check
        %p263 = pneg %p262
      $region38: #{tpu_custom_call.1} parent=5 // pred_check_branch
        %265 = sbr.rel (%p263) target = $region40
      $region39: #{tpu_custom_call.1} parent=5 // pred_region
        // Predicated region
        $region41: #{tpu_custom_call.1} parent=39 // pred_check
          %p266 = pneg %p41
        $region42: #{tpu_custom_call.1} parent=39 // pred_check_branch
          %268 = sbr.rel (%p266) target = $region44
        $region43: #{tpu_custom_call.1} parent=39 // pred_region
          %s269 = sand.u32 %s31, 1
          %s270 = scalar_lea.sflag [#allocation6], %s269
          %s271 = sand.u32 %s31, 1
          %s272 = smul.addr %s271, 256
          %s273 = scalar_lea.vmem [#allocation5], %s272
          %s275 = ssub.s32 4096, 4096
          %276 = vsyncadd %s270, %s275
          %s277 = smul.addr %s21, 32
          %s278 = smul.addr %s277, 128
          %s279 = scalar_lea.hbm %s0, %s278
          %s280 = sshll.u32 %s273, 4
          %s281 = int_to_ptr.vmem [resolvable:$true] %s280
          %286 = dma.hbm_to_vmem [thread:$0]  %s279, 4096, %s281, %s270, 128, 128, 8
        $region44: #{tpu_custom_call.1} parent=39 // pred_fallthru
          _
      $region40: #{tpu_custom_call.1} parent=5 // pred_fallthru
        _
      %p287 = scmp.le.s32.totalorder 1, %s21
      %p288 = scmp.lt.s32.totalorder %s21, 3
      %p289 = pnand %p287, %p288
      %p290 = pneg %p289
      // Predicated region
      $region45: #{tpu_custom_call.1} parent=5 // pred_check
        _
      $region46: #{tpu_custom_call.1} parent=5 // pred_check_branch
        %292 = sbr.rel (%p289) target = $region48
      $region47: #{tpu_custom_call.1} parent=5 // pred_region
        %s293 = ssub.s32 %s21, 1
        %s294 = sand.u32 %s34, 1
        %s295 = scalar_lea.sflag [#allocation6], %s294
        %s296 = sand.u32 %s34, 1
        %s297 = smul.addr %s296, 256
        %s298 = scalar_lea.vmem [#allocation5], %s297
        // Predicated region
        $region49: #{tpu_custom_call.1} parent=47 // pred_check
          %p299 = pneg %p47
        $region50: #{tpu_custom_call.1} parent=47 // pred_check_branch
          %301 = sbr.rel (%p299) target = $region52
        $region51: #{tpu_custom_call.1} parent=47 // pred_region
          %302 = dma.done %s295, 4096
        $region52: #{tpu_custom_call.1} parent=47 // pred_fallthru
          _
        // Predicated region
        $region53: #{tpu_custom_call.1} parent=47 // pred_check
          %p303 = pneg %p68
        $region54: #{tpu_custom_call.1} parent=47 // pred_check_branch
          %305 = sbr.rel (%p303) target = $region56
        $region55: #{tpu_custom_call.1} parent=47 // pred_region
          %306 = dma.done [#allocation9], 1024
        $region56: #{tpu_custom_call.1} parent=47 // pred_fallthru
          _
        // Predicated region
        $region57: #{tpu_custom_call.1} parent=47 // pred_check
          %p307 = pneg %p110
        $region58: #{tpu_custom_call.1} parent=47 // pred_check_branch
          %309 = sbr.rel (%p307) target = $region60
        $region59: #{tpu_custom_call.1} parent=47 // pred_region
          %310 = dma.done [#allocation9], 9216
        $region60: #{tpu_custom_call.1} parent=47 // pred_fallthru
          _
        // Predicated region
        $region61: #{tpu_custom_call.1} parent=47 // pred_check
          %p311 = pneg %p152
        $region62: #{tpu_custom_call.1} parent=47 // pred_check_branch
          %313 = sbr.rel (%p311) target = $region64
        $region63: #{tpu_custom_call.1} parent=47 // pred_region
          %314 = dma.done [#allocation12], 1024
        $region64: #{tpu_custom_call.1} parent=47 // pred_fallthru
          _
        %s315 = sand.u32 %s34, 1
        %s316 = scalar_lea.sflag [#allocation6], %s315
        %s317 = sand.u32 %s34, 1
        %s318 = smul.addr %s317, 256
        %s319 = scalar_lea.vmem [#allocation5], %s318
        %p320 = pneg %p47
        %p321 = pneg %p44
        %p322 = pneg %p68
        %p323 = pneg %p65
        %p324 = pneg %p89
        %p325 = pneg %p86
        %p326 = pneg %p110
        %p327 = pneg %p107
        %p328 = pneg %p131
        %p329 = pneg %p128
        %p330 = pneg %p152
        %p331 = pneg %p149
        %p332 = pneg %p173
        %p333 = pneg %p170
        %p334 = pneg %p199
        %p335 = pneg %p196
        %s336 = sand.u32 %s186, 1
        %s337 = scalar_lea.sflag [#allocation7], %s336
        %s338 = sand.u32 %s186, 1
        %s339 = smul.addr %s338, 256
        %s340 = scalar_lea.vmem [#allocation13], %s339
        %v342 = vld [vmem:[%s298] sm:$0xff]
        %v343 = vld [vmem:[%s298 + $0x8] sm:$0xff]
        %v344 = vld [vmem:[%s298 + $0x10] sm:$0xff]
        %v345 = vld [vmem:[%s298 + $0x18] sm:$0xff]
        %v346 = vld [vmem:[%s298 + $0x20] sm:$0xff]
        %v347 = vld [vmem:[%s298 + $0x28] sm:$0xff]
        %v348 = vld [vmem:[%s298 + $0x30] sm:$0xff]
        %v349 = vld [vmem:[%s298 + $0x38] sm:$0xff]
        %v350 = vld [vmem:[%s298 + $0x40] sm:$0xff]
        %v351 = vld [vmem:[%s298 + $0x48] sm:$0xff]
        %v352 = vld [vmem:[%s298 + $0x50] sm:$0xff]
        %v353 = vld [vmem:[%s298 + $0x58] sm:$0xff]
        %v354 = vld [vmem:[%s298 + $0x60] sm:$0xff]
        %v355 = vld [vmem:[%s298 + $0x68] sm:$0xff]
        %v356 = vld [vmem:[%s298 + $0x70] sm:$0xff]
        %v357 = vld [vmem:[%s298 + $0x78] sm:$0xff]
        %v358 = vld [vmem:[%s298 + $0x80] sm:$0xff]
        %v359 = vld [vmem:[%s298 + $0x88] sm:$0xff]
        %v360 = vld [vmem:[%s298 + $0x90] sm:$0xff]
        %v361 = vld [vmem:[%s298 + $0x98] sm:$0xff]
        %v362 = vld [vmem:[%s298 + $0xa0] sm:$0xff]
        %v363 = vld [vmem:[%s298 + $0xa8] sm:$0xff]
        %v364 = vld [vmem:[%s298 + $0xb0] sm:$0xff]
        %v365 = vld [vmem:[%s298 + $0xb8] sm:$0xff]
        %v366 = vld [vmem:[%s298 + $0xc0] sm:$0xff]
        %v367 = vld [vmem:[%s298 + $0xc8] sm:$0xff]
        %v368 = vld [vmem:[%s298 + $0xd0] sm:$0xff]
        %v369 = vld [vmem:[%s298 + $0xd8] sm:$0xff]
        %v370 = vld [vmem:[%s298 + $0xe0] sm:$0xff]
        %v371 = vld [vmem:[%s298 + $0xe8] sm:$0xff]
        %v372 = vld [vmem:[%s298 + $0xf0] sm:$0xff]
        %v373 = vld [vmem:[%s298 + $0xf8] sm:$0xff]
        %vm374 = vcmask 1047680
        %375 = vst.msk [vmem:[#allocation2] sm:$0xff] %vm374, 0.0
        %376 = vst.msk [vmem:[#allocation2 + $0x8] sm:$0xff] %vm374, 0.0
        %377 = vst.msk [vmem:[#allocation2 + $0x10] sm:$0xff] %vm374, 0.0
        %378 = vst.msk [vmem:[#allocation2 + $0x18] sm:$0xff] %vm374, 0.0
        %379 = vst.msk [vmem:[#allocation2 + $0x20] sm:$0xff] %vm374, 0.0
        %380 = vst.msk [vmem:[#allocation2 + $0x28] sm:$0xff] %vm374, 0.0
        %381 = vst.msk [vmem:[#allocation2 + $0x30] sm:$0xff] %vm374, 0.0
        %382 = vst.msk [vmem:[#allocation2 + $0x38] sm:$0xff] %vm374, 0.0
        %383 = vst.msk [vmem:[#allocation2 + $0x40] sm:$0xff] %vm374, 0.0
        %384 = vst.msk [vmem:[#allocation2 + $0x48] sm:$0xff] %vm374, 0.0
        %385 = vst.msk [vmem:[#allocation2 + $0x50] sm:$0xff] %vm374, 0.0
        %386 = vst.msk [vmem:[#allocation2 + $0x58] sm:$0xff] %vm374, 0.0
        %387 = vst.msk [vmem:[#allocation2 + $0x60] sm:$0xff] %vm374, 0.0
        %388 = vst.msk [vmem:[#allocation2 + $0x68] sm:$0xff] %vm374, 0.0
        %389 = vst.msk [vmem:[#allocation2 + $0x70] sm:$0xff] %vm374, 0.0
        %390 = vst.msk [vmem:[#allocation2 + $0x78] sm:$0xff] %vm374, 0.0
        %391 = vst.msk [vmem:[#allocation2 + $0x80] sm:$0xff] %vm374, 0.0
        %392 = vst.msk [vmem:[#allocation2 + $0x88] sm:$0xff] %vm374, 0.0
        %393 = vst.msk [vmem:[#allocation2 + $0x90] sm:$0xff] %vm374, 0.0
        %394 = vst.msk [vmem:[#allocation2 + $0x98] sm:$0xff] %vm374, 0.0
        %395 = vst.msk [vmem:[#allocation2 + $0xa0] sm:$0xff] %vm374, 0.0
        %396 = vst.msk [vmem:[#allocation2 + $0xa8] sm:$0xff] %vm374, 0.0
        %397 = vst.msk [vmem:[#allocation2 + $0xb0] sm:$0xff] %vm374, 0.0
        %398 = vst.msk [vmem:[#allocation2 + $0xb8] sm:$0xff] %vm374, 0.0
        %399 = vst.msk [vmem:[#allocation2 + $0xc0] sm:$0xff] %vm374, 0.0
        %400 = vst.msk [vmem:[#allocation2 + $0xc8] sm:$0xff] %vm374, 0.0
        %401 = vst.msk [vmem:[#allocation2 + $0xd0] sm:$0xff] %vm374, 0.0
        %402 = vst.msk [vmem:[#allocation2 + $0xd8] sm:$0xff] %vm374, 0.0
        %403 = vst.msk [vmem:[#allocation2 + $0xe0] sm:$0xff] %vm374, 0.0
        %404 = vst.msk [vmem:[#allocation2 + $0xe8] sm:$0xff] %vm374, 0.0
        %405 = vst.msk [vmem:[#allocation2 + $0xf0] sm:$0xff] %vm374, 0.0
        %406 = vst.msk [vmem:[#allocation2 + $0xf8] sm:$0xff] %vm374, 0.0
        %vm407 = vcmask 130048
        %408 = vst.msk [vmem:[#allocation2] sm:$0xff] %vm407, %v342
        %409 = vst.msk [vmem:[#allocation2 + $0x8] sm:$0xff] %vm407, %v343
        %410 = vst.msk [vmem:[#allocation2 + $0x10] sm:$0xff] %vm407, %v344
        %411 = vst.msk [vmem:[#allocation2 + $0x18] sm:$0xff] %vm407, %v345
        %412 = vst.msk [vmem:[#allocation2 + $0x20] sm:$0xff] %vm407, %v346
        %413 = vst.msk [vmem:[#allocation2 + $0x28] sm:$0xff] %vm407, %v347
        %414 = vst.msk [vmem:[#allocation2 + $0x30] sm:$0xff] %vm407, %v348
        %415 = vst.msk [vmem:[#allocation2 + $0x38] sm:$0xff] %vm407, %v349
        %416 = vst.msk [vmem:[#allocation2 + $0x40] sm:$0xff] %vm407, %v350
        %417 = vst.msk [vmem:[#allocation2 + $0x48] sm:$0xff] %vm407, %v351
        %418 = vst.msk [vmem:[#allocation2 + $0x50] sm:$0xff] %vm407, %v352
        %419 = vst.msk [vmem:[#allocation2 + $0x58] sm:$0xff] %vm407, %v353
        %420 = vst.msk [vmem:[#allocation2 + $0x60] sm:$0xff] %vm407, %v354
        %421 = vst.msk [vmem:[#allocation2 + $0x68] sm:$0xff] %vm407, %v355
        %422 = vst.msk [vmem:[#allocation2 + $0x70] sm:$0xff] %vm407, %v356
        %423 = vst.msk [vmem:[#allocation2 + $0x78] sm:$0xff] %vm407, %v357
        %424 = vst.msk [vmem:[#allocation2 + $0x80] sm:$0xff] %vm407, %v358
        %425 = vst.msk [vmem:[#allocation2 + $0x88] sm:$0xff] %vm407, %v359
        %426 = vst.msk [vmem:[#allocation2 + $0x90] sm:$0xff] %vm407, %v360
        %427 = vst.msk [vmem:[#allocation2 + $0x98] sm:$0xff] %vm407, %v361
        %428 = vst.msk [vmem:[#allocation2 + $0xa0] sm:$0xff] %vm407, %v362
        %429 = vst.msk [vmem:[#allocation2 + $0xa8] sm:$0xff] %vm407, %v363
        %430 = vst.msk [vmem:[#allocation2 + $0xb0] sm:$0xff] %vm407, %v364
        %431 = vst.msk [vmem:[#allocation2 + $0xb8] sm:$0xff] %vm407, %v365
        %432 = vst.msk [vmem:[#allocation2 + $0xc0] sm:$0xff] %vm407, %v366
        %433 = vst.msk [vmem:[#allocation2 + $0xc8] sm:$0xff] %vm407, %v367
        %434 = vst.msk [vmem:[#allocation2 + $0xd0] sm:$0xff] %vm407, %v368
        %435 = vst.msk [vmem:[#allocation2 + $0xd8] sm:$0xff] %vm407, %v369
        %436 = vst.msk [vmem:[#allocation2 + $0xe0] sm:$0xff] %vm407, %v370
        %437 = vst.msk [vmem:[#allocation2 + $0xe8] sm:$0xff] %vm407, %v371
        %438 = vst.msk [vmem:[#allocation2 + $0xf0] sm:$0xff] %vm407, %v372
        %439 = vst.msk [vmem:[#allocation2 + $0xf8] sm:$0xff] %vm407, %v373
        %v440 = vld [vmem:[#allocation2] sm:$0xff]
        %v441 = vld [vmem:[#allocation2 + $0x8] sm:$0xff]
        %v442 = vld [vmem:[#allocation2 + $0x10] sm:$0xff]
        %v443 = vld [vmem:[#allocation2 + $0x18] sm:$0xff]
        %v444 = vld [vmem:[#allocation2 + $0x20] sm:$0xff]
        %v445 = vld [vmem:[#allocation2 + $0x28] sm:$0xff]
        %v446 = vld [vmem:[#allocation2 + $0x30] sm:$0xff]
        %v447 = vld [vmem:[#allocation2 + $0x38] sm:$0xff]
        %v448 = vld [vmem:[#allocation2 + $0x40] sm:$0xff]
        %v449 = vld [vmem:[#allocation2 + $0x48] sm:$0xff]
        %v450 = vld [vmem:[#allocation2 + $0x50] sm:$0xff]
        %v451 = vld [vmem:[#allocation2 + $0x58] sm:$0xff]
        %v452 = vld [vmem:[#allocation2 + $0x60] sm:$0xff]
        %v453 = vld [vmem:[#allocation2 + $0x68] sm:$0xff]
        %v454 = vld [vmem:[#allocation2 + $0x70] sm:$0xff]
        %v455 = vld [vmem:[#allocation2 + $0x78] sm:$0xff]
        %v456 = vld [vmem:[#allocation2 + $0x80] sm:$0xff]
        %v457 = vld [vmem:[#allocation2 + $0x88] sm:$0xff]
        %v458 = vld [vmem:[#allocation2 + $0x90] sm:$0xff]
        %v459 = vld [vmem:[#allocation2 + $0x98] sm:$0xff]
        %v460 = vld [vmem:[#allocation2 + $0xa0] sm:$0xff]
        %v461 = vld [vmem:[#allocation2 + $0xa8] sm:$0xff]
        %v462 = vld [vmem:[#allocation2 + $0xb0] sm:$0xff]
        %v463 = vld [vmem:[#allocation2 + $0xb8] sm:$0xff]
        %v464 = vld [vmem:[#allocation2 + $0xc0] sm:$0xff]
        %v465 = vld [vmem:[#allocation2 + $0xc8] sm:$0xff]
        %v466 = vld [vmem:[#allocation2 + $0xd0] sm:$0xff]
        %v467 = vld [vmem:[#allocation2 + $0xd8] sm:$0xff]
        %v468 = vld [vmem:[#allocation2 + $0xe0] sm:$0xff]
        %v469 = vld [vmem:[#allocation2 + $0xe8] sm:$0xff]
        %v470 = vld [vmem:[#allocation2 + $0xf0] sm:$0xff]
        %v471 = vld [vmem:[#allocation2 + $0xf8] sm:$0xff]
        %v472 = vpack.c.bf16 %v441, %v440
        %v473 = vpack.c.bf16 %v443, %v442
        %v474 = vpack.c.bf16 %v445, %v444
        %v475 = vpack.c.bf16 %v447, %v446
        %v476 = vpack.c.bf16 %v449, %v448
        %v477 = vpack.c.bf16 %v451, %v450
        %v478 = vpack.c.bf16 %v453, %v452
        %v479 = vpack.c.bf16 %v455, %v454
        %v480 = vpack.c.bf16 %v457, %v456
        %v481 = vpack.c.bf16 %v459, %v458
        %v482 = vpack.c.bf16 %v461, %v460
        %v483 = vpack.c.bf16 %v463, %v462
        %v484 = vpack.c.bf16 %v465, %v464
        %v485 = vpack.c.bf16 %v467, %v466
        %v486 = vpack.c.bf16 %v469, %v468
        %v487 = vpack.c.bf16 %v471, %v470
        %v488 = vld [vmem:[#allocation8] sm:$0xf]
        %v489 = vld [vmem:[#allocation8 + $0x4] sm:$0xf]
        %v490 = vld [vmem:[#allocation8 + $0x8] sm:$0xf]
        %v491 = vld [vmem:[#allocation8 + $0xc] sm:$0xf]
        %v492 = vld [vmem:[#allocation8 + $0x10] sm:$0xf]
        %v493 = vld [vmem:[#allocation8 + $0x14] sm:$0xf]
        %v494 = vld [vmem:[#allocation8 + $0x18] sm:$0xf]
        %v495 = vld [vmem:[#allocation8 + $0x1c] sm:$0xf]
        %v496 = vld [vmem:[#allocation8 + $0x20] sm:$0xf]
        %v497 = vld [vmem:[#allocation8 + $0x24] sm:$0xf]
        %v498 = vld [vmem:[#allocation8 + $0x28] sm:$0xf]
        %v499 = vld [vmem:[#allocation8 + $0x2c] sm:$0xf]
        %v500 = vld [vmem:[#allocation8 + $0x30] sm:$0xf]
        %v501 = vld [vmem:[#allocation8 + $0x34] sm:$0xf]
        %v502 = vld [vmem:[#allocation8 + $0x38] sm:$0xf]
        %v503 = vld [vmem:[#allocation8 + $0x3c] sm:$0xf]
        %v504 = vld [vmem:[%s2] sm:$0x1]
        %v506 = vlaneseq
        %v507 = vshrl.u32 %v506, 7
        %v508 = vsub.s32 0, %v507
        %v509 = vrot.slane %v504, %v508
        %v527 = vunpack.c.l.b16 %v488
        %v528 = vunpack.c.l.b16 %v489
        %v529 = vunpack.c.l.b16 %v490
        %v530 = vunpack.c.l.b16 %v491
        %v531 = vunpack.c.l.b16 %v492
        %v532 = vunpack.c.l.b16 %v493
        %v533 = vunpack.c.l.b16 %v494
        %v534 = vunpack.c.l.b16 %v495
        %v535 = vunpack.c.l.b16 %v496
        %v536 = vunpack.c.l.b16 %v497
        %v537 = vunpack.c.l.b16 %v498
        %v538 = vunpack.c.l.b16 %v499
        %v539 = vunpack.c.l.b16 %v500
        %v540 = vunpack.c.l.b16 %v501
        %v541 = vunpack.c.l.b16 %v502
        %v542 = vunpack.c.l.b16 %v503
        %v543 = vpack.c.b16 %v528, %v527
        %v544 = vpack.c.b16 %v530, %v529
        %v545 = vpack.c.b16 %v532, %v531
        %v546 = vpack.c.b16 %v534, %v533
        %v547 = vpack.c.b16 %v536, %v535
        %v548 = vpack.c.b16 %v538, %v537
        %v549 = vpack.c.b16 %v540, %v539
        %v550 = vpack.c.b16 %v542, %v541
        %559 = vmatprep.subr.bf16.mxu0 0
        %560 = vmatpush1.bf16.msra.mxu0 %v543
        %561 = vmatprep.subr.bf16.mxu0 0
        %562 = vmatpush1.bf16.msra.mxu0 %v544
        %563 = vmatprep.subr.bf16.mxu0 0
        %564 = vmatpush1.bf16.msra.mxu0 %v545
        %565 = vmatprep.subr.bf16.mxu0 0
        %566 = vmatpush1.bf16.msra.mxu0 %v546
        %567 = vmatprep.subr.bf16.mxu0 0
        %568 = vmatpush1.bf16.msra.mxu0 %v547
        %569 = vmatprep.subr.bf16.mxu0 0
        %570 = vmatpush1.bf16.msra.mxu0 %v548
        %571 = vmatprep.subr.bf16.mxu0 0
        %572 = vmatpush1.bf16.msra.mxu0 %v549
        %573 = vmatprep.subr.bf16.mxu0 0
        %574 = vmatpush1.bf16.msra.mxu0 %v550
        %575 = vmatprep.subr.bf16.mxu0 0
        %576 = vmatpush1.bf16.msra.mxu0 0
        %577 = vmatprep.subr.bf16.mxu0 0
        %578 = vmatpush1.bf16.msra.mxu0 0
        %579 = vmatprep.subr.bf16.mxu0 0
        %580 = vmatpush1.bf16.msra.mxu0 0
        %581 = vmatprep.subr.bf16.mxu0 0
        %582 = vmatpush1.bf16.msra.mxu0 0
        %583 = vmatprep.subr.bf16.mxu0 0
        %584 = vmatpush1.bf16.msra.mxu0 0
        %585 = vmatprep.subr.bf16.mxu0 0
        %586 = vmatpush1.bf16.msra.mxu0 0
        %587 = vmatprep.subr.bf16.mxu0 0
        %588 = vmatpush1.bf16.msra.mxu0 0
        %589 = vmatprep.subr.bf16.mxu0 0
        %590 = vmatpush1.bf16.msra.mxu0 0
        %591 = vmatprep.mubr.bf16.mxu0 0
        %592 = vmatmul.mubr.bf16.gmra.mrb[0].mxu0 %v472
        %v593 = vpop.f32.mrb[0].mxu0
        %v594 = vadd.f32 %v509, %v593
        %v595 = vpop.f32.mrb[0].mxu0
        %v596 = vpop.f32.mrb[0].mxu0
        %v597 = vadd.f32 %v509, %v596
        %v598 = vpop.f32.mrb[0].mxu0
        %599 = vmatprep.mubr.bf16.mxu0 0
        %600 = vmatmul.mubr.bf16.gmra.mrb[0].mxu0 %v473
        %v601 = vpop.f32.mrb[0].mxu0
        %v602 = vadd.f32 %v509, %v601
        %v603 = vpop.f32.mrb[0].mxu0
        %v604 = vpop.f32.mrb[0].mxu0
        %v605 = vadd.f32 %v509, %v604
        %v606 = vpop.f32.mrb[0].mxu0
        %607 = vmatprep.mubr.bf16.mxu0 0
        %608 = vmatmul.mubr.bf16.gmra.mrb[0].mxu0 %v474
        %v609 = vpop.f32.mrb[0].mxu0
        %v610 = vadd.f32 %v509, %v609
        %v611 = vpop.f32.mrb[0].mxu0
        %v612 = vpop.f32.mrb[0].mxu0
        %v613 = vadd.f32 %v509, %v612
        %v614 = vpop.f32.mrb[0].mxu0
        %615 = vmatprep.mubr.bf16.mxu0 0
        %616 = vmatmul.mubr.bf16.gmra.mrb[0].mxu0 %v475
        %v617 = vpop.f32.mrb[0].mxu0
        %v618 = vadd.f32 %v509, %v617
        %v619 = vpop.f32.mrb[0].mxu0
        %v620 = vpop.f32.mrb[0].mxu0
        %v621 = vadd.f32 %v509, %v620
        %v622 = vpop.f32.mrb[0].mxu0
        %623 = vmatprep.mubr.bf16.mxu0 0
        %624 = vmatmul.mubr.bf16.gmra.mrb[0].mxu0 %v476
        %v625 = vpop.f32.mrb[0].mxu0
        %v626 = vadd.f32 %v509, %v625
        %v627 = vpop.f32.mrb[0].mxu0
        %v628 = vpop.f32.mrb[0].mxu0
        %v629 = vadd.f32 %v509, %v628
        %v630 = vpop.f32.mrb[0].mxu0
        %631 = vmatprep.mubr.bf16.mxu0 0
        %632 = vmatmul.mubr.bf16.gmra.mrb[0].mxu0 %v477
        %v633 = vpop.f32.mrb[0].mxu0
        %v634 = vadd.f32 %v509, %v633
        %v635 = vpop.f32.mrb[0].mxu0
        %v636 = vpop.f32.mrb[0].mxu0
        %v637 = vadd.f32 %v509, %v636
        %v638 = vpop.f32.mrb[0].mxu0
        %639 = vmatprep.mubr.bf16.mxu0 0
        %640 = vmatmul.mubr.bf16.gmra.mrb[0].mxu0 %v478
        %v641 = vpop.f32.mrb[0].mxu0
        %v642 = vadd.f32 %v509, %v641
        %v643 = vpop.f32.mrb[0].mxu0
        %v644 = vpop.f32.mrb[0].mxu0
        %v645 = vadd.f32 %v509, %v644
        %v646 = vpop.f32.mrb[0].mxu0
        %647 = vmatprep.mubr.bf16.mxu0 0
        %648 = vmatmul.mubr.bf16.gmra.mrb[0].mxu0 %v479
        %v649 = vpop.f32.mrb[0].mxu0
        %v650 = vadd.f32 %v509, %v649
        %v651 = vpop.f32.mrb[0].mxu0
        %v652 = vpop.f32.mrb[0].mxu0
        %v653 = vadd.f32 %v509, %v652
        %v654 = vpop.f32.mrb[0].mxu0
        %655 = vmatprep.mubr.bf16.mxu0 0
        %656 = vmatmul.mubr.bf16.gmra.mrb[0].mxu0 %v480
        %v657 = vpop.f32.mrb[0].mxu0
        %v658 = vadd.f32 %v509, %v657
        %v659 = vpop.f32.mrb[0].mxu0
        %v660 = vpop.f32.mrb[0].mxu0
        %v661 = vadd.f32 %v509, %v660
        %v662 = vpop.f32.mrb[0].mxu0
        %663 = vmatprep.mubr.bf16.mxu0 0
        %664 = vmatmul.mubr.bf16.gmra.mrb[0].mxu0 %v481
        %v665 = vpop.f32.mrb[0].mxu0
        %v666 = vadd.f32 %v509, %v665
        %v667 = vpop.f32.mrb[0].mxu0
        %v668 = vpop.f32.mrb[0].mxu0
        %v669 = vadd.f32 %v509, %v668
        %v670 = vpop.f32.mrb[0].mxu0
        %671 = vmatprep.mubr.bf16.mxu0 0
        %672 = vmatmul.mubr.bf16.gmra.mrb[0].mxu0 %v482
        %v673 = vpop.f32.mrb[0].mxu0
        %v674 = vadd.f32 %v509, %v673
        %v675 = vpop.f32.mrb[0].mxu0
        %v676 = vpop.f32.mrb[0].mxu0
        %v677 = vadd.f32 %v509, %v676
        %v678 = vpop.f32.mrb[0].mxu0
        %679 = vmatprep.mubr.bf16.mxu0 0
        %680 = vmatmul.mubr.bf16.gmra.mrb[0].mxu0 %v483
        %v681 = vpop.f32.mrb[0].mxu0
        %v682 = vadd.f32 %v509, %v681
        %v683 = vpop.f32.mrb[0].mxu0
        %v684 = vpop.f32.mrb[0].mxu0
        %v685 = vadd.f32 %v509, %v684
        %v686 = vpop.f32.mrb[0].mxu0
        %687 = vmatprep.mubr.bf16.mxu0 0
        %688 = vmatmul.mubr.bf16.gmra.mrb[0].mxu0 %v484
        %v689 = vpop.f32.mrb[0].mxu0
        %v690 = vadd.f32 %v509, %v689
        %v691 = vpop.f32.mrb[0].mxu0
        %v692 = vpop.f32.mrb[0].mxu0
        %v693 = vadd.f32 %v509, %v692
        %v694 = vpop.f32.mrb[0].mxu0
        %695 = vmatprep.mubr.bf16.mxu0 0
        %696 = vmatmul.mubr.bf16.gmra.mrb[0].mxu0 %v485
        %v697 = vpop.f32.mrb[0].mxu0
        %v698 = vadd.f32 %v509, %v697
        %v699 = vpop.f32.mrb[0].mxu0
        %v700 = vpop.f32.mrb[0].mxu0
        %v701 = vadd.f32 %v509, %v700
        %v702 = vpop.f32.mrb[0].mxu0
        %703 = vmatprep.mubr.bf16.mxu0 0
        %704 = vmatmul.mubr.bf16.gmra.mrb[0].mxu0 %v486
        %v705 = vpop.f32.mrb[0].mxu0
        %v706 = vadd.f32 %v509, %v705
        %v707 = vpop.f32.mrb[0].mxu0
        %v708 = vpop.f32.mrb[0].mxu0
        %v709 = vadd.f32 %v509, %v708
        %v710 = vpop.f32.mrb[0].mxu0
        %711 = vmatprep.mubr.bf16.mxu0 0
        %712 = vmatmul.mubr.bf16.gmra.mrb[0].mxu0 %v487
        %v713 = vpop.f32.mrb[0].mxu0
        %v714 = vadd.f32 %v509, %v713
        %v715 = vpop.f32.mrb[0].mxu0
        %v716 = vpop.f32.mrb[0].mxu0
        %v717 = vadd.f32 %v509, %v716
        %v718 = vpop.f32.mrb[0].mxu0
        %719 = vdwg.mxu0
        %v720 = vmax.f32 %v594, 0.0
        %v721 = vmax.f32 %v597, 0.0
        %v722 = vmax.f32 %v602, 0.0
        %v723 = vmax.f32 %v605, 0.0
        %v724 = vmax.f32 %v610, 0.0
        %v725 = vmax.f32 %v613, 0.0
        %v726 = vmax.f32 %v618, 0.0
        %v727 = vmax.f32 %v621, 0.0
        %v728 = vmax.f32 %v626, 0.0
        %v729 = vmax.f32 %v629, 0.0
        %v730 = vmax.f32 %v634, 0.0
        %v731 = vmax.f32 %v637, 0.0
        %v732 = vmax.f32 %v642, 0.0
        %v733 = vmax.f32 %v645, 0.0
        %v734 = vmax.f32 %v650, 0.0
        %v735 = vmax.f32 %v653, 0.0
        %v736 = vmax.f32 %v658, 0.0
        %v737 = vmax.f32 %v661, 0.0
        %v738 = vmax.f32 %v666, 0.0
        %v739 = vmax.f32 %v669, 0.0
        %v740 = vmax.f32 %v674, 0.0
        %v741 = vmax.f32 %v677, 0.0
        %v742 = vmax.f32 %v682, 0.0
        %v743 = vmax.f32 %v685, 0.0
        %v744 = vmax.f32 %v690, 0.0
        %v745 = vmax.f32 %v693, 0.0
        %v746 = vmax.f32 %v698, 0.0
        %v747 = vmax.f32 %v701, 0.0
        %v748 = vmax.f32 %v706, 0.0
        %v749 = vmax.f32 %v709, 0.0
        %v750 = vmax.f32 %v714, 0.0
        %v751 = vmax.f32 %v717, 0.0
        %752 = vst [vmem:[#allocation3] sm:$0xf] 0
        %753 = vst [vmem:[#allocation3 + $0x4] sm:$0xf] 0
        %754 = vst [vmem:[#allocation3 + $0x8] sm:$0xf] 0
        %s755 = scalar_lea.vmem [#allocation3], 204
        %756 = vst [vmem:[%s755] sm:$0xf] 0
        %757 = vst [vmem:[%s755 + $0x4] sm:$0xf] 0
        %758 = vst [vmem:[%s755 + $0x8] sm:$0xf] 0
        %vm759 = vcmask 1040384
        %vm760 = vsmask.f32 256
        %vm761 = vmand %vm759, %vm760
        %v762 = vld [vmem:[#allocation3] sm:$0x1]
        %v763 = vsel %vm761, 0, %v762
        %764 = vst [vmem:[#allocation3] sm:$0x1] %v763
        %v765 = vld [vmem:[#allocation3 + $0xc] sm:$0x1]
        %v766 = vsel %vm761, 0, %v765
        %767 = vst [vmem:[#allocation3 + $0xc] sm:$0x1] %v766
        %v768 = vld [vmem:[#allocation3 + $0x18] sm:$0x1]
        %v769 = vsel %vm761, 0, %v768
        %770 = vst [vmem:[#allocation3 + $0x18] sm:$0x1] %v769
        %v771 = vld [vmem:[#allocation3 + $0x24] sm:$0x1]
        %v772 = vsel %vm761, 0, %v771
        %773 = vst [vmem:[#allocation3 + $0x24] sm:$0x1] %v772
        %v774 = vld [vmem:[#allocation3 + $0x30] sm:$0x1]
        %v775 = vsel %vm761, 0, %v774
        %776 = vst [vmem:[#allocation3 + $0x30] sm:$0x1] %v775
        %v777 = vld [vmem:[#allocation3 + $0x3c] sm:$0x1]
        %v778 = vsel %vm761, 0, %v777
        %779 = vst [vmem:[#allocation3 + $0x3c] sm:$0x1] %v778
        %v780 = vld [vmem:[#allocation3 + $0x48] sm:$0x1]
        %v781 = vsel %vm761, 0, %v780
        %782 = vst [vmem:[#allocation3 + $0x48] sm:$0x1] %v781
        %v783 = vld [vmem:[#allocation3 + $0x54] sm:$0x1]
        %v784 = vsel %vm761, 0, %v783
        %785 = vst [vmem:[#allocation3 + $0x54] sm:$0x1] %v784
        %v786 = vld [vmem:[#allocation3 + $0x60] sm:$0x1]
        %v787 = vsel %vm761, 0, %v786
        %788 = vst [vmem:[#allocation3 + $0x60] sm:$0x1] %v787
        %v789 = vld [vmem:[#allocation3 + $0x6c] sm:$0x1]
        %v790 = vsel %vm761, 0, %v789
        %791 = vst [vmem:[#allocation3 + $0x6c] sm:$0x1] %v790
        %v792 = vld [vmem:[#allocation3 + $0x78] sm:$0x1]
        %v793 = vsel %vm761, 0, %v792
        %794 = vst [vmem:[#allocation3 + $0x78] sm:$0x1] %v793
        %v795 = vld [vmem:[#allocation3 + $0x84] sm:$0x1]
        %v796 = vsel %vm761, 0, %v795
        %797 = vst [vmem:[#allocation3 + $0x84] sm:$0x1] %v796
        %v798 = vld [vmem:[#allocation3 + $0x90] sm:$0x1]
        %v799 = vsel %vm761, 0, %v798
        %800 = vst [vmem:[#allocation3 + $0x90] sm:$0x1] %v799
        %v801 = vld [vmem:[#allocation3 + $0x9c] sm:$0x1]
        %v802 = vsel %vm761, 0, %v801
        %803 = vst [vmem:[#allocation3 + $0x9c] sm:$0x1] %v802
        %v804 = vld [vmem:[#allocation3 + $0xa8] sm:$0x1]
        %v805 = vsel %vm761, 0, %v804
        %806 = vst [vmem:[#allocation3 + $0xa8] sm:$0x1] %v805
        %v807 = vld [vmem:[#allocation3 + $0xb4] sm:$0x1]
        %v808 = vsel %vm761, 0, %v807
        %809 = vst [vmem:[#allocation3 + $0xb4] sm:$0x1] %v808
        %v810 = vld [vmem:[#allocation3 + $0xc0] sm:$0x1]
        %v811 = vsel %vm761, 0, %v810
        %812 = vst [vmem:[#allocation3 + $0xc0] sm:$0x1] %v811
        %v813 = vld [vmem:[#allocation3 + $0xcc] sm:$0x1]
        %v814 = vsel %vm761, 0, %v813
        %815 = vst [vmem:[#allocation3 + $0xcc] sm:$0x1] %v814
        %vm816 = vsmask.f32 7938
        %vm817 = vmand %vm759, %vm816
        %v818 = vld [vmem:[#allocation3 + $0x8] sm:$0x1]
        %v819 = vsel %vm817, 0, %v818
        %820 = vst [vmem:[#allocation3 + $0x8] sm:$0x1] %v819
        %v821 = vld [vmem:[#allocation3 + $0x14] sm:$0x1]
        %v822 = vsel %vm817, 0, %v821
        %823 = vst [vmem:[#allocation3 + $0x14] sm:$0x1] %v822
        %v824 = vld [vmem:[#allocation3 + $0x20] sm:$0x1]
        %v825 = vsel %vm817, 0, %v824
        %826 = vst [vmem:[#allocation3 + $0x20] sm:$0x1] %v825
        %v827 = vld [vmem:[#allocation3 + $0x2c] sm:$0x1]
        %v828 = vsel %vm817, 0, %v827
        %829 = vst [vmem:[#allocation3 + $0x2c] sm:$0x1] %v828
        %v830 = vld [vmem:[#allocation3 + $0x38] sm:$0x1]
        %v831 = vsel %vm817, 0, %v830
        %832 = vst [vmem:[#allocation3 + $0x38] sm:$0x1] %v831
        %v833 = vld [vmem:[#allocation3 + $0x44] sm:$0x1]
        %v834 = vsel %vm817, 0, %v833
        %835 = vst [vmem:[#allocation3 + $0x44] sm:$0x1] %v834
        %v836 = vld [vmem:[#allocation3 + $0x50] sm:$0x1]
        %v837 = vsel %vm817, 0, %v836
        %838 = vst [vmem:[#allocation3 + $0x50] sm:$0x1] %v837
        %v839 = vld [vmem:[#allocation3 + $0x5c] sm:$0x1]
        %v840 = vsel %vm817, 0, %v839
        %841 = vst [vmem:[#allocation3 + $0x5c] sm:$0x1] %v840
        %v842 = vld [vmem:[#allocation3 + $0x68] sm:$0x1]
        %v843 = vsel %vm817, 0, %v842
        %844 = vst [vmem:[#allocation3 + $0x68] sm:$0x1] %v843
        %v845 = vld [vmem:[#allocation3 + $0x74] sm:$0x1]
        %v846 = vsel %vm817, 0, %v845
        %847 = vst [vmem:[#allocation3 + $0x74] sm:$0x1] %v846
        %v848 = vld [vmem:[#allocation3 + $0x80] sm:$0x1]
        %v849 = vsel %vm817, 0, %v848
        %850 = vst [vmem:[#allocation3 + $0x80] sm:$0x1] %v849
        %v851 = vld [vmem:[#allocation3 + $0x8c] sm:$0x1]
        %v852 = vsel %vm817, 0, %v851
        %853 = vst [vmem:[#allocation3 + $0x8c] sm:$0x1] %v852
        %v854 = vld [vmem:[#allocation3 + $0x98] sm:$0x1]
        %v855 = vsel %vm817, 0, %v854
        %856 = vst [vmem:[#allocation3 + $0x98] sm:$0x1] %v855
        %v857 = vld [vmem:[#allocation3 + $0xa4] sm:$0x1]
        %v858 = vsel %vm817, 0, %v857
        %859 = vst [vmem:[#allocation3 + $0xa4] sm:$0x1] %v858
        %v860 = vld [vmem:[#allocation3 + $0xb0] sm:$0x1]
        %v861 = vsel %vm817, 0, %v860
        %862 = vst [vmem:[#allocation3 + $0xb0] sm:$0x1] %v861
        %v863 = vld [vmem:[#allocation3 + $0xbc] sm:$0x1]
        %v864 = vsel %vm817, 0, %v863
        %865 = vst [vmem:[#allocation3 + $0xbc] sm:$0x1] %v864
        %v866 = vld [vmem:[#allocation3 + $0xc8] sm:$0x1]
        %v867 = vsel %vm817, 0, %v866
        %868 = vst [vmem:[#allocation3 + $0xc8] sm:$0x1] %v867
        %v869 = vld [vmem:[#allocation3 + $0xd4] sm:$0x1]
        %v870 = vsel %vm817, 0, %v869
        %871 = vst [vmem:[#allocation3 + $0xd4] sm:$0x1] %v870
        %v872 = vpack.c.bf16 %v721, %v720
        %v873 = vpack.c.bf16 %v723, %v722
        %v874 = vpack.c.bf16 %v725, %v724
        %v875 = vpack.c.bf16 %v727, %v726
        %v876 = vpack.c.bf16 %v729, %v728
        %v877 = vpack.c.bf16 %v731, %v730
        %v878 = vpack.c.bf16 %v733, %v732
        %v879 = vpack.c.bf16 %v735, %v734
        %v880 = vpack.c.bf16 %v737, %v736
        %v881 = vpack.c.bf16 %v739, %v738
        %v882 = vpack.c.bf16 %v741, %v740
        %v883 = vpack.c.bf16 %v743, %v742
        %v884 = vpack.c.bf16 %v745, %v744
        %v885 = vpack.c.bf16 %v747, %v746
        %v886 = vpack.c.bf16 %v749, %v748
        %v887 = vpack.c.bf16 %v751, %v750
        %v904 = vunpack.c.l.b16 %v872
        %v905 = vunpack.c.h.b16 %v872
        %v906 = vunpack.c.l.b16 %v873
        %v907 = vunpack.c.h.b16 %v873
        %v908 = vunpack.c.l.b16 %v874
        %v909 = vunpack.c.h.b16 %v874
        %v910 = vunpack.c.l.b16 %v875
        %v911 = vunpack.c.h.b16 %v875
        %v912 = vunpack.c.l.b16 %v876
        %v913 = vunpack.c.h.b16 %v876
        %v914 = vunpack.c.l.b16 %v877
        %v915 = vunpack.c.h.b16 %v877
        %v916 = vunpack.c.l.b16 %v878
        %v917 = vunpack.c.h.b16 %v878
        %v918 = vunpack.c.l.b16 %v879
        %v919 = vunpack.c.h.b16 %v879
        %v920 = vunpack.c.l.b16 %v880
        %v921 = vunpack.c.h.b16 %v880
        %v922 = vunpack.c.l.b16 %v881
        %v923 = vunpack.c.h.b16 %v881
        %v924 = vunpack.c.l.b16 %v882
        %v925 = vunpack.c.h.b16 %v882
        %v926 = vunpack.c.l.b16 %v883
        %v927 = vunpack.c.h.b16 %v883
        %v928 = vunpack.c.l.b16 %v884
        %v929 = vunpack.c.h.b16 %v884
        %v930 = vunpack.c.l.b16 %v885
        %v931 = vunpack.c.h.b16 %v885
        %v932 = vunpack.c.l.b16 %v886
        %v933 = vunpack.c.h.b16 %v886
        %v934 = vunpack.c.l.b16 %v887
        %v935 = vunpack.c.h.b16 %v887
        %v936 = vpack.c.b16 %v904, %v904
        %v937 = vpack.c.b16 %v905, %v905
        %v938 = vpack.c.b16 %v906, %v906
        %v939 = vpack.c.b16 %v907, %v907
        %v940 = vpack.c.b16 %v908, %v908
        %v941 = vpack.c.b16 %v909, %v909
        %v942 = vpack.c.b16 %v910, %v910
        %v943 = vpack.c.b16 %v911, %v911
        %v944 = vpack.c.b16 %v912, %v912
        %v945 = vpack.c.b16 %v913, %v913
        %v946 = vpack.c.b16 %v914, %v914
        %v947 = vpack.c.b16 %v915, %v915
        %v948 = vpack.c.b16 %v916, %v916
        %v949 = vpack.c.b16 %v917, %v917
        %v950 = vpack.c.b16 %v918, %v918
        %v951 = vpack.c.b16 %v919, %v919
        %v952 = vpack.c.b16 %v920, %v920
        %v953 = vpack.c.b16 %v921, %v921
        %v954 = vpack.c.b16 %v922, %v922
        %v955 = vpack.c.b16 %v923, %v923
        %v956 = vpack.c.b16 %v924, %v924
        %v957 = vpack.c.b16 %v925, %v925
        %v958 = vpack.c.b16 %v926, %v926
        %v959 = vpack.c.b16 %v927, %v927
        %v960 = vpack.c.b16 %v928, %v928
        %v961 = vpack.c.b16 %v929, %v929
        %v962 = vpack.c.b16 %v930, %v930
        %v963 = vpack.c.b16 %v931, %v931
        %v964 = vpack.c.b16 %v932, %v932
        %v965 = vpack.c.b16 %v933, %v933
        %v966 = vpack.c.b16 %v934, %v934
        %v967 = vpack.c.b16 %v935, %v935
        %vm968 = vsmask.f32 4368
        %vm969 = vmor %vm760, %vm968
        %v971 = vshrl.u32 %v936, 16
        %v973 = vrot.slane %v971, 7
        %v974 = vshll.u32 %v936, 16
        %v976 = vor.u32 %v973, %v974
        %v977 = vrot.slane %v973, 4
        %v979 = vshrl.u32 %v937, 16
        %v981 = vrot.slane %v979, 7
        %v982 = vshll.u32 %v937, 16
        %v984 = vor.u32 %v981, %v982
        %v985 = vsel %vm969, %v977, %v984
        %v986 = vrot.slane %v981, 4
        %v988 = vshrl.u32 %v938, 16
        %v990 = vrot.slane %v988, 7
        %v991 = vshll.u32 %v938, 16
        %v993 = vor.u32 %v990, %v991
        %v994 = vrot.slane %v990, 4
        %v996 = vshrl.u32 %v939, 16
        %v998 = vrot.slane %v996, 7
        %v999 = vshll.u32 %v939, 16
        %v1001 = vor.u32 %v998, %v999
        %v1002 = vsel %vm969, %v994, %v1001
        %v1003 = vrot.slane %v998, 4
        %v1005 = vshrl.u32 %v940, 16
        %v1007 = vrot.slane %v1005, 7
        %v1008 = vshll.u32 %v940, 16
        %v1010 = vor.u32 %v1007, %v1008
        %v1011 = vrot.slane %v1007, 4
        %v1013 = vshrl.u32 %v941, 16
        %v1015 = vrot.slane %v1013, 7
        %v1016 = vshll.u32 %v941, 16
        %v1018 = vor.u32 %v1015, %v1016
        %v1019 = vsel %vm969, %v1011, %v1018
        %v1020 = vrot.slane %v1015, 4
        %v1022 = vshrl.u32 %v942, 16
        %v1024 = vrot.slane %v1022, 7
        %v1025 = vshll.u32 %v942, 16
        %v1027 = vor.u32 %v1024, %v1025
        %v1028 = vrot.slane %v1024, 4
        %v1030 = vshrl.u32 %v943, 16
        %v1032 = vrot.slane %v1030, 7
        %v1033 = vshll.u32 %v943, 16
        %v1035 = vor.u32 %v1032, %v1033
        %v1036 = vsel %vm969, %v1028, %v1035
        %v1037 = vrot.slane %v1032, 4
        %v1039 = vshrl.u32 %v944, 16
        %v1041 = vrot.slane %v1039, 7
        %v1042 = vshll.u32 %v944, 16
        %v1044 = vor.u32 %v1041, %v1042
        %v1045 = vrot.slane %v1041, 4
        %v1047 = vshrl.u32 %v945, 16
        %v1049 = vrot.slane %v1047, 7
        %v1050 = vshll.u32 %v945, 16
        %v1052 = vor.u32 %v1049, %v1050
        %v1053 = vsel %vm969, %v1045, %v1052
        %v1054 = vrot.slane %v1049, 4
        %v1056 = vshrl.u32 %v946, 16
        %v1058 = vrot.slane %v1056, 7
        %v1059 = vshll.u32 %v946, 16
        %v1061 = vor.u32 %v1058, %v1059
        %v1062 = vrot.slane %v1058, 4
        %v1064 = vshrl.u32 %v947, 16
        %v1066 = vrot.slane %v1064, 7
        %v1067 = vshll.u32 %v947, 16
        %v1069 = vor.u32 %v1066, %v1067
        %v1070 = vsel %vm969, %v1062, %v1069
        %v1071 = vrot.slane %v1066, 4
        %v1073 = vshrl.u32 %v948, 16
        %v1075 = vrot.slane %v1073, 7
        %v1076 = vshll.u32 %v948, 16
        %v1078 = vor.u32 %v1075, %v1076
        %v1079 = vrot.slane %v1075, 4
        %v1081 = vshrl.u32 %v949, 16
        %v1083 = vrot.slane %v1081, 7
        %v1084 = vshll.u32 %v949, 16
        %v1086 = vor.u32 %v1083, %v1084
        %v1087 = vsel %vm969, %v1079, %v1086
        %v1088 = vrot.slane %v1083, 4
        %v1090 = vshrl.u32 %v950, 16
        %v1092 = vrot.slane %v1090, 7
        %v1093 = vshll.u32 %v950, 16
        %v1095 = vor.u32 %v1092, %v1093
        %v1096 = vrot.slane %v1092, 4
        %v1098 = vshrl.u32 %v951, 16
        %v1100 = vrot.slane %v1098, 7
        %v1101 = vshll.u32 %v951, 16
        %v1103 = vor.u32 %v1100, %v1101
        %v1104 = vsel %vm969, %v1096, %v1103
        %v1105 = vrot.slane %v1100, 4
        %v1107 = vshrl.u32 %v952, 16
        %v1109 = vrot.slane %v1107, 7
        %v1110 = vshll.u32 %v952, 16
        %v1112 = vor.u32 %v1109, %v1110
        %v1113 = vrot.slane %v1109, 4
        %v1115 = vshrl.u32 %v953, 16
        %v1117 = vrot.slane %v1115, 7
        %v1118 = vshll.u32 %v953, 16
        %v1120 = vor.u32 %v1117, %v1118
        %v1121 = vsel %vm969, %v1113, %v1120
        %v1122 = vrot.slane %v1117, 4
        %v1124 = vshrl.u32 %v954, 16
        %v1126 = vrot.slane %v1124, 7
        %v1127 = vshll.u32 %v954, 16
        %v1129 = vor.u32 %v1126, %v1127
        %v1130 = vrot.slane %v1126, 4
        %v1132 = vshrl.u32 %v955, 16
        %v1134 = vrot.slane %v1132, 7
        %v1135 = vshll.u32 %v955, 16
        %v1137 = vor.u32 %v1134, %v1135
        %v1138 = vsel %vm969, %v1130, %v1137
        %v1139 = vrot.slane %v1134, 4
        %v1141 = vshrl.u32 %v956, 16
        %v1143 = vrot.slane %v1141, 7
        %v1144 = vshll.u32 %v956, 16
        %v1146 = vor.u32 %v1143, %v1144
        %v1147 = vrot.slane %v1143, 4
        %v1149 = vshrl.u32 %v957, 16
        %v1151 = vrot.slane %v1149, 7
        %v1152 = vshll.u32 %v957, 16
        %v1154 = vor.u32 %v1151, %v1152
        %v1155 = vsel %vm969, %v1147, %v1154
        %v1156 = vrot.slane %v1151, 4
        %v1158 = vshrl.u32 %v958, 16
        %v1160 = vrot.slane %v1158, 7
        %v1161 = vshll.u32 %v958, 16
        %v1163 = vor.u32 %v1160, %v1161
        %v1164 = vrot.slane %v1160, 4
        %v1166 = vshrl.u32 %v959, 16
        %v1168 = vrot.slane %v1166, 7
        %v1169 = vshll.u32 %v959, 16
        %v1171 = vor.u32 %v1168, %v1169
        %v1172 = vsel %vm969, %v1164, %v1171
        %v1173 = vrot.slane %v1168, 4
        %v1175 = vshrl.u32 %v960, 16
        %v1177 = vrot.slane %v1175, 7
        %v1178 = vshll.u32 %v960, 16
        %v1180 = vor.u32 %v1177, %v1178
        %v1181 = vrot.slane %v1177, 4
        %v1183 = vshrl.u32 %v961, 16
        %v1185 = vrot.slane %v1183, 7
        %v1186 = vshll.u32 %v961, 16
        %v1188 = vor.u32 %v1185, %v1186
        %v1189 = vsel %vm969, %v1181, %v1188
        %v1190 = vrot.slane %v1185, 4
        %v1192 = vshrl.u32 %v962, 16
        %v1194 = vrot.slane %v1192, 7
        %v1195 = vshll.u32 %v962, 16
        %v1197 = vor.u32 %v1194, %v1195
        %v1198 = vrot.slane %v1194, 4
        %v1200 = vshrl.u32 %v963, 16
        %v1202 = vrot.slane %v1200, 7
        %v1203 = vshll.u32 %v963, 16
        %v1205 = vor.u32 %v1202, %v1203
        %v1206 = vsel %vm969, %v1198, %v1205
        %v1207 = vrot.slane %v1202, 4
        %v1209 = vshrl.u32 %v964, 16
        %v1211 = vrot.slane %v1209, 7
        %v1212 = vshll.u32 %v964, 16
        %v1214 = vor.u32 %v1211, %v1212
        %v1215 = vrot.slane %v1211, 4
        %v1217 = vshrl.u32 %v965, 16
        %v1219 = vrot.slane %v1217, 7
        %v1220 = vshll.u32 %v965, 16
        %v1222 = vor.u32 %v1219, %v1220
        %v1223 = vsel %vm969, %v1215, %v1222
        %v1224 = vrot.slane %v1219, 4
        %v1226 = vshrl.u32 %v966, 16
        %v1228 = vrot.slane %v1226, 7
        %v1229 = vshll.u32 %v966, 16
        %v1231 = vor.u32 %v1228, %v1229
        %v1232 = vrot.slane %v1228, 4
        %v1234 = vshrl.u32 %v967, 16
        %v1236 = vrot.slane %v1234, 7
        %v1237 = vshll.u32 %v967, 16
        %v1239 = vor.u32 %v1236, %v1237
        %v1240 = vsel %vm969, %v1232, %v1239
        %v1241 = vrot.slane %v1236, 4
        %s1290 = scalar_lea.vmem [#allocation3], 12
        %vm1291 = vcmask 1043456
        %vm1292 = vmand %vm1291, %vm816
        %v1293 = vld [vmem:[%s1290] sm:$0xf]
        %v1294 = vsel %vm1292, %v976, %v1293
        %1295 = vst [vmem:[%s1290] sm:$0xf] %v1294
        %1296 = vst [vmem:[%s1290 + $0x4] sm:$0xf] %v985
        %v1297 = vld [vmem:[%s1290 + $0x8] sm:$0x1]
        %v1298 = vsel %vm761, %v986, %v1297
        %1299 = vst [vmem:[%s1290 + $0x8] sm:$0x1] %v1298
        %v1300 = vld [vmem:[%s1290 + $0xc] sm:$0xf]
        %v1301 = vsel %vm1292, %v993, %v1300
        %1302 = vst [vmem:[%s1290 + $0xc] sm:$0xf] %v1301
        %1303 = vst [vmem:[%s1290 + $0x10] sm:$0xf] %v1002
        %v1304 = vld [vmem:[%s1290 + $0x14] sm:$0x1]
        %v1305 = vsel %vm761, %v1003, %v1304
        %1306 = vst [vmem:[%s1290 + $0x14] sm:$0x1] %v1305
        %v1307 = vld [vmem:[%s1290 + $0x18] sm:$0xf]
        %v1308 = vsel %vm1292, %v1010, %v1307
        %1309 = vst [vmem:[%s1290 + $0x18] sm:$0xf] %v1308
        %1310 = vst [vmem:[%s1290 + $0x1c] sm:$0xf] %v1019
        %v1311 = vld [vmem:[%s1290 + $0x20] sm:$0x1]
        %v1312 = vsel %vm761, %v1020, %v1311
        %1313 = vst [vmem:[%s1290 + $0x20] sm:$0x1] %v1312
        %v1314 = vld [vmem:[%s1290 + $0x24] sm:$0xf]
        %v1315 = vsel %vm1292, %v1027, %v1314
        %1316 = vst [vmem:[%s1290 + $0x24] sm:$0xf] %v1315
        %1317 = vst [vmem:[%s1290 + $0x28] sm:$0xf] %v1036
        %v1318 = vld [vmem:[%s1290 + $0x2c] sm:$0x1]
        %v1319 = vsel %vm761, %v1037, %v1318
        %1320 = vst [vmem:[%s1290 + $0x2c] sm:$0x1] %v1319
        %v1321 = vld [vmem:[%s1290 + $0x30] sm:$0xf]
        %v1322 = vsel %vm1292, %v1044, %v1321
        %1323 = vst [vmem:[%s1290 + $0x30] sm:$0xf] %v1322
        %1324 = vst [vmem:[%s1290 + $0x34] sm:$0xf] %v1053
        %v1325 = vld [vmem:[%s1290 + $0x38] sm:$0x1]
        %v1326 = vsel %vm761, %v1054, %v1325
        %1327 = vst [vmem:[%s1290 + $0x38] sm:$0x1] %v1326
        %v1328 = vld [vmem:[%s1290 + $0x3c] sm:$0xf]
        %v1329 = vsel %vm1292, %v1061, %v1328
        %1330 = vst [vmem:[%s1290 + $0x3c] sm:$0xf] %v1329
        %1331 = vst [vmem:[%s1290 + $0x40] sm:$0xf] %v1070
        %v1332 = vld [vmem:[%s1290 + $0x44] sm:$0x1]
        %v1333 = vsel %vm761, %v1071, %v1332
        %1334 = vst [vmem:[%s1290 + $0x44] sm:$0x1] %v1333
        %v1335 = vld [vmem:[%s1290 + $0x48] sm:$0xf]
        %v1336 = vsel %vm1292, %v1078, %v1335
        %1337 = vst [vmem:[%s1290 + $0x48] sm:$0xf] %v1336
        %1338 = vst [vmem:[%s1290 + $0x4c] sm:$0xf] %v1087
        %v1339 = vld [vmem:[%s1290 + $0x50] sm:$0x1]
        %v1340 = vsel %vm761, %v1088, %v1339
        %1341 = vst [vmem:[%s1290 + $0x50] sm:$0x1] %v1340
        %v1342 = vld [vmem:[%s1290 + $0x54] sm:$0xf]
        %v1343 = vsel %vm1292, %v1095, %v1342
        %1344 = vst [vmem:[%s1290 + $0x54] sm:$0xf] %v1343
        %1345 = vst [vmem:[%s1290 + $0x58] sm:$0xf] %v1104
        %v1346 = vld [vmem:[%s1290 + $0x5c] sm:$0x1]
        %v1347 = vsel %vm761, %v1105, %v1346
        %1348 = vst [vmem:[%s1290 + $0x5c] sm:$0x1] %v1347
        %v1349 = vld [vmem:[%s1290 + $0x60] sm:$0xf]
        %v1350 = vsel %vm1292, %v1112, %v1349
        %1351 = vst [vmem:[%s1290 + $0x60] sm:$0xf] %v1350
        %1352 = vst [vmem:[%s1290 + $0x64] sm:$0xf] %v1121
        %v1353 = vld [vmem:[%s1290 + $0x68] sm:$0x1]
        %v1354 = vsel %vm761, %v1122, %v1353
        %1355 = vst [vmem:[%s1290 + $0x68] sm:$0x1] %v1354
        %v1356 = vld [vmem:[%s1290 + $0x6c] sm:$0xf]
        %v1357 = vsel %vm1292, %v1129, %v1356
        %1358 = vst [vmem:[%s1290 + $0x6c] sm:$0xf] %v1357
        %1359 = vst [vmem:[%s1290 + $0x70] sm:$0xf] %v1138
        %v1360 = vld [vmem:[%s1290 + $0x74] sm:$0x1]
        %v1361 = vsel %vm761, %v1139, %v1360
        %1362 = vst [vmem:[%s1290 + $0x74] sm:$0x1] %v1361
        %v1363 = vld [vmem:[%s1290 + $0x78] sm:$0xf]
        %v1364 = vsel %vm1292, %v1146, %v1363
        %1365 = vst [vmem:[%s1290 + $0x78] sm:$0xf] %v1364
        %1366 = vst [vmem:[%s1290 + $0x7c] sm:$0xf] %v1155
        %v1367 = vld [vmem:[%s1290 + $0x80] sm:$0x1]
        %v1368 = vsel %vm761, %v1156, %v1367
        %1369 = vst [vmem:[%s1290 + $0x80] sm:$0x1] %v1368
        %v1370 = vld [vmem:[%s1290 + $0x84] sm:$0xf]
        %v1371 = vsel %vm1292, %v1163, %v1370
        %1372 = vst [vmem:[%s1290 + $0x84] sm:$0xf] %v1371
        %1373 = vst [vmem:[%s1290 + $0x88] sm:$0xf] %v1172
        %v1374 = vld [vmem:[%s1290 + $0x8c] sm:$0x1]
        %v1375 = vsel %vm761, %v1173, %v1374
        %1376 = vst [vmem:[%s1290 + $0x8c] sm:$0x1] %v1375
        %v1377 = vld [vmem:[%s1290 + $0x90] sm:$0xf]
        %v1378 = vsel %vm1292, %v1180, %v1377
        %1379 = vst [vmem:[%s1290 + $0x90] sm:$0xf] %v1378
        %1380 = vst [vmem:[%s1290 + $0x94] sm:$0xf] %v1189
        %v1381 = vld [vmem:[%s1290 + $0x98] sm:$0x1]
        %v1382 = vsel %vm761, %v1190, %v1381
        %1383 = vst [vmem:[%s1290 + $0x98] sm:$0x1] %v1382
        %v1384 = vld [vmem:[%s1290 + $0x9c] sm:$0xf]
        %v1385 = vsel %vm1292, %v1197, %v1384
        %1386 = vst [vmem:[%s1290 + $0x9c] sm:$0xf] %v1385
        %1387 = vst [vmem:[%s1290 + $0xa0] sm:$0xf] %v1206
        %v1388 = vld [vmem:[%s1290 + $0xa4] sm:$0x1]
        %v1389 = vsel %vm761, %v1207, %v1388
        %1390 = vst [vmem:[%s1290 + $0xa4] sm:$0x1] %v1389
        %v1391 = vld [vmem:[%s1290 + $0xa8] sm:$0xf]
        %v1392 = vsel %vm1292, %v1214, %v1391
        %1393 = vst [vmem:[%s1290 + $0xa8] sm:$0xf] %v1392
        %1394 = vst [vmem:[%s1290 + $0xac] sm:$0xf] %v1223
        %v1395 = vld [vmem:[%s1290 + $0xb0] sm:$0x1]
        %v1396 = vsel %vm761, %v1224, %v1395
        %1397 = vst [vmem:[%s1290 + $0xb0] sm:$0x1] %v1396
        %v1398 = vld [vmem:[%s1290 + $0xb4] sm:$0xf]
        %v1399 = vsel %vm1292, %v1231, %v1398
        %1400 = vst [vmem:[%s1290 + $0xb4] sm:$0xf] %v1399
        %1401 = vst [vmem:[%s1290 + $0xb8] sm:$0xf] %v1240
        %v1402 = vld [vmem:[%s1290 + $0xbc] sm:$0x1]
        %v1403 = vsel %vm761, %v1241, %v1402
        %1404 = vst [vmem:[%s1290 + $0xbc] sm:$0x1] %v1403
        %v1405 = vld [vmem:[#allocation3] sm:$0xf]
        %v1406 = vld [vmem:[#allocation3 + $0x4] sm:$0xf]
        %v1407 = vld [vmem:[#allocation3 + $0xc] sm:$0xf]
        %v1408 = vld [vmem:[#allocation3 + $0x10] sm:$0xf]
        %v1409 = vld [vmem:[#allocation3 + $0x18] sm:$0xf]
        %v1410 = vld [vmem:[#allocation3 + $0x1c] sm:$0xf]
        %v1411 = vld [vmem:[#allocation3 + $0x24] sm:$0xf]
        %v1412 = vld [vmem:[#allocation3 + $0x28] sm:$0xf]
        %v1413 = vld [vmem:[#allocation3 + $0x30] sm:$0xf]
        %v1414 = vld [vmem:[#allocation3 + $0x34] sm:$0xf]
        %v1415 = vld [vmem:[#allocation3 + $0x3c] sm:$0xf]
        %v1416 = vld [vmem:[#allocation3 + $0x40] sm:$0xf]
        %v1417 = vld [vmem:[#allocation3 + $0x48] sm:$0xf]
        %v1418 = vld [vmem:[#allocation3 + $0x4c] sm:$0xf]
        %v1419 = vld [vmem:[#allocation3 + $0x54] sm:$0xf]
        %v1420 = vld [vmem:[#allocation3 + $0x58] sm:$0xf]
        %v1421 = vld [vmem:[#allocation3 + $0x60] sm:$0xf]
        %v1422 = vld [vmem:[#allocation3 + $0x64] sm:$0xf]
        %v1423 = vld [vmem:[#allocation3 + $0x6c] sm:$0xf]
        %v1424 = vld [vmem:[#allocation3 + $0x70] sm:$0xf]
        %v1425 = vld [vmem:[#allocation3 + $0x78] sm:$0xf]
        %v1426 = vld [vmem:[#allocation3 + $0x7c] sm:$0xf]
        %v1427 = vld [vmem:[#allocation3 + $0x84] sm:$0xf]
        %v1428 = vld [vmem:[#allocation3 + $0x88] sm:$0xf]
        %v1429 = vld [vmem:[#allocation3 + $0x90] sm:$0xf]
        %v1430 = vld [vmem:[#allocation3 + $0x94] sm:$0xf]
        %v1431 = vld [vmem:[#allocation3 + $0x9c] sm:$0xf]
        %v1432 = vld [vmem:[#allocation3 + $0xa0] sm:$0xf]
        %v1433 = vld [vmem:[#allocation3 + $0xa8] sm:$0xf]
        %v1434 = vld [vmem:[#allocation3 + $0xac] sm:$0xf]
        %v1435 = vld [vmem:[#allocation3 + $0xb4] sm:$0xf]
        %v1436 = vld [vmem:[#allocation3 + $0xb8] sm:$0xf]
        %v1437 = vld [vmem:[#allocation3 + $0xc0] sm:$0xf]
        %v1438 = vld [vmem:[#allocation3 + $0xc4] sm:$0xf]
        %v1439 = vld [vmem:[#allocation3 + $0xcc] sm:$0xf]
        %v1440 = vld [vmem:[#allocation3 + $0xd0] sm:$0xf]
        %v1473 = vunpack.c.l.b16 %v1405
        %v1474 = vunpack.c.l.b16 %v1406
        %v1475 = vunpack.c.l.b16 %v1407
        %v1476 = vunpack.c.l.b16 %v1408
        %v1477 = vunpack.c.l.b16 %v1409
        %v1478 = vunpack.c.l.b16 %v1410
        %v1479 = vunpack.c.l.b16 %v1411
        %v1480 = vunpack.c.l.b16 %v1412
        %v1481 = vunpack.c.l.b16 %v1413
        %v1482 = vunpack.c.l.b16 %v1414
        %v1483 = vunpack.c.l.b16 %v1415
        %v1484 = vunpack.c.l.b16 %v1416
        %v1485 = vunpack.c.l.b16 %v1417
        %v1486 = vunpack.c.l.b16 %v1418
        %v1487 = vunpack.c.l.b16 %v1419
        %v1488 = vunpack.c.l.b16 %v1420
        %v1489 = vunpack.c.l.b16 %v1421
        %v1490 = vunpack.c.l.b16 %v1422
        %v1491 = vunpack.c.l.b16 %v1423
        %v1492 = vunpack.c.l.b16 %v1424
        %v1493 = vunpack.c.l.b16 %v1425
        %v1494 = vunpack.c.l.b16 %v1426
        %v1495 = vunpack.c.l.b16 %v1427
        %v1496 = vunpack.c.l.b16 %v1428
        %v1497 = vunpack.c.l.b16 %v1429
        %v1498 = vunpack.c.l.b16 %v1430
        %v1499 = vunpack.c.l.b16 %v1431
        %v1500 = vunpack.c.l.b16 %v1432
        %v1501 = vunpack.c.l.b16 %v1433
        %v1502 = vunpack.c.l.b16 %v1434
        %v1503 = vunpack.c.l.b16 %v1435
        %v1504 = vunpack.c.l.b16 %v1436
        %v1505 = vpack.c.b16 %v1474, %v1473
        %v1506 = vpack.c.b16 %v1476, %v1475
        %v1507 = vpack.c.b16 %v1478, %v1477
        %v1508 = vpack.c.b16 %v1480, %v1479
        %v1509 = vpack.c.b16 %v1482, %v1481
        %v1510 = vpack.c.b16 %v1484, %v1483
        %v1511 = vpack.c.b16 %v1486, %v1485
        %v1512 = vpack.c.b16 %v1488, %v1487
        %v1513 = vpack.c.b16 %v1490, %v1489
        %v1514 = vpack.c.b16 %v1492, %v1491
        %v1515 = vpack.c.b16 %v1494, %v1493
        %v1516 = vpack.c.b16 %v1496, %v1495
        %v1517 = vpack.c.b16 %v1498, %v1497
        %v1518 = vpack.c.b16 %v1500, %v1499
        %v1519 = vpack.c.b16 %v1502, %v1501
        %v1520 = vpack.c.b16 %v1504, %v1503
        %1537 = vst [vmem:[#allocation4] sm:$0xff] %v1505
        %1538 = vst [vmem:[#allocation4 + $0x48] sm:$0xff] %v1506
        %1539 = vst [vmem:[#allocation4 + $0x90] sm:$0xff] %v1507
        %1540 = vst [vmem:[#allocation4 + $0xd8] sm:$0xff] %v1508
        %1541 = vst [vmem:[#allocation4 + $0x120] sm:$0xff] %v1509
        %1542 = vst [vmem:[#allocation4 + $0x168] sm:$0xff] %v1510
        %1543 = vst [vmem:[#allocation4 + $0x1b0] sm:$0xff] %v1511
        %1544 = vst [vmem:[#allocation4 + $0x1f8] sm:$0xff] %v1512
        %1545 = vst [vmem:[#allocation4 + $0x240] sm:$0xff] %v1513
        %1546 = vst [vmem:[#allocation4 + $0x288] sm:$0xff] %v1514
        %1547 = vst [vmem:[#allocation4 + $0x2d0] sm:$0xff] %v1515
        %1548 = vst [vmem:[#allocation4 + $0x318] sm:$0xff] %v1516
        %1549 = vst [vmem:[#allocation4 + $0x360] sm:$0xff] %v1517
        %1550 = vst [vmem:[#allocation4 + $0x3a8] sm:$0xff] %v1518
        %1551 = vst [vmem:[#allocation4 + $0x3f0] sm:$0xff] %v1519
        %1552 = vst [vmem:[#allocation4 + $0x438] sm:$0xff] %v1520
        %v1555 = vunpack.c.l.b16 %v1437
        %v1556 = vunpack.c.l.b16 %v1438
        %v1557 = vpack.c.b16 %v1556, %v1555
        %1559 = vst [vmem:[#allocation4 + $0x18] sm:$0xff] %v1506
        %1560 = vst [vmem:[#allocation4 + $0x60] sm:$0xff] %v1507
        %1561 = vst [vmem:[#allocation4 + $0xa8] sm:$0xff] %v1508
        %1562 = vst [vmem:[#allocation4 + $0xf0] sm:$0xff] %v1509
        %1563 = vst [vmem:[#allocation4 + $0x138] sm:$0xff] %v1510
        %1564 = vst [vmem:[#allocation4 + $0x180] sm:$0xff] %v1511
        %1565 = vst [vmem:[#allocation4 + $0x1c8] sm:$0xff] %v1512
        %1566 = vst [vmem:[#allocation4 + $0x210] sm:$0xff] %v1513
        %1567 = vst [vmem:[#allocation4 + $0x258] sm:$0xff] %v1514
        %1568 = vst [vmem:[#allocation4 + $0x2a0] sm:$0xff] %v1515
        %1569 = vst [vmem:[#allocation4 + $0x2e8] sm:$0xff] %v1516
        %1570 = vst [vmem:[#allocation4 + $0x330] sm:$0xff] %v1517
        %1571 = vst [vmem:[#allocation4 + $0x378] sm:$0xff] %v1518
        %1572 = vst [vmem:[#allocation4 + $0x3c0] sm:$0xff] %v1519
        %1573 = vst [vmem:[#allocation4 + $0x408] sm:$0xff] %v1520
        %1574 = vst [vmem:[#allocation4 + $0x450] sm:$0xff] %v1557
        %v1577 = vunpack.c.l.b16 %v1439
        %v1578 = vunpack.c.l.b16 %v1440
        %v1579 = vpack.c.b16 %v1578, %v1577
        %1581 = vst [vmem:[#allocation4 + $0x30] sm:$0xff] %v1507
        %1582 = vst [vmem:[#allocation4 + $0x78] sm:$0xff] %v1508
        %1583 = vst [vmem:[#allocation4 + $0xc0] sm:$0xff] %v1509
        %1584 = vst [vmem:[#allocation4 + $0x108] sm:$0xff] %v1510
        %1585 = vst [vmem:[#allocation4 + $0x150] sm:$0xff] %v1511
        %1586 = vst [vmem:[#allocation4 + $0x198] sm:$0xff] %v1512
        %1587 = vst [vmem:[#allocation4 + $0x1e0] sm:$0xff] %v1513
        %1588 = vst [vmem:[#allocation4 + $0x228] sm:$0xff] %v1514
        %1589 = vst [vmem:[#allocation4 + $0x270] sm:$0xff] %v1515
        %1590 = vst [vmem:[#allocation4 + $0x2b8] sm:$0xff] %v1516
        %1591 = vst [vmem:[#allocation4 + $0x300] sm:$0xff] %v1517
        %1592 = vst [vmem:[#allocation4 + $0x348] sm:$0xff] %v1518
        %1593 = vst [vmem:[#allocation4 + $0x390] sm:$0xff] %v1519
        %1594 = vst [vmem:[#allocation4 + $0x3d8] sm:$0xff] %v1520
        %1595 = vst [vmem:[#allocation4 + $0x420] sm:$0xff] %v1557
        %1596 = vst [vmem:[#allocation4 + $0x468] sm:$0xff] %v1579
        %v1597 = vld [vmem:[#allocation3] sm:$0xf]
        %v1598 = vld [vmem:[#allocation3 + $0x4] sm:$0xf]
        %v1599 = vld [vmem:[#allocation3 + $0x8] sm:$0x1]
        %v1600 = vld [vmem:[#allocation3 + $0xc] sm:$0xf]
        %v1601 = vld [vmem:[#allocation3 + $0x10] sm:$0xf]
        %v1602 = vld [vmem:[#allocation3 + $0x14] sm:$0x1]
        %v1603 = vld [vmem:[#allocation3 + $0x18] sm:$0xf]
        %v1604 = vld [vmem:[#allocation3 + $0x1c] sm:$0xf]
        %v1605 = vld [vmem:[#allocation3 + $0x20] sm:$0x1]
        %v1606 = vld [vmem:[#allocation3 + $0x24] sm:$0xf]
        %v1607 = vld [vmem:[#allocation3 + $0x28] sm:$0xf]
        %v1608 = vld [vmem:[#allocation3 + $0x2c] sm:$0x1]
        %v1609 = vld [vmem:[#allocation3 + $0x30] sm:$0xf]
        %v1610 = vld [vmem:[#allocation3 + $0x34] sm:$0xf]
        %v1611 = vld [vmem:[#allocation3 + $0x38] sm:$0x1]
        %v1612 = vld [vmem:[#allocation3 + $0x3c] sm:$0xf]
        %v1613 = vld [vmem:[#allocation3 + $0x40] sm:$0xf]
        %v1614 = vld [vmem:[#allocation3 + $0x44] sm:$0x1]
        %v1615 = vld [vmem:[#allocation3 + $0x48] sm:$0xf]
        %v1616 = vld [vmem:[#allocation3 + $0x4c] sm:$0xf]
        %v1617 = vld [vmem:[#allocation3 + $0x50] sm:$0x1]
        %v1618 = vld [vmem:[#allocation3 + $0x54] sm:$0xf]
        %v1619 = vld [vmem:[#allocation3 + $0x58] sm:$0xf]
        %v1620 = vld [vmem:[#allocation3 + $0x5c] sm:$0x1]
        %v1621 = vld [vmem:[#allocation3 + $0x60] sm:$0xf]
        %v1622 = vld [vmem:[#allocation3 + $0x64] sm:$0xf]
        %v1623 = vld [vmem:[#allocation3 + $0x68] sm:$0x1]
        %v1624 = vld [vmem:[#allocation3 + $0x6c] sm:$0xf]
        %v1625 = vld [vmem:[#allocation3 + $0x70] sm:$0xf]
        %v1626 = vld [vmem:[#allocation3 + $0x74] sm:$0x1]
        %v1627 = vld [vmem:[#allocation3 + $0x78] sm:$0xf]
        %v1628 = vld [vmem:[#allocation3 + $0x7c] sm:$0xf]
        %v1629 = vld [vmem:[#allocation3 + $0x80] sm:$0x1]
        %v1630 = vld [vmem:[#allocation3 + $0x84] sm:$0xf]
        %v1631 = vld [vmem:[#allocation3 + $0x88] sm:$0xf]
        %v1632 = vld [vmem:[#allocation3 + $0x8c] sm:$0x1]
        %v1633 = vld [vmem:[#allocation3 + $0x90] sm:$0xf]
        %v1634 = vld [vmem:[#allocation3 + $0x94] sm:$0xf]
        %v1635 = vld [vmem:[#allocation3 + $0x98] sm:$0x1]
        %v1636 = vld [vmem:[#allocation3 + $0x9c] sm:$0xf]
        %v1637 = vld [vmem:[#allocation3 + $0xa0] sm:$0xf]
        %v1638 = vld [vmem:[#allocation3 + $0xa4] sm:$0x1]
        %v1639 = vld [vmem:[#allocation3 + $0xa8] sm:$0xf]
        %v1640 = vld [vmem:[#allocation3 + $0xac] sm:$0xf]
        %v1641 = vld [vmem:[#allocation3 + $0xb0] sm:$0x1]
        %v1642 = vld [vmem:[#allocation3 + $0xb4] sm:$0xf]
        %v1643 = vld [vmem:[#allocation3 + $0xb8] sm:$0xf]
        %v1644 = vld [vmem:[#allocation3 + $0xbc] sm:$0x1]
        %v1645 = vld [vmem:[#allocation3 + $0xc0] sm:$0xf]
        %v1646 = vld [vmem:[#allocation3 + $0xc4] sm:$0xf]
        %v1647 = vld [vmem:[#allocation3 + $0xc8] sm:$0x1]
        %v1648 = vld [vmem:[#allocation3 + $0xcc] sm:$0xf]
        %v1649 = vld [vmem:[#allocation3 + $0xd0] sm:$0xf]
        %v1650 = vld [vmem:[#allocation3 + $0xd4] sm:$0x1]
        %vm1651 = vsmask.f32 3328
        %vm1652 = vsmask.f32 7440
        %vm1653 = vmor %vm1651, %vm1652
        %v1655 = vshrl.u32 %v1597, 16
        %v1657 = vrot.slane %v1655, 4
        %v1658 = vshll.u32 %v1597, 16
        %v1660 = vrot.slane %v1658, 5
        %v1661 = vor.u32 %v1657, %v1660
        %v1662 = vrot.slane %v1661, 4
        %v1664 = vshll.u32 %v1598, 16
        %v1666 = vrot.slane %v1664, 5
        %v1667 = vsel %vm1653, %v1662, %v1666
        %v1668 = vshrl.u32 %v1598, 16
        %v1670 = vrot.slane %v1668, 4
        %v1671 = vor.u32 %v1670, %v1666
        %v1672 = vrot.slane %v1671, 4
        %v1674 = vshll.u32 %v1599, 16
        %v1676 = vrot.slane %v1674, 5
        %v1677 = vsel %vm1653, %v1672, %v1676
        %v1679 = vshrl.u32 %v1600, 16
        %v1681 = vrot.slane %v1679, 4
        %v1682 = vshll.u32 %v1600, 16
        %v1684 = vrot.slane %v1682, 5
        %v1685 = vor.u32 %v1681, %v1684
        %v1686 = vrot.slane %v1685, 4
        %v1688 = vshll.u32 %v1601, 16
        %v1690 = vrot.slane %v1688, 5
        %v1691 = vsel %vm1653, %v1686, %v1690
        %v1692 = vshrl.u32 %v1601, 16
        %v1694 = vrot.slane %v1692, 4
        %v1695 = vor.u32 %v1694, %v1690
        %v1696 = vrot.slane %v1695, 4
        %v1698 = vshll.u32 %v1602, 16
        %v1700 = vrot.slane %v1698, 5
        %v1701 = vsel %vm1653, %v1696, %v1700
        %v1703 = vshrl.u32 %v1603, 16
        %v1705 = vrot.slane %v1703, 4
        %v1706 = vshll.u32 %v1603, 16
        %v1708 = vrot.slane %v1706, 5
        %v1709 = vor.u32 %v1705, %v1708
        %v1710 = vrot.slane %v1709, 4
        %v1712 = vshll.u32 %v1604, 16
        %v1714 = vrot.slane %v1712, 5
        %v1715 = vsel %vm1653, %v1710, %v1714
        %v1716 = vshrl.u32 %v1604, 16
        %v1718 = vrot.slane %v1716, 4
        %v1719 = vor.u32 %v1718, %v1714
        %v1720 = vrot.slane %v1719, 4
        %v1722 = vshll.u32 %v1605, 16
        %v1724 = vrot.slane %v1722, 5
        %v1725 = vsel %vm1653, %v1720, %v1724
        %v1727 = vshrl.u32 %v1606, 16
        %v1729 = vrot.slane %v1727, 4
        %v1730 = vshll.u32 %v1606, 16
        %v1732 = vrot.slane %v1730, 5
        %v1733 = vor.u32 %v1729, %v1732
        %v1734 = vrot.slane %v1733, 4
        %v1736 = vshll.u32 %v1607, 16
        %v1738 = vrot.slane %v1736, 5
        %v1739 = vsel %vm1653, %v1734, %v1738
        %v1740 = vshrl.u32 %v1607, 16
        %v1742 = vrot.slane %v1740, 4
        %v1743 = vor.u32 %v1742, %v1738
        %v1744 = vrot.slane %v1743, 4
        %v1746 = vshll.u32 %v1608, 16
        %v1748 = vrot.slane %v1746, 5
        %v1749 = vsel %vm1653, %v1744, %v1748
        %v1751 = vshrl.u32 %v1609, 16
        %v1753 = vrot.slane %v1751, 4
        %v1754 = vshll.u32 %v1609, 16
        %v1756 = vrot.slane %v1754, 5
        %v1757 = vor.u32 %v1753, %v1756
        %v1758 = vrot.slane %v1757, 4
        %v1760 = vshll.u32 %v1610, 16
        %v1762 = vrot.slane %v1760, 5
        %v1763 = vsel %vm1653, %v1758, %v1762
        %v1764 = vshrl.u32 %v1610, 16
        %v1766 = vrot.slane %v1764, 4
        %v1767 = vor.u32 %v1766, %v1762
        %v1768 = vrot.slane %v1767, 4
        %v1770 = vshll.u32 %v1611, 16
        %v1772 = vrot.slane %v1770, 5
        %v1773 = vsel %vm1653, %v1768, %v1772
        %v1775 = vshrl.u32 %v1612, 16
        %v1777 = vrot.slane %v1775, 4
        %v1778 = vshll.u32 %v1612, 16
        %v1780 = vrot.slane %v1778, 5
        %v1781 = vor.u32 %v1777, %v1780
        %v1782 = vrot.slane %v1781, 4
        %v1784 = vshll.u32 %v1613, 16
        %v1786 = vrot.slane %v1784, 5
        %v1787 = vsel %vm1653, %v1782, %v1786
        %v1788 = vshrl.u32 %v1613, 16
        %v1790 = vrot.slane %v1788, 4
        %v1791 = vor.u32 %v1790, %v1786
        %v1792 = vrot.slane %v1791, 4
        %v1794 = vshll.u32 %v1614, 16
        %v1796 = vrot.slane %v1794, 5
        %v1797 = vsel %vm1653, %v1792, %v1796
        %v1799 = vshrl.u32 %v1615, 16
        %v1801 = vrot.slane %v1799, 4
        %v1802 = vshll.u32 %v1615, 16
        %v1804 = vrot.slane %v1802, 5
        %v1805 = vor.u32 %v1801, %v1804
        %v1806 = vrot.slane %v1805, 4
        %v1808 = vshll.u32 %v1616, 16
        %v1810 = vrot.slane %v1808, 5
        %v1811 = vsel %vm1653, %v1806, %v1810
        %v1812 = vshrl.u32 %v1616, 16
        %v1814 = vrot.slane %v1812, 4
        %v1815 = vor.u32 %v1814, %v1810
        %v1816 = vrot.slane %v1815, 4
        %v1818 = vshll.u32 %v1617, 16
        %v1820 = vrot.slane %v1818, 5
        %v1821 = vsel %vm1653, %v1816, %v1820
        %v1823 = vshrl.u32 %v1618, 16
        %v1825 = vrot.slane %v1823, 4
        %v1826 = vshll.u32 %v1618, 16
        %v1828 = vrot.slane %v1826, 5
        %v1829 = vor.u32 %v1825, %v1828
        %v1830 = vrot.slane %v1829, 4
        %v1832 = vshll.u32 %v1619, 16
        %v1834 = vrot.slane %v1832, 5
        %v1835 = vsel %vm1653, %v1830, %v1834
        %v1836 = vshrl.u32 %v1619, 16
        %v1838 = vrot.slane %v1836, 4
        %v1839 = vor.u32 %v1838, %v1834
        %v1840 = vrot.slane %v1839, 4
        %v1842 = vshll.u32 %v1620, 16
        %v1844 = vrot.slane %v1842, 5
        %v1845 = vsel %vm1653, %v1840, %v1844
        %v1847 = vshrl.u32 %v1621, 16
        %v1849 = vrot.slane %v1847, 4
        %v1850 = vshll.u32 %v1621, 16
        %v1852 = vrot.slane %v1850, 5
        %v1853 = vor.u32 %v1849, %v1852
        %v1854 = vrot.slane %v1853, 4
        %v1856 = vshll.u32 %v1622, 16
        %v1858 = vrot.slane %v1856, 5
        %v1859 = vsel %vm1653, %v1854, %v1858
        %v1860 = vshrl.u32 %v1622, 16
        %v1862 = vrot.slane %v1860, 4
        %v1863 = vor.u32 %v1862, %v1858
        %v1864 = vrot.slane %v1863, 4
        %v1866 = vshll.u32 %v1623, 16
        %v1868 = vrot.slane %v1866, 5
        %v1869 = vsel %vm1653, %v1864, %v1868
        %v1871 = vshrl.u32 %v1624, 16
        %v1873 = vrot.slane %v1871, 4
        %v1874 = vshll.u32 %v1624, 16
        %v1876 = vrot.slane %v1874, 5
        %v1877 = vor.u32 %v1873, %v1876
        %v1878 = vrot.slane %v1877, 4
        %v1880 = vshll.u32 %v1625, 16
        %v1882 = vrot.slane %v1880, 5
        %v1883 = vsel %vm1653, %v1878, %v1882
        %v1884 = vshrl.u32 %v1625, 16
        %v1886 = vrot.slane %v1884, 4
        %v1887 = vor.u32 %v1886, %v1882
        %v1888 = vrot.slane %v1887, 4
        %v1890 = vshll.u32 %v1626, 16
        %v1892 = vrot.slane %v1890, 5
        %v1893 = vsel %vm1653, %v1888, %v1892
        %v1895 = vshrl.u32 %v1627, 16
        %v1897 = vrot.slane %v1895, 4
        %v1898 = vshll.u32 %v1627, 16
        %v1900 = vrot.slane %v1898, 5
        %v1901 = vor.u32 %v1897, %v1900
        %v1902 = vrot.slane %v1901, 4
        %v1904 = vshll.u32 %v1628, 16
        %v1906 = vrot.slane %v1904, 5
        %v1907 = vsel %vm1653, %v1902, %v1906
        %v1908 = vshrl.u32 %v1628, 16
        %v1910 = vrot.slane %v1908, 4
        %v1911 = vor.u32 %v1910, %v1906
        %v1912 = vrot.slane %v1911, 4
        %v1914 = vshll.u32 %v1629, 16
        %v1916 = vrot.slane %v1914, 5
        %v1917 = vsel %vm1653, %v1912, %v1916
        %v1919 = vshrl.u32 %v1630, 16
        %v1921 = vrot.slane %v1919, 4
        %v1922 = vshll.u32 %v1630, 16
        %v1924 = vrot.slane %v1922, 5
        %v1925 = vor.u32 %v1921, %v1924
        %v1926 = vrot.slane %v1925, 4
        %v1928 = vshll.u32 %v1631, 16
        %v1930 = vrot.slane %v1928, 5
        %v1931 = vsel %vm1653, %v1926, %v1930
        %v1932 = vshrl.u32 %v1631, 16
        %v1934 = vrot.slane %v1932, 4
        %v1935 = vor.u32 %v1934, %v1930
        %v1936 = vrot.slane %v1935, 4
        %v1938 = vshll.u32 %v1632, 16
        %v1940 = vrot.slane %v1938, 5
        %v1941 = vsel %vm1653, %v1936, %v1940
        %v1943 = vshrl.u32 %v1633, 16
        %v1945 = vrot.slane %v1943, 4
        %v1946 = vshll.u32 %v1633, 16
        %v1948 = vrot.slane %v1946, 5
        %v1949 = vor.u32 %v1945, %v1948
        %v1950 = vrot.slane %v1949, 4
        %v1952 = vshll.u32 %v1634, 16
        %v1954 = vrot.slane %v1952, 5
        %v1955 = vsel %vm1653, %v1950, %v1954
        %v1956 = vshrl.u32 %v1634, 16
        %v1958 = vrot.slane %v1956, 4
        %v1959 = vor.u32 %v1958, %v1954
        %v1960 = vrot.slane %v1959, 4
        %v1962 = vshll.u32 %v1635, 16
        %v1964 = vrot.slane %v1962, 5
        %v1965 = vsel %vm1653, %v1960, %v1964
        %v1967 = vshrl.u32 %v1636, 16
        %v1969 = vrot.slane %v1967, 4
        %v1970 = vshll.u32 %v1636, 16
        %v1972 = vrot.slane %v1970, 5
        %v1973 = vor.u32 %v1969, %v1972
        %v1974 = vrot.slane %v1973, 4
        %v1976 = vshll.u32 %v1637, 16
        %v1978 = vrot.slane %v1976, 5
        %v1979 = vsel %vm1653, %v1974, %v1978
        %v1980 = vshrl.u32 %v1637, 16
        %v1982 = vrot.slane %v1980, 4
        %v1983 = vor.u32 %v1982, %v1978
        %v1984 = vrot.slane %v1983, 4
        %v1986 = vshll.u32 %v1638, 16
        %v1988 = vrot.slane %v1986, 5
        %v1989 = vsel %vm1653, %v1984, %v1988
        %v1991 = vshrl.u32 %v1639, 16
        %v1993 = vrot.slane %v1991, 4
        %v1994 = vshll.u32 %v1639, 16
        %v1996 = vrot.slane %v1994, 5
        %v1997 = vor.u32 %v1993, %v1996
        %v1998 = vrot.slane %v1997, 4
        %v2000 = vshll.u32 %v1640, 16
        %v2002 = vrot.slane %v2000, 5
        %v2003 = vsel %vm1653, %v1998, %v2002
        %v2004 = vshrl.u32 %v1640, 16
        %v2006 = vrot.slane %v2004, 4
        %v2007 = vor.u32 %v2006, %v2002
        %v2008 = vrot.slane %v2007, 4
        %v2010 = vshll.u32 %v1641, 16
        %v2012 = vrot.slane %v2010, 5
        %v2013 = vsel %vm1653, %v2008, %v2012
        %v2015 = vshrl.u32 %v1642, 16
        %v2017 = vrot.slane %v2015, 4
        %v2018 = vshll.u32 %v1642, 16
        %v2020 = vrot.slane %v2018, 5
        %v2021 = vor.u32 %v2017, %v2020
        %v2022 = vrot.slane %v2021, 4
        %v2024 = vshll.u32 %v1643, 16
        %v2026 = vrot.slane %v2024, 5
        %v2027 = vsel %vm1653, %v2022, %v2026
        %v2028 = vshrl.u32 %v1643, 16
        %v2030 = vrot.slane %v2028, 4
        %v2031 = vor.u32 %v2030, %v2026
        %v2032 = vrot.slane %v2031, 4
        %v2034 = vshll.u32 %v1644, 16
        %v2036 = vrot.slane %v2034, 5
        %v2037 = vsel %vm1653, %v2032, %v2036
        %v2038 = vunpack.c.l.b16 %v1667
        %v2039 = vunpack.c.l.b16 %v1677
        %v2040 = vunpack.c.l.b16 %v1691
        %v2041 = vunpack.c.l.b16 %v1701
        %v2042 = vunpack.c.l.b16 %v1715
        %v2043 = vunpack.c.l.b16 %v1725
        %v2044 = vunpack.c.l.b16 %v1739
        %v2045 = vunpack.c.l.b16 %v1749
        %v2046 = vunpack.c.l.b16 %v1763
        %v2047 = vunpack.c.l.b16 %v1773
        %v2048 = vunpack.c.l.b16 %v1787
        %v2049 = vunpack.c.l.b16 %v1797
        %v2050 = vunpack.c.l.b16 %v1811
        %v2051 = vunpack.c.l.b16 %v1821
        %v2052 = vunpack.c.l.b16 %v1835
        %v2053 = vunpack.c.l.b16 %v1845
        %v2054 = vunpack.c.l.b16 %v1859
        %v2055 = vunpack.c.l.b16 %v1869
        %v2056 = vunpack.c.l.b16 %v1883
        %v2057 = vunpack.c.l.b16 %v1893
        %v2058 = vunpack.c.l.b16 %v1907
        %v2059 = vunpack.c.l.b16 %v1917
        %v2060 = vunpack.c.l.b16 %v1931
        %v2061 = vunpack.c.l.b16 %v1941
        %v2062 = vunpack.c.l.b16 %v1955
        %v2063 = vunpack.c.l.b16 %v1965
        %v2064 = vunpack.c.l.b16 %v1979
        %v2065 = vunpack.c.l.b16 %v1989
        %v2066 = vunpack.c.l.b16 %v2003
        %v2067 = vunpack.c.l.b16 %v2013
        %v2068 = vunpack.c.l.b16 %v2027
        %v2069 = vunpack.c.l.b16 %v2037
        %v2070 = vpack.c.b16 %v2039, %v2038
        %v2071 = vpack.c.b16 %v2041, %v2040
        %v2072 = vpack.c.b16 %v2043, %v2042
        %v2073 = vpack.c.b16 %v2045, %v2044
        %v2074 = vpack.c.b16 %v2047, %v2046
        %v2075 = vpack.c.b16 %v2049, %v2048
        %v2076 = vpack.c.b16 %v2051, %v2050
        %v2077 = vpack.c.b16 %v2053, %v2052
        %v2078 = vpack.c.b16 %v2055, %v2054
        %v2079 = vpack.c.b16 %v2057, %v2056
        %v2080 = vpack.c.b16 %v2059, %v2058
        %v2081 = vpack.c.b16 %v2061, %v2060
        %v2082 = vpack.c.b16 %v2063, %v2062
        %v2083 = vpack.c.b16 %v2065, %v2064
        %v2084 = vpack.c.b16 %v2067, %v2066
        %v2085 = vpack.c.b16 %v2069, %v2068
        %2102 = vst [vmem:[#allocation4 + $0x8] sm:$0xff] %v2070
        %2103 = vst [vmem:[#allocation4 + $0x50] sm:$0xff] %v2071
        %2104 = vst [vmem:[#allocation4 + $0x98] sm:$0xff] %v2072
        %2105 = vst [vmem:[#allocation4 + $0xe0] sm:$0xff] %v2073
        %2106 = vst [vmem:[#allocation4 + $0x128] sm:$0xff] %v2074
        %2107 = vst [vmem:[#allocation4 + $0x170] sm:$0xff] %v2075
        %2108 = vst [vmem:[#allocation4 + $0x1b8] sm:$0xff] %v2076
        %2109 = vst [vmem:[#allocation4 + $0x200] sm:$0xff] %v2077
        %2110 = vst [vmem:[#allocation4 + $0x248] sm:$0xff] %v2078
        %2111 = vst [vmem:[#allocation4 + $0x290] sm:$0xff] %v2079
        %2112 = vst [vmem:[#allocation4 + $0x2d8] sm:$0xff] %v2080
        %2113 = vst [vmem:[#allocation4 + $0x320] sm:$0xff] %v2081
        %2114 = vst [vmem:[#allocation4 + $0x368] sm:$0xff] %v2082
        %2115 = vst [vmem:[#allocation4 + $0x3b0] sm:$0xff] %v2083
        %2116 = vst [vmem:[#allocation4 + $0x3f8] sm:$0xff] %v2084
        %2117 = vst [vmem:[#allocation4 + $0x440] sm:$0xff] %v2085
        %v2119 = vshrl.u32 %v1645, 16
        %v2121 = vrot.slane %v2119, 4
        %v2122 = vshll.u32 %v1645, 16
        %v2124 = vrot.slane %v2122, 5
        %v2125 = vor.u32 %v2121, %v2124
        %v2126 = vrot.slane %v2125, 4
        %v2128 = vshll.u32 %v1646, 16
        %v2130 = vrot.slane %v2128, 5
        %v2131 = vsel %vm1653, %v2126, %v2130
        %v2132 = vshrl.u32 %v1646, 16
        %v2134 = vrot.slane %v2132, 4
        %v2135 = vor.u32 %v2134, %v2130
        %v2136 = vrot.slane %v2135, 4
        %v2138 = vshll.u32 %v1647, 16
        %v2140 = vrot.slane %v2138, 5
        %v2141 = vsel %vm1653, %v2136, %v2140
        %v2142 = vunpack.c.l.b16 %v2131
        %v2143 = vunpack.c.l.b16 %v2141
        %v2144 = vpack.c.b16 %v2143, %v2142
        %2146 = vst [vmem:[#allocation4 + $0x20] sm:$0xff] %v2071
        %2147 = vst [vmem:[#allocation4 + $0x68] sm:$0xff] %v2072
        %2148 = vst [vmem:[#allocation4 + $0xb0] sm:$0xff] %v2073
        %2149 = vst [vmem:[#allocation4 + $0xf8] sm:$0xff] %v2074
        %2150 = vst [vmem:[#allocation4 + $0x140] sm:$0xff] %v2075
        %2151 = vst [vmem:[#allocation4 + $0x188] sm:$0xff] %v2076
        %2152 = vst [vmem:[#allocation4 + $0x1d0] sm:$0xff] %v2077
        %2153 = vst [vmem:[#allocation4 + $0x218] sm:$0xff] %v2078
        %2154 = vst [vmem:[#allocation4 + $0x260] sm:$0xff] %v2079
        %2155 = vst [vmem:[#allocation4 + $0x2a8] sm:$0xff] %v2080
        %2156 = vst [vmem:[#allocation4 + $0x2f0] sm:$0xff] %v2081
        %2157 = vst [vmem:[#allocation4 + $0x338] sm:$0xff] %v2082
        %2158 = vst [vmem:[#allocation4 + $0x380] sm:$0xff] %v2083
        %2159 = vst [vmem:[#allocation4 + $0x3c8] sm:$0xff] %v2084
        %2160 = vst [vmem:[#allocation4 + $0x410] sm:$0xff] %v2085
        %2161 = vst [vmem:[#allocation4 + $0x458] sm:$0xff] %v2144
        %v2163 = vshrl.u32 %v1648, 16
        %v2165 = vrot.slane %v2163, 4
        %v2166 = vshll.u32 %v1648, 16
        %v2168 = vrot.slane %v2166, 5
        %v2169 = vor.u32 %v2165, %v2168
        %v2170 = vrot.slane %v2169, 4
        %v2172 = vshll.u32 %v1649, 16
        %v2174 = vrot.slane %v2172, 5
        %v2175 = vsel %vm1653, %v2170, %v2174
        %v2176 = vshrl.u32 %v1649, 16
        %v2178 = vrot.slane %v2176, 4
        %v2179 = vor.u32 %v2178, %v2174
        %v2180 = vrot.slane %v2179, 4
        %v2182 = vshll.u32 %v1650, 16
        %v2184 = vrot.slane %v2182, 5
        %v2185 = vsel %vm1653, %v2180, %v2184
        %v2186 = vunpack.c.l.b16 %v2175
        %v2187 = vunpack.c.l.b16 %v2185
        %v2188 = vpack.c.b16 %v2187, %v2186
        %2190 = vst [vmem:[#allocation4 + $0x38] sm:$0xff] %v2072
        %2191 = vst [vmem:[#allocation4 + $0x80] sm:$0xff] %v2073
        %2192 = vst [vmem:[#allocation4 + $0xc8] sm:$0xff] %v2074
        %2193 = vst [vmem:[#allocation4 + $0x110] sm:$0xff] %v2075
        %2194 = vst [vmem:[#allocation4 + $0x158] sm:$0xff] %v2076
        %2195 = vst [vmem:[#allocation4 + $0x1a0] sm:$0xff] %v2077
        %2196 = vst [vmem:[#allocation4 + $0x1e8] sm:$0xff] %v2078
        %2197 = vst [vmem:[#allocation4 + $0x230] sm:$0xff] %v2079
        %2198 = vst [vmem:[#allocation4 + $0x278] sm:$0xff] %v2080
        %2199 = vst [vmem:[#allocation4 + $0x2c0] sm:$0xff] %v2081
        %2200 = vst [vmem:[#allocation4 + $0x308] sm:$0xff] %v2082
        %2201 = vst [vmem:[#allocation4 + $0x350] sm:$0xff] %v2083
        %2202 = vst [vmem:[#allocation4 + $0x398] sm:$0xff] %v2084
        %2203 = vst [vmem:[#allocation4 + $0x3e0] sm:$0xff] %v2085
        %2204 = vst [vmem:[#allocation4 + $0x428] sm:$0xff] %v2144
        %2205 = vst [vmem:[#allocation4 + $0x470] sm:$0xff] %v2188
        %v2206 = vld [vmem:[#allocation3] sm:$0xe]
        %v2207 = vld [vmem:[#allocation3 + $0x4] sm:$0xf]
        %v2208 = vld [vmem:[#allocation3 + $0x8] sm:$0x1]
        %v2209 = vld [vmem:[#allocation3 + $0xc] sm:$0xe]
        %v2210 = vld [vmem:[#allocation3 + $0x10] sm:$0xf]
        %v2211 = vld [vmem:[#allocation3 + $0x14] sm:$0x1]
        %v2212 = vld [vmem:[#allocation3 + $0x18] sm:$0xe]
        %v2213 = vld [vmem:[#allocation3 + $0x1c] sm:$0xf]
        %v2214 = vld [vmem:[#allocation3 + $0x20] sm:$0x1]
        %v2215 = vld [vmem:[#allocation3 + $0x24] sm:$0xe]
        %v2216 = vld [vmem:[#allocation3 + $0x28] sm:$0xf]
        %v2217 = vld [vmem:[#allocation3 + $0x2c] sm:$0x1]
        %v2218 = vld [vmem:[#allocation3 + $0x30] sm:$0xe]
        %v2219 = vld [vmem:[#allocation3 + $0x34] sm:$0xf]
        %v2220 = vld [vmem:[#allocation3 + $0x38] sm:$0x1]
        %v2221 = vld [vmem:[#allocation3 + $0x3c] sm:$0xe]
        %v2222 = vld [vmem:[#allocation3 + $0x40] sm:$0xf]
        %v2223 = vld [vmem:[#allocation3 + $0x44] sm:$0x1]
        %v2224 = vld [vmem:[#allocation3 + $0x48] sm:$0xe]
        %v2225 = vld [vmem:[#allocation3 + $0x4c] sm:$0xf]
        %v2226 = vld [vmem:[#allocation3 + $0x50] sm:$0x1]
        %v2227 = vld [vmem:[#allocation3 + $0x54] sm:$0xe]
        %v2228 = vld [vmem:[#allocation3 + $0x58] sm:$0xf]
        %v2229 = vld [vmem:[#allocation3 + $0x5c] sm:$0x1]
        %v2230 = vld [vmem:[#allocation3 + $0x60] sm:$0xe]
        %v2231 = vld [vmem:[#allocation3 + $0x64] sm:$0xf]
        %v2232 = vld [vmem:[#allocation3 + $0x68] sm:$0x1]
        %v2233 = vld [vmem:[#allocation3 + $0x6c] sm:$0xe]
        %v2234 = vld [vmem:[#allocation3 + $0x70] sm:$0xf]
        %v2235 = vld [vmem:[#allocation3 + $0x74] sm:$0x1]
        %v2236 = vld [vmem:[#allocation3 + $0x78] sm:$0xe]
        %v2237 = vld [vmem:[#allocation3 + $0x7c] sm:$0xf]
        %v2238 = vld [vmem:[#allocation3 + $0x80] sm:$0x1]
        %v2239 = vld [vmem:[#allocation3 + $0x84] sm:$0xe]
        %v2240 = vld [vmem:[#allocation3 + $0x88] sm:$0xf]
        %v2241 = vld [vmem:[#allocation3 + $0x8c] sm:$0x1]
        %v2242 = vld [vmem:[#allocation3 + $0x90] sm:$0xe]
        %v2243 = vld [vmem:[#allocation3 + $0x94] sm:$0xf]
        %v2244 = vld [vmem:[#allocation3 + $0x98] sm:$0x1]
        %v2245 = vld [vmem:[#allocation3 + $0x9c] sm:$0xe]
        %v2246 = vld [vmem:[#allocation3 + $0xa0] sm:$0xf]
        %v2247 = vld [vmem:[#allocation3 + $0xa4] sm:$0x1]
        %v2248 = vld [vmem:[#allocation3 + $0xa8] sm:$0xe]
        %v2249 = vld [vmem:[#allocation3 + $0xac] sm:$0xf]
        %v2250 = vld [vmem:[#allocation3 + $0xb0] sm:$0x1]
        %v2251 = vld [vmem:[#allocation3 + $0xb4] sm:$0xe]
        %v2252 = vld [vmem:[#allocation3 + $0xb8] sm:$0xf]
        %v2253 = vld [vmem:[#allocation3 + $0xbc] sm:$0x1]
        %v2254 = vld [vmem:[#allocation3 + $0xc0] sm:$0xe]
        %v2255 = vld [vmem:[#allocation3 + $0xc4] sm:$0xf]
        %v2256 = vld [vmem:[#allocation3 + $0xc8] sm:$0x1]
        %v2257 = vld [vmem:[#allocation3 + $0xcc] sm:$0xe]
        %v2258 = vld [vmem:[#allocation3 + $0xd0] sm:$0xf]
        %v2259 = vld [vmem:[#allocation3 + $0xd4] sm:$0x1]
        %vm2308 = vcmask 1042432
        %vm2309 = vcmask 1046532
        %vm2310 = vmor %vm2308, %vm2309
        %v2311 = vrot.slane %v2206, 5
        %v2312 = vrot.slane %v2311, 4
        %v2313 = vrot.slane %v2207, 5
        %v2314 = vsel %vm2310, %v2312, %v2313
        %v2315 = vrot.slane %v2313, 4
        %v2316 = vrot.slane %v2208, 5
        %v2317 = vsel %vm2310, %v2315, %v2316
        %v2318 = vrot.slane %v2209, 5
        %v2319 = vrot.slane %v2318, 4
        %v2320 = vrot.slane %v2210, 5
        %v2321 = vsel %vm2310, %v2319, %v2320
        %v2322 = vrot.slane %v2320, 4
        %v2323 = vrot.slane %v2211, 5
        %v2324 = vsel %vm2310, %v2322, %v2323
        %v2325 = vrot.slane %v2212, 5
        %v2326 = vrot.slane %v2325, 4
        %v2327 = vrot.slane %v2213, 5
        %v2328 = vsel %vm2310, %v2326, %v2327
        %v2329 = vrot.slane %v2327, 4
        %v2330 = vrot.slane %v2214, 5
        %v2331 = vsel %vm2310, %v2329, %v2330
        %v2332 = vrot.slane %v2215, 5
        %v2333 = vrot.slane %v2332, 4
        %v2334 = vrot.slane %v2216, 5
        %v2335 = vsel %vm2310, %v2333, %v2334
        %v2336 = vrot.slane %v2334, 4
        %v2337 = vrot.slane %v2217, 5
        %v2338 = vsel %vm2310, %v2336, %v2337
        %v2339 = vrot.slane %v2218, 5
        %v2340 = vrot.slane %v2339, 4
        %v2341 = vrot.slane %v2219, 5
        %v2342 = vsel %vm2310, %v2340, %v2341
        %v2343 = vrot.slane %v2341, 4
        %v2344 = vrot.slane %v2220, 5
        %v2345 = vsel %vm2310, %v2343, %v2344
        %v2346 = vrot.slane %v2221, 5
        %v2347 = vrot.slane %v2346, 4
        %v2348 = vrot.slane %v2222, 5
        %v2349 = vsel %vm2310, %v2347, %v2348
        %v2350 = vrot.slane %v2348, 4
        %v2351 = vrot.slane %v2223, 5
        %v2352 = vsel %vm2310, %v2350, %v2351
        %v2353 = vrot.slane %v2224, 5
        %v2354 = vrot.slane %v2353, 4
        %v2355 = vrot.slane %v2225, 5
        %v2356 = vsel %vm2310, %v2354, %v2355
        %v2357 = vrot.slane %v2355, 4
        %v2358 = vrot.slane %v2226, 5
        %v2359 = vsel %vm2310, %v2357, %v2358
        %v2360 = vrot.slane %v2227, 5
        %v2361 = vrot.slane %v2360, 4
        %v2362 = vrot.slane %v2228, 5
        %v2363 = vsel %vm2310, %v2361, %v2362
        %v2364 = vrot.slane %v2362, 4
        %v2365 = vrot.slane %v2229, 5
        %v2366 = vsel %vm2310, %v2364, %v2365
        %v2367 = vrot.slane %v2230, 5
        %v2368 = vrot.slane %v2367, 4
        %v2369 = vrot.slane %v2231, 5
        %v2370 = vsel %vm2310, %v2368, %v2369
        %v2371 = vrot.slane %v2369, 4
        %v2372 = vrot.slane %v2232, 5
        %v2373 = vsel %vm2310, %v2371, %v2372
        %v2374 = vrot.slane %v2233, 5
        %v2375 = vrot.slane %v2374, 4
        %v2376 = vrot.slane %v2234, 5
        %v2377 = vsel %vm2310, %v2375, %v2376
        %v2378 = vrot.slane %v2376, 4
        %v2379 = vrot.slane %v2235, 5
        %v2380 = vsel %vm2310, %v2378, %v2379
        %v2381 = vrot.slane %v2236, 5
        %v2382 = vrot.slane %v2381, 4
        %v2383 = vrot.slane %v2237, 5
        %v2384 = vsel %vm2310, %v2382, %v2383
        %v2385 = vrot.slane %v2383, 4
        %v2386 = vrot.slane %v2238, 5
        %v2387 = vsel %vm2310, %v2385, %v2386
        %v2388 = vrot.slane %v2239, 5
        %v2389 = vrot.slane %v2388, 4
        %v2390 = vrot.slane %v2240, 5
        %v2391 = vsel %vm2310, %v2389, %v2390
        %v2392 = vrot.slane %v2390, 4
        %v2393 = vrot.slane %v2241, 5
        %v2394 = vsel %vm2310, %v2392, %v2393
        %v2395 = vrot.slane %v2242, 5
        %v2396 = vrot.slane %v2395, 4
        %v2397 = vrot.slane %v2243, 5
        %v2398 = vsel %vm2310, %v2396, %v2397
        %v2399 = vrot.slane %v2397, 4
        %v2400 = vrot.slane %v2244, 5
        %v2401 = vsel %vm2310, %v2399, %v2400
        %v2402 = vrot.slane %v2245, 5
        %v2403 = vrot.slane %v2402, 4
        %v2404 = vrot.slane %v2246, 5
        %v2405 = vsel %vm2310, %v2403, %v2404
        %v2406 = vrot.slane %v2404, 4
        %v2407 = vrot.slane %v2247, 5
        %v2408 = vsel %vm2310, %v2406, %v2407
        %v2409 = vrot.slane %v2248, 5
        %v2410 = vrot.slane %v2409, 4
        %v2411 = vrot.slane %v2249, 5
        %v2412 = vsel %vm2310, %v2410, %v2411
        %v2413 = vrot.slane %v2411, 4
        %v2414 = vrot.slane %v2250, 5
        %v2415 = vsel %vm2310, %v2413, %v2414
        %v2416 = vrot.slane %v2251, 5
        %v2417 = vrot.slane %v2416, 4
        %v2418 = vrot.slane %v2252, 5
        %v2419 = vsel %vm2310, %v2417, %v2418
        %v2420 = vrot.slane %v2418, 4
        %v2421 = vrot.slane %v2253, 5
        %v2422 = vsel %vm2310, %v2420, %v2421
        %v2423 = vunpack.c.l.b16 %v2314
        %v2424 = vunpack.c.l.b16 %v2317
        %v2425 = vunpack.c.l.b16 %v2321
        %v2426 = vunpack.c.l.b16 %v2324
        %v2427 = vunpack.c.l.b16 %v2328
        %v2428 = vunpack.c.l.b16 %v2331
        %v2429 = vunpack.c.l.b16 %v2335
        %v2430 = vunpack.c.l.b16 %v2338
        %v2431 = vunpack.c.l.b16 %v2342
        %v2432 = vunpack.c.l.b16 %v2345
        %v2433 = vunpack.c.l.b16 %v2349
        %v2434 = vunpack.c.l.b16 %v2352
        %v2435 = vunpack.c.l.b16 %v2356
        %v2436 = vunpack.c.l.b16 %v2359
        %v2437 = vunpack.c.l.b16 %v2363
        %v2438 = vunpack.c.l.b16 %v2366
        %v2439 = vunpack.c.l.b16 %v2370
        %v2440 = vunpack.c.l.b16 %v2373
        %v2441 = vunpack.c.l.b16 %v2377
        %v2442 = vunpack.c.l.b16 %v2380
        %v2443 = vunpack.c.l.b16 %v2384
        %v2444 = vunpack.c.l.b16 %v2387
        %v2445 = vunpack.c.l.b16 %v2391
        %v2446 = vunpack.c.l.b16 %v2394
        %v2447 = vunpack.c.l.b16 %v2398
        %v2448 = vunpack.c.l.b16 %v2401
        %v2449 = vunpack.c.l.b16 %v2405
        %v2450 = vunpack.c.l.b16 %v2408
        %v2451 = vunpack.c.l.b16 %v2412
        %v2452 = vunpack.c.l.b16 %v2415
        %v2453 = vunpack.c.l.b16 %v2419
        %v2454 = vunpack.c.l.b16 %v2422
        %v2455 = vpack.c.b16 %v2424, %v2423
        %v2456 = vpack.c.b16 %v2426, %v2425
        %v2457 = vpack.c.b16 %v2428, %v2427
        %v2458 = vpack.c.b16 %v2430, %v2429
        %v2459 = vpack.c.b16 %v2432, %v2431
        %v2460 = vpack.c.b16 %v2434, %v2433
        %v2461 = vpack.c.b16 %v2436, %v2435
        %v2462 = vpack.c.b16 %v2438, %v2437
        %v2463 = vpack.c.b16 %v2440, %v2439
        %v2464 = vpack.c.b16 %v2442, %v2441
        %v2465 = vpack.c.b16 %v2444, %v2443
        %v2466 = vpack.c.b16 %v2446, %v2445
        %v2467 = vpack.c.b16 %v2448, %v2447
        %v2468 = vpack.c.b16 %v2450, %v2449
        %v2469 = vpack.c.b16 %v2452, %v2451
        %v2470 = vpack.c.b16 %v2454, %v2453
        %2487 = vst [vmem:[#allocation4 + $0x10] sm:$0xff] %v2455
        %2488 = vst [vmem:[#allocation4 + $0x58] sm:$0xff] %v2456
        %2489 = vst [vmem:[#allocation4 + $0xa0] sm:$0xff] %v2457
        %2490 = vst [vmem:[#allocation4 + $0xe8] sm:$0xff] %v2458
        %2491 = vst [vmem:[#allocation4 + $0x130] sm:$0xff] %v2459
        %2492 = vst [vmem:[#allocation4 + $0x178] sm:$0xff] %v2460
        %2493 = vst [vmem:[#allocation4 + $0x1c0] sm:$0xff] %v2461
        %2494 = vst [vmem:[#allocation4 + $0x208] sm:$0xff] %v2462
        %2495 = vst [vmem:[#allocation4 + $0x250] sm:$0xff] %v2463
        %2496 = vst [vmem:[#allocation4 + $0x298] sm:$0xff] %v2464
        %2497 = vst [vmem:[#allocation4 + $0x2e0] sm:$0xff] %v2465
        %2498 = vst [vmem:[#allocation4 + $0x328] sm:$0xff] %v2466
        %2499 = vst [vmem:[#allocation4 + $0x370] sm:$0xff] %v2467
        %2500 = vst [vmem:[#allocation4 + $0x3b8] sm:$0xff] %v2468
        %2501 = vst [vmem:[#allocation4 + $0x400] sm:$0xff] %v2469
        %2502 = vst [vmem:[#allocation4 + $0x448] sm:$0xff] %v2470
        %v2506 = vrot.slane %v2254, 5
        %v2507 = vrot.slane %v2506, 4
        %v2508 = vrot.slane %v2255, 5
        %v2509 = vsel %vm2310, %v2507, %v2508
        %v2510 = vrot.slane %v2508, 4
        %v2511 = vrot.slane %v2256, 5
        %v2512 = vsel %vm2310, %v2510, %v2511
        %v2513 = vunpack.c.l.b16 %v2509
        %v2514 = vunpack.c.l.b16 %v2512
        %v2515 = vpack.c.b16 %v2514, %v2513
        %2517 = vst [vmem:[#allocation4 + $0x28] sm:$0xff] %v2456
        %2518 = vst [vmem:[#allocation4 + $0x70] sm:$0xff] %v2457
        %2519 = vst [vmem:[#allocation4 + $0xb8] sm:$0xff] %v2458
        %2520 = vst [vmem:[#allocation4 + $0x100] sm:$0xff] %v2459
        %2521 = vst [vmem:[#allocation4 + $0x148] sm:$0xff] %v2460
        %2522 = vst [vmem:[#allocation4 + $0x190] sm:$0xff] %v2461
        %2523 = vst [vmem:[#allocation4 + $0x1d8] sm:$0xff] %v2462
        %2524 = vst [vmem:[#allocation4 + $0x220] sm:$0xff] %v2463
        %2525 = vst [vmem:[#allocation4 + $0x268] sm:$0xff] %v2464
        %2526 = vst [vmem:[#allocation4 + $0x2b0] sm:$0xff] %v2465
        %2527 = vst [vmem:[#allocation4 + $0x2f8] sm:$0xff] %v2466
        %2528 = vst [vmem:[#allocation4 + $0x340] sm:$0xff] %v2467
        %2529 = vst [vmem:[#allocation4 + $0x388] sm:$0xff] %v2468
        %2530 = vst [vmem:[#allocation4 + $0x3d0] sm:$0xff] %v2469
        %2531 = vst [vmem:[#allocation4 + $0x418] sm:$0xff] %v2470
        %2532 = vst [vmem:[#allocation4 + $0x460] sm:$0xff] %v2515
        %v2536 = vrot.slane %v2257, 5
        %v2537 = vrot.slane %v2536, 4
        %v2538 = vrot.slane %v2258, 5
        %v2539 = vsel %vm2310, %v2537, %v2538
        %v2540 = vrot.slane %v2538, 4
        %v2541 = vrot.slane %v2259, 5
        %v2542 = vsel %vm2310, %v2540, %v2541
        %v2543 = vunpack.c.l.b16 %v2539
        %v2544 = vunpack.c.l.b16 %v2542
        %v2545 = vpack.c.b16 %v2544, %v2543
        %2547 = vst [vmem:[#allocation4 + $0x40] sm:$0xff] %v2457
        %2548 = vst [vmem:[#allocation4 + $0x88] sm:$0xff] %v2458
        %2549 = vst [vmem:[#allocation4 + $0xd0] sm:$0xff] %v2459
        %2550 = vst [vmem:[#allocation4 + $0x118] sm:$0xff] %v2460
        %2551 = vst [vmem:[#allocation4 + $0x160] sm:$0xff] %v2461
        %2552 = vst [vmem:[#allocation4 + $0x1a8] sm:$0xff] %v2462
        %2553 = vst [vmem:[#allocation4 + $0x1f0] sm:$0xff] %v2463
        %2554 = vst [vmem:[#allocation4 + $0x238] sm:$0xff] %v2464
        %2555 = vst [vmem:[#allocation4 + $0x280] sm:$0xff] %v2465
        %2556 = vst [vmem:[#allocation4 + $0x2c8] sm:$0xff] %v2466
        %2557 = vst [vmem:[#allocation4 + $0x310] sm:$0xff] %v2467
        %2558 = vst [vmem:[#allocation4 + $0x358] sm:$0xff] %v2468
        %2559 = vst [vmem:[#allocation4 + $0x3a0] sm:$0xff] %v2469
        %2560 = vst [vmem:[#allocation4 + $0x3e8] sm:$0xff] %v2470
        %2561 = vst [vmem:[#allocation4 + $0x430] sm:$0xff] %v2515
        %2562 = vst [vmem:[#allocation4 + $0x478] sm:$0xff] %v2545
        %v2563 = vld [vmem:[#allocation4] sm:$0xff]
        %v2564 = vld [vmem:[#allocation4 + $0x8] sm:$0xff]
        %v2565 = vld [vmem:[#allocation4 + $0x10] sm:$0xff]
        %v2566 = vld [vmem:[#allocation4 + $0x18] sm:$0xff]
        %v2567 = vld [vmem:[#allocation4 + $0x20] sm:$0xff]
        %v2568 = vld [vmem:[#allocation4 + $0x28] sm:$0xff]
        %v2569 = vld [vmem:[#allocation4 + $0x30] sm:$0xff]
        %v2570 = vld [vmem:[#allocation4 + $0x38] sm:$0xff]
        %v2571 = vld [vmem:[#allocation4 + $0x40] sm:$0xff]
        %v2572 = vld [vmem:[#allocation4 + $0x48] sm:$0xff]
        %v2573 = vld [vmem:[#allocation4 + $0x50] sm:$0xff]
        %v2574 = vld [vmem:[#allocation4 + $0x58] sm:$0xff]
        %v2575 = vld [vmem:[#allocation4 + $0x60] sm:$0xff]
        %v2576 = vld [vmem:[#allocation4 + $0x68] sm:$0xff]
        %v2577 = vld [vmem:[#allocation4 + $0x70] sm:$0xff]
        %v2578 = vld [vmem:[#allocation4 + $0x78] sm:$0xff]
        %v2579 = vld [vmem:[#allocation4 + $0x80] sm:$0xff]
        %v2580 = vld [vmem:[#allocation4 + $0x88] sm:$0xff]
        %v2581 = vld [vmem:[#allocation4 + $0x90] sm:$0xff]
        %v2582 = vld [vmem:[#allocation4 + $0x98] sm:$0xff]
        %v2583 = vld [vmem:[#allocation4 + $0xa0] sm:$0xff]
        %v2584 = vld [vmem:[#allocation4 + $0xa8] sm:$0xff]
        %v2585 = vld [vmem:[#allocation4 + $0xb0] sm:$0xff]
        %v2586 = vld [vmem:[#allocation4 + $0xb8] sm:$0xff]
        %v2587 = vld [vmem:[#allocation4 + $0xc0] sm:$0xff]
        %v2588 = vld [vmem:[#allocation4 + $0xc8] sm:$0xff]
        %v2589 = vld [vmem:[#allocation4 + $0xd0] sm:$0xff]
        %v2590 = vld [vmem:[#allocation4 + $0xd8] sm:$0xff]
        %v2591 = vld [vmem:[#allocation4 + $0xe0] sm:$0xff]
        %v2592 = vld [vmem:[#allocation4 + $0xe8] sm:$0xff]
        %v2593 = vld [vmem:[#allocation4 + $0xf0] sm:$0xff]
        %v2594 = vld [vmem:[#allocation4 + $0xf8] sm:$0xff]
        %v2595 = vld [vmem:[#allocation4 + $0x100] sm:$0xff]
        %v2596 = vld [vmem:[#allocation4 + $0x108] sm:$0xff]
        %v2597 = vld [vmem:[#allocation4 + $0x110] sm:$0xff]
        %v2598 = vld [vmem:[#allocation4 + $0x118] sm:$0xff]
        %v2599 = vld [vmem:[#allocation4 + $0x120] sm:$0xff]
        %v2600 = vld [vmem:[#allocation4 + $0x128] sm:$0xff]
        %v2601 = vld [vmem:[#allocation4 + $0x130] sm:$0xff]
        %v2602 = vld [vmem:[#allocation4 + $0x138] sm:$0xff]
        %v2603 = vld [vmem:[#allocation4 + $0x140] sm:$0xff]
        %v2604 = vld [vmem:[#allocation4 + $0x148] sm:$0xff]
        %v2605 = vld [vmem:[#allocation4 + $0x150] sm:$0xff]
        %v2606 = vld [vmem:[#allocation4 + $0x158] sm:$0xff]
        %v2607 = vld [vmem:[#allocation4 + $0x160] sm:$0xff]
        %v2608 = vld [vmem:[#allocation4 + $0x168] sm:$0xff]
        %v2609 = vld [vmem:[#allocation4 + $0x170] sm:$0xff]
        %v2610 = vld [vmem:[#allocation4 + $0x178] sm:$0xff]
        %v2611 = vld [vmem:[#allocation4 + $0x180] sm:$0xff]
        %v2612 = vld [vmem:[#allocation4 + $0x188] sm:$0xff]
        %v2613 = vld [vmem:[#allocation4 + $0x190] sm:$0xff]
        %v2614 = vld [vmem:[#allocation4 + $0x198] sm:$0xff]
        %v2615 = vld [vmem:[#allocation4 + $0x1a0] sm:$0xff]
        %v2616 = vld [vmem:[#allocation4 + $0x1a8] sm:$0xff]
        %v2617 = vld [vmem:[#allocation4 + $0x1b0] sm:$0xff]
        %v2618 = vld [vmem:[#allocation4 + $0x1b8] sm:$0xff]
        %v2619 = vld [vmem:[#allocation4 + $0x1c0] sm:$0xff]
        %v2620 = vld [vmem:[#allocation4 + $0x1c8] sm:$0xff]
        %v2621 = vld [vmem:[#allocation4 + $0x1d0] sm:$0xff]
        %v2622 = vld [vmem:[#allocation4 + $0x1d8] sm:$0xff]
        %v2623 = vld [vmem:[#allocation4 + $0x1e0] sm:$0xff]
        %v2624 = vld [vmem:[#allocation4 + $0x1e8] sm:$0xff]
        %v2625 = vld [vmem:[#allocation4 + $0x1f0] sm:$0xff]
        %v2626 = vld [vmem:[#allocation4 + $0x1f8] sm:$0xff]
        %v2627 = vld [vmem:[#allocation4 + $0x200] sm:$0xff]
        %v2628 = vld [vmem:[#allocation4 + $0x208] sm:$0xff]
        %v2629 = vld [vmem:[#allocation4 + $0x210] sm:$0xff]
        %v2630 = vld [vmem:[#allocation4 + $0x218] sm:$0xff]
        %v2631 = vld [vmem:[#allocation4 + $0x220] sm:$0xff]
        %v2632 = vld [vmem:[#allocation4 + $0x228] sm:$0xff]
        %v2633 = vld [vmem:[#allocation4 + $0x230] sm:$0xff]
        %v2634 = vld [vmem:[#allocation4 + $0x238] sm:$0xff]
        %v2635 = vld [vmem:[#allocation4 + $0x240] sm:$0xff]
        %v2636 = vld [vmem:[#allocation4 + $0x248] sm:$0xff]
        %v2637 = vld [vmem:[#allocation4 + $0x250] sm:$0xff]
        %v2638 = vld [vmem:[#allocation4 + $0x258] sm:$0xff]
        %v2639 = vld [vmem:[#allocation4 + $0x260] sm:$0xff]
        %v2640 = vld [vmem:[#allocation4 + $0x268] sm:$0xff]
        %v2641 = vld [vmem:[#allocation4 + $0x270] sm:$0xff]
        %v2642 = vld [vmem:[#allocation4 + $0x278] sm:$0xff]
        %v2643 = vld [vmem:[#allocation4 + $0x280] sm:$0xff]
        %v2644 = vld [vmem:[#allocation4 + $0x288] sm:$0xff]
        %v2645 = vld [vmem:[#allocation4 + $0x290] sm:$0xff]
        %v2646 = vld [vmem:[#allocation4 + $0x298] sm:$0xff]
        %v2647 = vld [vmem:[#allocation4 + $0x2a0] sm:$0xff]
        %v2648 = vld [vmem:[#allocation4 + $0x2a8] sm:$0xff]
        %v2649 = vld [vmem:[#allocation4 + $0x2b0] sm:$0xff]
        %v2650 = vld [vmem:[#allocation4 + $0x2b8] sm:$0xff]
        %v2651 = vld [vmem:[#allocation4 + $0x2c0] sm:$0xff]
        %v2652 = vld [vmem:[#allocation4 + $0x2c8] sm:$0xff]
        %v2653 = vld [vmem:[#allocation4 + $0x2d0] sm:$0xff]
        %v2654 = vld [vmem:[#allocation4 + $0x2d8] sm:$0xff]
        %v2655 = vld [vmem:[#allocation4 + $0x2e0] sm:$0xff]
        %v2656 = vld [vmem:[#allocation4 + $0x2e8] sm:$0xff]
        %v2657 = vld [vmem:[#allocation4 + $0x2f0] sm:$0xff]
        %v2658 = vld [vmem:[#allocation4 + $0x2f8] sm:$0xff]
        %v2659 = vld [vmem:[#allocation4 + $0x300] sm:$0xff]
        %v2660 = vld [vmem:[#allocation4 + $0x308] sm:$0xff]
        %v2661 = vld [vmem:[#allocation4 + $0x310] sm:$0xff]
        %v2662 = vld [vmem:[#allocation4 + $0x318] sm:$0xff]
        %v2663 = vld [vmem:[#allocation4 + $0x320] sm:$0xff]
        %v2664 = vld [vmem:[#allocation4 + $0x328] sm:$0xff]
        %v2665 = vld [vmem:[#allocation4 + $0x330] sm:$0xff]
        %v2666 = vld [vmem:[#allocation4 + $0x338] sm:$0xff]
        %v2667 = vld [vmem:[#allocation4 + $0x340] sm:$0xff]
        %v2668 = vld [vmem:[#allocation4 + $0x348] sm:$0xff]
        %v2669 = vld [vmem:[#allocation4 + $0x350] sm:$0xff]
        %v2670 = vld [vmem:[#allocation4 + $0x358] sm:$0xff]
        %v2671 = vld [vmem:[#allocation4 + $0x360] sm:$0xff]
        %v2672 = vld [vmem:[#allocation4 + $0x368] sm:$0xff]
        %v2673 = vld [vmem:[#allocation4 + $0x370] sm:$0xff]
        %v2674 = vld [vmem:[#allocation4 + $0x378] sm:$0xff]
        %v2675 = vld [vmem:[#allocation4 + $0x380] sm:$0xff]
        %v2676 = vld [vmem:[#allocation4 + $0x388] sm:$0xff]
        %v2677 = vld [vmem:[#allocation4 + $0x390] sm:$0xff]
        %v2678 = vld [vmem:[#allocation4 + $0x398] sm:$0xff]
        %v2679 = vld [vmem:[#allocation4 + $0x3a0] sm:$0xff]
        %v2680 = vld [vmem:[#allocation4 + $0x3a8] sm:$0xff]
        %v2681 = vld [vmem:[#allocation4 + $0x3b0] sm:$0xff]
        %v2682 = vld [vmem:[#allocation4 + $0x3b8] sm:$0xff]
        %v2683 = vld [vmem:[#allocation4 + $0x3c0] sm:$0xff]
        %v2684 = vld [vmem:[#allocation4 + $0x3c8] sm:$0xff]
        %v2685 = vld [vmem:[#allocation4 + $0x3d0] sm:$0xff]
        %v2686 = vld [vmem:[#allocation4 + $0x3d8] sm:$0xff]
        %v2687 = vld [vmem:[#allocation4 + $0x3e0] sm:$0xff]
        %v2688 = vld [vmem:[#allocation4 + $0x3e8] sm:$0xff]
        %v2689 = vld [vmem:[#allocation4 + $0x3f0] sm:$0xff]
        %v2690 = vld [vmem:[#allocation4 + $0x3f8] sm:$0xff]
        %v2691 = vld [vmem:[#allocation4 + $0x400] sm:$0xff]
        %v2692 = vld [vmem:[#allocation4 + $0x408] sm:$0xff]
        %v2693 = vld [vmem:[#allocation4 + $0x410] sm:$0xff]
        %v2694 = vld [vmem:[#allocation4 + $0x418] sm:$0xff]
        %v2695 = vld [vmem:[#allocation4 + $0x420] sm:$0xff]
        %v2696 = vld [vmem:[#allocation4 + $0x428] sm:$0xff]
        %v2697 = vld [vmem:[#allocation4 + $0x430] sm:$0xff]
        %v2698 = vld [vmem:[#allocation4 + $0x438] sm:$0xff]
        %v2699 = vld [vmem:[#allocation4 + $0x440] sm:$0xff]
        %v2700 = vld [vmem:[#allocation4 + $0x448] sm:$0xff]
        %v2701 = vld [vmem:[#allocation4 + $0x450] sm:$0xff]
        %v2702 = vld [vmem:[#allocation4 + $0x458] sm:$0xff]
        %v2703 = vld [vmem:[#allocation4 + $0x460] sm:$0xff]
        %v2704 = vld [vmem:[#allocation4 + $0x468] sm:$0xff]
        %v2705 = vld [vmem:[#allocation4 + $0x470] sm:$0xff]
        %v2706 = vld [vmem:[#allocation4 + $0x478] sm:$0xff]
        %v2707 = vld [vmem:[#allocation10] sm:$0xf]
        %v2708 = vld [vmem:[#allocation10 + $0x4] sm:$0xf]
        %v2709 = vld [vmem:[#allocation10 + $0x8] sm:$0xf]
        %v2710 = vld [vmem:[#allocation10 + $0xc] sm:$0xf]
        %v2711 = vld [vmem:[#allocation10 + $0x10] sm:$0xf]
        %v2712 = vld [vmem:[#allocation10 + $0x14] sm:$0xf]
        %v2713 = vld [vmem:[#allocation10 + $0x18] sm:$0xf]
        %v2714 = vld [vmem:[#allocation10 + $0x1c] sm:$0xf]
        %v2715 = vld [vmem:[#allocation10 + $0x20] sm:$0xf]
        %v2716 = vld [vmem:[#allocation10 + $0x24] sm:$0xf]
        %v2717 = vld [vmem:[#allocation10 + $0x28] sm:$0xf]
        %v2718 = vld [vmem:[#allocation10 + $0x2c] sm:$0xf]
        %v2719 = vld [vmem:[#allocation10 + $0x30] sm:$0xf]
        %v2720 = vld [vmem:[#allocation10 + $0x34] sm:$0xf]
        %v2721 = vld [vmem:[#allocation10 + $0x38] sm:$0xf]
        %v2722 = vld [vmem:[#allocation10 + $0x3c] sm:$0xf]
        %v2723 = vld [vmem:[#allocation10 + $0x40] sm:$0xf]
        %v2724 = vld [vmem:[#allocation10 + $0x44] sm:$0xf]
        %v2725 = vld [vmem:[#allocation10 + $0x48] sm:$0xf]
        %v2726 = vld [vmem:[#allocation10 + $0x4c] sm:$0xf]
        %v2727 = vld [vmem:[#allocation10 + $0x50] sm:$0xf]
        %v2728 = vld [vmem:[#allocation10 + $0x54] sm:$0xf]
        %v2729 = vld [vmem:[#allocation10 + $0x58] sm:$0xf]
        %v2730 = vld [vmem:[#allocation10 + $0x5c] sm:$0xf]
        %v2731 = vld [vmem:[#allocation10 + $0x60] sm:$0xf]
        %v2732 = vld [vmem:[#allocation10 + $0x64] sm:$0xf]
        %v2733 = vld [vmem:[#allocation10 + $0x68] sm:$0xf]
        %v2734 = vld [vmem:[#allocation10 + $0x6c] sm:$0xf]
        %v2735 = vld [vmem:[#allocation10 + $0x70] sm:$0xf]
        %v2736 = vld [vmem:[#allocation10 + $0x74] sm:$0xf]
        %v2737 = vld [vmem:[#allocation10 + $0x78] sm:$0xf]
        %v2738 = vld [vmem:[#allocation10 + $0x7c] sm:$0xf]
        %v2739 = vld [vmem:[#allocation10 + $0x80] sm:$0xf]
        %v2740 = vld [vmem:[#allocation10 + $0x84] sm:$0xf]
        %v2741 = vld [vmem:[#allocation10 + $0x88] sm:$0xf]
        %v2742 = vld [vmem:[#allocation10 + $0x8c] sm:$0xf]
        %v2743 = vld [vmem:[#allocation10 + $0x90] sm:$0xf]
        %v2744 = vld [vmem:[#allocation10 + $0x94] sm:$0xf]
        %v2745 = vld [vmem:[#allocation10 + $0x98] sm:$0xf]
        %v2746 = vld [vmem:[#allocation10 + $0x9c] sm:$0xf]
        %v2747 = vld [vmem:[#allocation10 + $0xa0] sm:$0xf]
        %v2748 = vld [vmem:[#allocation10 + $0xa4] sm:$0xf]
        %v2749 = vld [vmem:[#allocation10 + $0xa8] sm:$0xf]
        %v2750 = vld [vmem:[#allocation10 + $0xac] sm:$0xf]
        %v2751 = vld [vmem:[#allocation10 + $0xb0] sm:$0xf]
        %v2752 = vld [vmem:[#allocation10 + $0xb4] sm:$0xf]
        %v2753 = vld [vmem:[#allocation10 + $0xb8] sm:$0xf]
        %v2754 = vld [vmem:[#allocation10 + $0xbc] sm:$0xf]
        %v2755 = vld [vmem:[#allocation10 + $0xc0] sm:$0xf]
        %v2756 = vld [vmem:[#allocation10 + $0xc4] sm:$0xf]
        %v2757 = vld [vmem:[#allocation10 + $0xc8] sm:$0xf]
        %v2758 = vld [vmem:[#allocation10 + $0xcc] sm:$0xf]
        %v2759 = vld [vmem:[#allocation10 + $0xd0] sm:$0xf]
        %v2760 = vld [vmem:[#allocation10 + $0xd4] sm:$0xf]
        %v2761 = vld [vmem:[#allocation10 + $0xd8] sm:$0xf]
        %v2762 = vld [vmem:[#allocation10 + $0xdc] sm:$0xf]
        %v2763 = vld [vmem:[#allocation10 + $0xe0] sm:$0xf]
        %v2764 = vld [vmem:[#allocation10 + $0xe4] sm:$0xf]
        %v2765 = vld [vmem:[#allocation10 + $0xe8] sm:$0xf]
        %v2766 = vld [vmem:[#allocation10 + $0xec] sm:$0xf]
        %v2767 = vld [vmem:[#allocation10 + $0xf0] sm:$0xf]
        %v2768 = vld [vmem:[#allocation10 + $0xf4] sm:$0xf]
        %v2769 = vld [vmem:[#allocation10 + $0xf8] sm:$0xf]
        %v2770 = vld [vmem:[#allocation10 + $0xfc] sm:$0xf]
        %v2771 = vld [vmem:[#allocation10 + $0x100] sm:$0xf]
        %v2772 = vld [vmem:[#allocation10 + $0x104] sm:$0xf]
        %v2773 = vld [vmem:[#allocation10 + $0x108] sm:$0xf]
        %v2774 = vld [vmem:[#allocation10 + $0x10c] sm:$0xf]
        %v2775 = vld [vmem:[#allocation10 + $0x110] sm:$0xf]
        %v2776 = vld [vmem:[#allocation10 + $0x114] sm:$0xf]
        %v2777 = vld [vmem:[#allocation10 + $0x118] sm:$0xf]
        %v2778 = vld [vmem:[#allocation10 + $0x11c] sm:$0xf]
        %v2779 = vld [vmem:[#allocation10 + $0x120] sm:$0xf]
        %v2780 = vld [vmem:[#allocation10 + $0x124] sm:$0xf]
        %v2781 = vld [vmem:[#allocation10 + $0x128] sm:$0xf]
        %v2782 = vld [vmem:[#allocation10 + $0x12c] sm:$0xf]
        %v2783 = vld [vmem:[#allocation10 + $0x130] sm:$0xf]
        %v2784 = vld [vmem:[#allocation10 + $0x134] sm:$0xf]
        %v2785 = vld [vmem:[#allocation10 + $0x138] sm:$0xf]
        %v2786 = vld [vmem:[#allocation10 + $0x13c] sm:$0xf]
        %v2787 = vld [vmem:[#allocation10 + $0x140] sm:$0xf]
        %v2788 = vld [vmem:[#allocation10 + $0x144] sm:$0xf]
        %v2789 = vld [vmem:[#allocation10 + $0x148] sm:$0xf]
        %v2790 = vld [vmem:[#allocation10 + $0x14c] sm:$0xf]
        %v2791 = vld [vmem:[#allocation10 + $0x150] sm:$0xf]
        %v2792 = vld [vmem:[#allocation10 + $0x154] sm:$0xf]
        %v2793 = vld [vmem:[#allocation10 + $0x158] sm:$0xf]
        %v2794 = vld [vmem:[#allocation10 + $0x15c] sm:$0xf]
        %v2795 = vld [vmem:[#allocation10 + $0x160] sm:$0xf]
        %v2796 = vld [vmem:[#allocation10 + $0x164] sm:$0xf]
        %v2797 = vld [vmem:[#allocation10 + $0x168] sm:$0xf]
        %v2798 = vld [vmem:[#allocation10 + $0x16c] sm:$0xf]
        %v2799 = vld [vmem:[#allocation10 + $0x170] sm:$0xf]
        %v2800 = vld [vmem:[#allocation10 + $0x174] sm:$0xf]
        %v2801 = vld [vmem:[#allocation10 + $0x178] sm:$0xf]
        %v2802 = vld [vmem:[#allocation10 + $0x17c] sm:$0xf]
        %v2803 = vld [vmem:[#allocation10 + $0x180] sm:$0xf]
        %v2804 = vld [vmem:[#allocation10 + $0x184] sm:$0xf]
        %v2805 = vld [vmem:[#allocation10 + $0x188] sm:$0xf]
        %v2806 = vld [vmem:[#allocation10 + $0x18c] sm:$0xf]
        %v2807 = vld [vmem:[#allocation10 + $0x190] sm:$0xf]
        %v2808 = vld [vmem:[#allocation10 + $0x194] sm:$0xf]
        %v2809 = vld [vmem:[#allocation10 + $0x198] sm:$0xf]
        %v2810 = vld [vmem:[#allocation10 + $0x19c] sm:$0xf]
        %v2811 = vld [vmem:[#allocation10 + $0x1a0] sm:$0xf]
        %v2812 = vld [vmem:[#allocation10 + $0x1a4] sm:$0xf]
        %v2813 = vld [vmem:[#allocation10 + $0x1a8] sm:$0xf]
        %v2814 = vld [vmem:[#allocation10 + $0x1ac] sm:$0xf]
        %v2815 = vld [vmem:[#allocation10 + $0x1b0] sm:$0xf]
        %v2816 = vld [vmem:[#allocation10 + $0x1b4] sm:$0xf]
        %v2817 = vld [vmem:[#allocation10 + $0x1b8] sm:$0xf]
        %v2818 = vld [vmem:[#allocation10 + $0x1bc] sm:$0xf]
        %v2819 = vld [vmem:[#allocation10 + $0x1c0] sm:$0xf]
        %v2820 = vld [vmem:[#allocation10 + $0x1c4] sm:$0xf]
        %v2821 = vld [vmem:[#allocation10 + $0x1c8] sm:$0xf]
        %v2822 = vld [vmem:[#allocation10 + $0x1cc] sm:$0xf]
        %v2823 = vld [vmem:[#allocation10 + $0x1d0] sm:$0xf]
        %v2824 = vld [vmem:[#allocation10 + $0x1d4] sm:$0xf]
        %v2825 = vld [vmem:[#allocation10 + $0x1d8] sm:$0xf]
        %v2826 = vld [vmem:[#allocation10 + $0x1dc] sm:$0xf]
        %v2827 = vld [vmem:[#allocation10 + $0x1e0] sm:$0xf]
        %v2828 = vld [vmem:[#allocation10 + $0x1e4] sm:$0xf]
        %v2829 = vld [vmem:[#allocation10 + $0x1e8] sm:$0xf]
        %v2830 = vld [vmem:[#allocation10 + $0x1ec] sm:$0xf]
        %v2831 = vld [vmem:[#allocation10 + $0x1f0] sm:$0xf]
        %v2832 = vld [vmem:[#allocation10 + $0x1f4] sm:$0xf]
        %v2833 = vld [vmem:[#allocation10 + $0x1f8] sm:$0xf]
        %v2834 = vld [vmem:[#allocation10 + $0x1fc] sm:$0xf]
        %v2835 = vld [vmem:[#allocation10 + $0x200] sm:$0xf]
        %v2836 = vld [vmem:[#allocation10 + $0x204] sm:$0xf]
        %v2837 = vld [vmem:[#allocation10 + $0x208] sm:$0xf]
        %v2838 = vld [vmem:[#allocation10 + $0x20c] sm:$0xf]
        %v2839 = vld [vmem:[#allocation10 + $0x210] sm:$0xf]
        %v2840 = vld [vmem:[#allocation10 + $0x214] sm:$0xf]
        %v2841 = vld [vmem:[#allocation10 + $0x218] sm:$0xf]
        %v2842 = vld [vmem:[#allocation10 + $0x21c] sm:$0xf]
        %v2843 = vld [vmem:[#allocation10 + $0x220] sm:$0xf]
        %v2844 = vld [vmem:[#allocation10 + $0x224] sm:$0xf]
        %v2845 = vld [vmem:[#allocation10 + $0x228] sm:$0xf]
        %v2846 = vld [vmem:[#allocation10 + $0x22c] sm:$0xf]
        %v2847 = vld [vmem:[#allocation10 + $0x230] sm:$0xf]
        %v2848 = vld [vmem:[#allocation10 + $0x234] sm:$0xf]
        %v2849 = vld [vmem:[#allocation10 + $0x238] sm:$0xf]
        %v2850 = vld [vmem:[#allocation10 + $0x23c] sm:$0xf]
        %v2851 = vld [vmem:[%s4] sm:$0x1]
        %v2853 = vlaneseq
        %v2854 = vshrl.u32 %v2853, 7
        %v2855 = vsub.s32 0, %v2854
        %v2856 = vrot.slane %v2851, %v2855
        %v3002 = vunpack.c.l.b16 %v2707
        %v3003 = vunpack.c.l.b16 %v2708
        %v3004 = vunpack.c.l.b16 %v2709
        %v3005 = vunpack.c.l.b16 %v2710
        %v3006 = vunpack.c.l.b16 %v2711
        %v3007 = vunpack.c.l.b16 %v2712
        %v3008 = vunpack.c.l.b16 %v2713
        %v3009 = vunpack.c.l.b16 %v2714
        %v3010 = vunpack.c.l.b16 %v2715
        %v3011 = vunpack.c.l.b16 %v2716
        %v3012 = vunpack.c.l.b16 %v2717
        %v3013 = vunpack.c.l.b16 %v2718
        %v3014 = vunpack.c.l.b16 %v2719
        %v3015 = vunpack.c.l.b16 %v2720
        %v3016 = vunpack.c.l.b16 %v2721
        %v3017 = vunpack.c.l.b16 %v2722
        %v3018 = vunpack.c.l.b16 %v2723
        %v3019 = vunpack.c.l.b16 %v2724
        %v3020 = vunpack.c.l.b16 %v2725
        %v3021 = vunpack.c.l.b16 %v2726
        %v3022 = vunpack.c.l.b16 %v2727
        %v3023 = vunpack.c.l.b16 %v2728
        %v3024 = vunpack.c.l.b16 %v2729
        %v3025 = vunpack.c.l.b16 %v2730
        %v3026 = vunpack.c.l.b16 %v2731
        %v3027 = vunpack.c.l.b16 %v2732
        %v3028 = vunpack.c.l.b16 %v2733
        %v3029 = vunpack.c.l.b16 %v2734
        %v3030 = vunpack.c.l.b16 %v2735
        %v3031 = vunpack.c.l.b16 %v2736
        %v3032 = vunpack.c.l.b16 %v2737
        %v3033 = vunpack.c.l.b16 %v2738
        %v3034 = vunpack.c.l.b16 %v2739
        %v3035 = vunpack.c.l.b16 %v2740
        %v3036 = vunpack.c.l.b16 %v2741
        %v3037 = vunpack.c.l.b16 %v2742
        %v3038 = vunpack.c.l.b16 %v2743
        %v3039 = vunpack.c.l.b16 %v2744
        %v3040 = vunpack.c.l.b16 %v2745
        %v3041 = vunpack.c.l.b16 %v2746
        %v3042 = vunpack.c.l.b16 %v2747
        %v3043 = vunpack.c.l.b16 %v2748
        %v3044 = vunpack.c.l.b16 %v2749
        %v3045 = vunpack.c.l.b16 %v2750
        %v3046 = vunpack.c.l.b16 %v2751
        %v3047 = vunpack.c.l.b16 %v2752
        %v3048 = vunpack.c.l.b16 %v2753
        %v3049 = vunpack.c.l.b16 %v2754
        %v3050 = vunpack.c.l.b16 %v2755
        %v3051 = vunpack.c.l.b16 %v2756
        %v3052 = vunpack.c.l.b16 %v2757
        %v3053 = vunpack.c.l.b16 %v2758
        %v3054 = vunpack.c.l.b16 %v2759
        %v3055 = vunpack.c.l.b16 %v2760
        %v3056 = vunpack.c.l.b16 %v2761
        %v3057 = vunpack.c.l.b16 %v2762
        %v3058 = vunpack.c.l.b16 %v2763
        %v3059 = vunpack.c.l.b16 %v2764
        %v3060 = vunpack.c.l.b16 %v2765
        %v3061 = vunpack.c.l.b16 %v2766
        %v3062 = vunpack.c.l.b16 %v2767
        %v3063 = vunpack.c.l.b16 %v2768
        %v3064 = vunpack.c.l.b16 %v2769
        %v3065 = vunpack.c.l.b16 %v2770
        %v3066 = vunpack.c.l.b16 %v2771
        %v3067 = vunpack.c.l.b16 %v2772
        %v3068 = vunpack.c.l.b16 %v2773
        %v3069 = vunpack.c.l.b16 %v2774
        %v3070 = vunpack.c.l.b16 %v2775
        %v3071 = vunpack.c.l.b16 %v2776
        %v3072 = vunpack.c.l.b16 %v2777
        %v3073 = vunpack.c.l.b16 %v2778
        %v3074 = vunpack.c.l.b16 %v2779
        %v3075 = vunpack.c.l.b16 %v2780
        %v3076 = vunpack.c.l.b16 %v2781
        %v3077 = vunpack.c.l.b16 %v2782
        %v3078 = vunpack.c.l.b16 %v2783
        %v3079 = vunpack.c.l.b16 %v2784
        %v3080 = vunpack.c.l.b16 %v2785
        %v3081 = vunpack.c.l.b16 %v2786
        %v3082 = vunpack.c.l.b16 %v2787
        %v3083 = vunpack.c.l.b16 %v2788
        %v3084 = vunpack.c.l.b16 %v2789
        %v3085 = vunpack.c.l.b16 %v2790
        %v3086 = vunpack.c.l.b16 %v2791
        %v3087 = vunpack.c.l.b16 %v2792
        %v3088 = vunpack.c.l.b16 %v2793
        %v3089 = vunpack.c.l.b16 %v2794
        %v3090 = vunpack.c.l.b16 %v2795
        %v3091 = vunpack.c.l.b16 %v2796
        %v3092 = vunpack.c.l.b16 %v2797
        %v3093 = vunpack.c.l.b16 %v2798
        %v3094 = vunpack.c.l.b16 %v2799
        %v3095 = vunpack.c.l.b16 %v2800
        %v3096 = vunpack.c.l.b16 %v2801
        %v3097 = vunpack.c.l.b16 %v2802
        %v3098 = vunpack.c.l.b16 %v2803
        %v3099 = vunpack.c.l.b16 %v2804
        %v3100 = vunpack.c.l.b16 %v2805
        %v3101 = vunpack.c.l.b16 %v2806
        %v3102 = vunpack.c.l.b16 %v2807
        %v3103 = vunpack.c.l.b16 %v2808
        %v3104 = vunpack.c.l.b16 %v2809
        %v3105 = vunpack.c.l.b16 %v2810
        %v3106 = vunpack.c.l.b16 %v2811
        %v3107 = vunpack.c.l.b16 %v2812
        %v3108 = vunpack.c.l.b16 %v2813
        %v3109 = vunpack.c.l.b16 %v2814
        %v3110 = vunpack.c.l.b16 %v2815
        %v3111 = vunpack.c.l.b16 %v2816
        %v3112 = vunpack.c.l.b16 %v2817
        %v3113 = vunpack.c.l.b16 %v2818
        %v3114 = vunpack.c.l.b16 %v2819
        %v3115 = vunpack.c.l.b16 %v2820
        %v3116 = vunpack.c.l.b16 %v2821
        %v3117 = vunpack.c.l.b16 %v2822
        %v3118 = vunpack.c.l.b16 %v2823
        %v3119 = vunpack.c.l.b16 %v2824
        %v3120 = vunpack.c.l.b16 %v2825
        %v3121 = vunpack.c.l.b16 %v2826
        %v3122 = vunpack.c.l.b16 %v2827
        %v3123 = vunpack.c.l.b16 %v2828
        %v3124 = vunpack.c.l.b16 %v2829
        %v3125 = vunpack.c.l.b16 %v2830
        %v3126 = vunpack.c.l.b16 %v2831
        %v3127 = vunpack.c.l.b16 %v2832
        %v3128 = vunpack.c.l.b16 %v2833
        %v3129 = vunpack.c.l.b16 %v2834
        %v3130 = vunpack.c.l.b16 %v2835
        %v3131 = vunpack.c.l.b16 %v2836
        %v3132 = vunpack.c.l.b16 %v2837
        %v3133 = vunpack.c.l.b16 %v2838
        %v3134 = vunpack.c.l.b16 %v2839
        %v3135 = vunpack.c.l.b16 %v2840
        %v3136 = vunpack.c.l.b16 %v2841
        %v3137 = vunpack.c.l.b16 %v2842
        %v3138 = vunpack.c.l.b16 %v2843
        %v3139 = vunpack.c.l.b16 %v2844
        %v3140 = vunpack.c.l.b16 %v2845
        %v3141 = vunpack.c.l.b16 %v2846
        %v3142 = vunpack.c.l.b16 %v2847
        %v3143 = vunpack.c.l.b16 %v2848
        %v3144 = vunpack.c.l.b16 %v2849
        %v3145 = vunpack.c.l.b16 %v2850
        %v3146 = vpack.c.b16 %v3003, %v3002
        %v3147 = vpack.c.b16 %v3005, %v3004
        %v3148 = vpack.c.b16 %v3007, %v3006
        %v3149 = vpack.c.b16 %v3009, %v3008
        %v3150 = vpack.c.b16 %v3011, %v3010
        %v3151 = vpack.c.b16 %v3013, %v3012
        %v3152 = vpack.c.b16 %v3015, %v3014
        %v3153 = vpack.c.b16 %v3017, %v3016
        %v3154 = vpack.c.b16 %v3019, %v3018
        %v3155 = vpack.c.b16 %v3021, %v3020
        %v3156 = vpack.c.b16 %v3023, %v3022
        %v3157 = vpack.c.b16 %v3025, %v3024
        %v3158 = vpack.c.b16 %v3027, %v3026
        %v3159 = vpack.c.b16 %v3029, %v3028
        %v3160 = vpack.c.b16 %v3031, %v3030
        %v3161 = vpack.c.b16 %v3033, %v3032
        %v3162 = vpack.c.b16 %v3035, %v3034
        %v3163 = vpack.c.b16 %v3037, %v3036
        %v3164 = vpack.c.b16 %v3039, %v3038
        %v3165 = vpack.c.b16 %v3041, %v3040
        %v3166 = vpack.c.b16 %v3043, %v3042
        %v3167 = vpack.c.b16 %v3045, %v3044
        %v3168 = vpack.c.b16 %v3047, %v3046
        %v3169 = vpack.c.b16 %v3049, %v3048
        %v3170 = vpack.c.b16 %v3051, %v3050
        %v3171 = vpack.c.b16 %v3053, %v3052
        %v3172 = vpack.c.b16 %v3055, %v3054
        %v3173 = vpack.c.b16 %v3057, %v3056
        %v3174 = vpack.c.b16 %v3059, %v3058
        %v3175 = vpack.c.b16 %v3061, %v3060
        %v3176 = vpack.c.b16 %v3063, %v3062
        %v3177 = vpack.c.b16 %v3065, %v3064
        %v3178 = vpack.c.b16 %v3067, %v3066
        %v3179 = vpack.c.b16 %v3069, %v3068
        %v3180 = vpack.c.b16 %v3071, %v3070
        %v3181 = vpack.c.b16 %v3073, %v3072
        %v3182 = vpack.c.b16 %v3075, %v3074
        %v3183 = vpack.c.b16 %v3077, %v3076
        %v3184 = vpack.c.b16 %v3079, %v3078
        %v3185 = vpack.c.b16 %v3081, %v3080
        %v3186 = vpack.c.b16 %v3083, %v3082
        %v3187 = vpack.c.b16 %v3085, %v3084
        %v3188 = vpack.c.b16 %v3087, %v3086
        %v3189 = vpack.c.b16 %v3089, %v3088
        %v3190 = vpack.c.b16 %v3091, %v3090
        %v3191 = vpack.c.b16 %v3093, %v3092
        %v3192 = vpack.c.b16 %v3095, %v3094
        %v3193 = vpack.c.b16 %v3097, %v3096
        %v3194 = vpack.c.b16 %v3099, %v3098
        %v3195 = vpack.c.b16 %v3101, %v3100
        %v3196 = vpack.c.b16 %v3103, %v3102
        %v3197 = vpack.c.b16 %v3105, %v3104
        %v3198 = vpack.c.b16 %v3107, %v3106
        %v3199 = vpack.c.b16 %v3109, %v3108
        %v3200 = vpack.c.b16 %v3111, %v3110
        %v3201 = vpack.c.b16 %v3113, %v3112
        %v3202 = vpack.c.b16 %v3115, %v3114
        %v3203 = vpack.c.b16 %v3117, %v3116
        %v3204 = vpack.c.b16 %v3119, %v3118
        %v3205 = vpack.c.b16 %v3121, %v3120
        %v3206 = vpack.c.b16 %v3123, %v3122
        %v3207 = vpack.c.b16 %v3125, %v3124
        %v3208 = vpack.c.b16 %v3127, %v3126
        %v3209 = vpack.c.b16 %v3129, %v3128
        %v3210 = vpack.c.b16 %v3131, %v3130
        %v3211 = vpack.c.b16 %v3133, %v3132
        %v3212 = vpack.c.b16 %v3135, %v3134
        %v3213 = vpack.c.b16 %v3137, %v3136
        %v3214 = vpack.c.b16 %v3139, %v3138
        %v3215 = vpack.c.b16 %v3141, %v3140
        %v3216 = vpack.c.b16 %v3143, %v3142
        %v3217 = vpack.c.b16 %v3145, %v3144
        %3290 = vmatprep.subr.bf16.mxu0 0
        %3291 = vmatpush1.bf16.msra.mxu0 %v3146
        %3292 = vmatprep.subr.bf16.mxu0 0
        %3293 = vmatpush1.bf16.msra.mxu0 %v3147
        %3294 = vmatprep.subr.bf16.mxu0 0
        %3295 = vmatpush1.bf16.msra.mxu0 %v3148
        %3296 = vmatprep.subr.bf16.mxu0 0
        %3297 = vmatpush1.bf16.msra.mxu0 %v3149
        %3298 = vmatprep.subr.bf16.mxu0 0
        %3299 = vmatpush1.bf16.msra.mxu0 %v3150
        %3300 = vmatprep.subr.bf16.mxu0 0
        %3301 = vmatpush1.bf16.msra.mxu0 %v3151
        %3302 = vmatprep.subr.bf16.mxu0 0
        %3303 = vmatpush1.bf16.msra.mxu0 %v3152
        %3304 = vmatprep.subr.bf16.mxu0 0
        %3305 = vmatpush1.bf16.msra.mxu0 %v3153
        %3306 = vmatprep.subr.bf16.mxu0 0
        %3307 = vmatpush1.bf16.msra.mxu0 %v3154
        %3308 = vmatprep.subr.bf16.mxu0 0
        %3309 = vmatpush1.bf16.msra.mxu0 %v3155
        %3310 = vmatprep.subr.bf16.mxu0 0
        %3311 = vmatpush1.bf16.msra.mxu0 %v3156
        %3312 = vmatprep.subr.bf16.mxu0 0
        %3313 = vmatpush1.bf16.msra.mxu0 %v3157
        %3314 = vmatprep.subr.bf16.mxu0 0
        %3315 = vmatpush1.bf16.msra.mxu0 %v3158
        %3316 = vmatprep.subr.bf16.mxu0 0
        %3317 = vmatpush1.bf16.msra.mxu0 %v3159
        %3318 = vmatprep.subr.bf16.mxu0 0
        %3319 = vmatpush1.bf16.msra.mxu0 %v3160
        %3320 = vmatprep.subr.bf16.mxu0 0
        %3321 = vmatpush1.bf16.msra.mxu0 %v3161
        %3322 = vmatprep.mubr.bf16.mxu0 %v2564
        %3323 = vmatmul.mubr.bf16.gmra.mrb[0].mxu0 %v2563
        %v3324 = vpop.f32.mrb[0].mxu0
        %v3325 = vadd.f32 %v2856, %v3324
        %v3326 = vpop.f32.mrb[0].mxu0
        %v3327 = vpop.f32.mrb[0].mxu0
        %v3328 = vadd.f32 %v2856, %v3327
        %v3329 = vpop.f32.mrb[0].mxu0
        %3330 = vmatprep.mubr.bf16.mxu0 %v2573
        %3331 = vmatmul.mubr.bf16.gmra.mrb[0].mxu0 %v2572
        %v3332 = vpop.f32.mrb[0].mxu0
        %v3333 = vadd.f32 %v2856, %v3332
        %v3334 = vpop.f32.mrb[0].mxu0
        %v3335 = vpop.f32.mrb[0].mxu0
        %v3336 = vadd.f32 %v2856, %v3335
        %v3337 = vpop.f32.mrb[0].mxu0
        %3338 = vmatprep.mubr.bf16.mxu0 %v2582
        %3339 = vmatmul.mubr.bf16.gmra.mrb[0].mxu0 %v2581
        %v3340 = vpop.f32.mrb[0].mxu0
        %v3341 = vadd.f32 %v2856, %v3340
        %v3342 = vpop.f32.mrb[0].mxu0
        %v3343 = vpop.f32.mrb[0].mxu0
        %v3344 = vadd.f32 %v2856, %v3343
        %v3345 = vpop.f32.mrb[0].mxu0
        %3346 = vmatprep.mubr.bf16.mxu0 %v2591
        %3347 = vmatmul.mubr.bf16.gmra.mrb[0].mxu0 %v2590
        %v3348 = vpop.f32.mrb[0].mxu0
        %v3349 = vadd.f32 %v2856, %v3348
        %v3350 = vpop.f32.mrb[0].mxu0
        %v3351 = vpop.f32.mrb[0].mxu0
        %v3352 = vadd.f32 %v2856, %v3351
        %v3353 = vpop.f32.mrb[0].mxu0
        %3354 = vmatprep.mubr.bf16.mxu0 %v2600
        %3355 = vmatmul.mubr.bf16.gmra.mrb[0].mxu0 %v2599
        %v3356 = vpop.f32.mrb[0].mxu0
        %v3357 = vadd.f32 %v2856, %v3356
        %v3358 = vpop.f32.mrb[0].mxu0
        %v3359 = vpop.f32.mrb[0].mxu0
        %v3360 = vadd.f32 %v2856, %v3359
        %v3361 = vpop.f32.mrb[0].mxu0
        %3362 = vmatprep.mubr.bf16.mxu0 %v2609
        %3363 = vmatmul.mubr.bf16.gmra.mrb[0].mxu0 %v2608
        %v3364 = vpop.f32.mrb[0].mxu0
        %v3365 = vadd.f32 %v2856, %v3364
        %v3366 = vpop.f32.mrb[0].mxu0
        %v3367 = vpop.f32.mrb[0].mxu0
        %v3368 = vadd.f32 %v2856, %v3367
        %v3369 = vpop.f32.mrb[0].mxu0
        %3370 = vmatprep.mubr.bf16.mxu0 %v2618
        %3371 = vmatmul.mubr.bf16.gmra.mrb[0].mxu0 %v2617
        %v3372 = vpop.f32.mrb[0].mxu0
        %v3373 = vadd.f32 %v2856, %v3372
        %v3374 = vpop.f32.mrb[0].mxu0
        %v3375 = vpop.f32.mrb[0].mxu0
        %v3376 = vadd.f32 %v2856, %v3375
        %v3377 = vpop.f32.mrb[0].mxu0
        %3378 = vmatprep.mubr.bf16.mxu0 %v2627
        %3379 = vmatmul.mubr.bf16.gmra.mrb[0].mxu0 %v2626
        %v3380 = vpop.f32.mrb[0].mxu0
        %v3381 = vadd.f32 %v2856, %v3380
        %v3382 = vpop.f32.mrb[0].mxu0
        %v3383 = vpop.f32.mrb[0].mxu0
        %v3384 = vadd.f32 %v2856, %v3383
        %v3385 = vpop.f32.mrb[0].mxu0
        %3386 = vmatprep.mubr.bf16.mxu0 %v2636
        %3387 = vmatmul.mubr.bf16.gmra.mrb[0].mxu0 %v2635
        %v3388 = vpop.f32.mrb[0].mxu0
        %v3389 = vadd.f32 %v2856, %v3388
        %v3390 = vpop.f32.mrb[0].mxu0
        %v3391 = vpop.f32.mrb[0].mxu0
        %v3392 = vadd.f32 %v2856, %v3391
        %v3393 = vpop.f32.mrb[0].mxu0
        %3394 = vmatprep.mubr.bf16.mxu0 %v2645
        %3395 = vmatmul.mubr.bf16.gmra.mrb[0].mxu0 %v2644
        %v3396 = vpop.f32.mrb[0].mxu0
        %v3397 = vadd.f32 %v2856, %v3396
        %v3398 = vpop.f32.mrb[0].mxu0
        %v3399 = vpop.f32.mrb[0].mxu0
        %v3400 = vadd.f32 %v2856, %v3399
        %v3401 = vpop.f32.mrb[0].mxu0
        %3402 = vmatprep.mubr.bf16.mxu0 %v2654
        %3403 = vmatmul.mubr.bf16.gmra.mrb[0].mxu0 %v2653
        %v3404 = vpop.f32.mrb[0].mxu0
        %v3405 = vadd.f32 %v2856, %v3404
        %v3406 = vpop.f32.mrb[0].mxu0
        %v3407 = vpop.f32.mrb[0].mxu0
        %v3408 = vadd.f32 %v2856, %v3407
        %v3409 = vpop.f32.mrb[0].mxu0
        %3410 = vmatprep.mubr.bf16.mxu0 %v2663
        %3411 = vmatmul.mubr.bf16.gmra.mrb[0].mxu0 %v2662
        %v3412 = vpop.f32.mrb[0].mxu0
        %v3413 = vadd.f32 %v2856, %v3412
        %v3414 = vpop.f32.mrb[0].mxu0
        %v3415 = vpop.f32.mrb[0].mxu0
        %v3416 = vadd.f32 %v2856, %v3415
        %v3417 = vpop.f32.mrb[0].mxu0
        %3418 = vmatprep.mubr.bf16.mxu0 %v2672
        %3419 = vmatmul.mubr.bf16.gmra.mrb[0].mxu0 %v2671
        %v3420 = vpop.f32.mrb[0].mxu0
        %v3421 = vadd.f32 %v2856, %v3420
        %v3422 = vpop.f32.mrb[0].mxu0
        %v3423 = vpop.f32.mrb[0].mxu0
        %v3424 = vadd.f32 %v2856, %v3423
        %v3425 = vpop.f32.mrb[0].mxu0
        %3426 = vmatprep.mubr.bf16.mxu0 %v2681
        %3427 = vmatmul.mubr.bf16.gmra.mrb[0].mxu0 %v2680
        %v3428 = vpop.f32.mrb[0].mxu0
        %v3429 = vadd.f32 %v2856, %v3428
        %v3430 = vpop.f32.mrb[0].mxu0
        %v3431 = vpop.f32.mrb[0].mxu0
        %v3432 = vadd.f32 %v2856, %v3431
        %v3433 = vpop.f32.mrb[0].mxu0
        %3434 = vmatprep.mubr.bf16.mxu0 %v2690
        %3435 = vmatmul.mubr.bf16.gmra.mrb[0].mxu0 %v2689
        %v3436 = vpop.f32.mrb[0].mxu0
        %v3437 = vadd.f32 %v2856, %v3436
        %v3438 = vpop.f32.mrb[0].mxu0
        %v3439 = vpop.f32.mrb[0].mxu0
        %v3440 = vadd.f32 %v2856, %v3439
        %v3441 = vpop.f32.mrb[0].mxu0
        %3442 = vmatprep.mubr.bf16.mxu0 %v2699
        %3443 = vmatmul.mubr.bf16.gmra.mrb[0].mxu0 %v2698
        %v3444 = vpop.f32.mrb[0].mxu0
        %v3445 = vadd.f32 %v2856, %v3444
        %v3446 = vpop.f32.mrb[0].mxu0
        %v3447 = vpop.f32.mrb[0].mxu0
        %v3448 = vadd.f32 %v2856, %v3447
        %v3449 = vpop.f32.mrb[0].mxu0
        %3450 = vdwg.mxu0
        %3451 = vmatprep.subr.bf16.mxu0 0
        %3452 = vmatpush1.bf16.msra.mxu0 %v3162
        %3453 = vmatprep.subr.bf16.mxu0 0
        %3454 = vmatpush1.bf16.msra.mxu0 %v3163
        %3455 = vmatprep.subr.bf16.mxu0 0
        %3456 = vmatpush1.bf16.msra.mxu0 %v3164
        %3457 = vmatprep.subr.bf16.mxu0 0
        %3458 = vmatpush1.bf16.msra.mxu0 %v3165
        %3459 = vmatprep.subr.bf16.mxu0 0
        %3460 = vmatpush1.bf16.msra.mxu0 %v3166
        %3461 = vmatprep.subr.bf16.mxu0 0
        %3462 = vmatpush1.bf16.msra.mxu0 %v3167
        %3463 = vmatprep.subr.bf16.mxu0 0
        %3464 = vmatpush1.bf16.msra.mxu0 %v3168
        %3465 = vmatprep.subr.bf16.mxu0 0
        %3466 = vmatpush1.bf16.msra.mxu0 %v3169
        %3467 = vmatprep.subr.bf16.mxu0 0
        %3468 = vmatpush1.bf16.msra.mxu0 %v3170
        %3469 = vmatprep.subr.bf16.mxu0 0
        %3470 = vmatpush1.bf16.msra.mxu0 %v3171
        %3471 = vmatprep.subr.bf16.mxu0 0
        %3472 = vmatpush1.bf16.msra.mxu0 %v3172
        %3473 = vmatprep.subr.bf16.mxu0 0
        %3474 = vmatpush1.bf16.msra.mxu0 %v3173
        %3475 = vmatprep.subr.bf16.mxu0 0
        %3476 = vmatpush1.bf16.msra.mxu0 %v3174
        %3477 = vmatprep.subr.bf16.mxu0 0
        %3478 = vmatpush1.bf16.msra.mxu0 %v3175
        %3479 = vmatprep.subr.bf16.mxu0 0
        %3480 = vmatpush1.bf16.msra.mxu0 %v3176
        %3481 = vmatprep.subr.bf16.mxu0 0
        %3482 = vmatpush1.bf16.msra.mxu0 %v3177
        %3483 = vmatprep.mubr.bf16.mxu0 %v2566
        %3484 = vmatmul.mubr.bf16.gmra.mrb[0].mxu0 %v2565
        %v3485 = vpop.f32.mrb[0].mxu0
        %v3486 = vadd.f32 %v3325, %v3485
        %v3487 = vpop.f32.mrb[0].mxu0
        %v3488 = vpop.f32.mrb[0].mxu0
        %v3489 = vadd.f32 %v3328, %v3488
        %v3490 = vpop.f32.mrb[0].mxu0
        %3491 = vmatprep.mubr.bf16.mxu0 %v2575
        %3492 = vmatmul.mubr.bf16.gmra.mrb[0].mxu0 %v2574
        %v3493 = vpop.f32.mrb[0].mxu0
        %v3494 = vadd.f32 %v3333, %v3493
        %v3495 = vpop.f32.mrb[0].mxu0
        %v3496 = vpop.f32.mrb[0].mxu0
        %v3497 = vadd.f32 %v3336, %v3496
        %v3498 = vpop.f32.mrb[0].mxu0
        %3499 = vmatprep.mubr.bf16.mxu0 %v2584
        %3500 = vmatmul.mubr.bf16.gmra.mrb[0].mxu0 %v2583
        %v3501 = vpop.f32.mrb[0].mxu0
        %v3502 = vadd.f32 %v3341, %v3501
        %v3503 = vpop.f32.mrb[0].mxu0
        %v3504 = vpop.f32.mrb[0].mxu0
        %v3505 = vadd.f32 %v3344, %v3504
        %v3506 = vpop.f32.mrb[0].mxu0
        %3507 = vmatprep.mubr.bf16.mxu0 %v2593
        %3508 = vmatmul.mubr.bf16.gmra.mrb[0].mxu0 %v2592
        %v3509 = vpop.f32.mrb[0].mxu0
        %v3510 = vadd.f32 %v3349, %v3509
        %v3511 = vpop.f32.mrb[0].mxu0
        %v3512 = vpop.f32.mrb[0].mxu0
        %v3513 = vadd.f32 %v3352, %v3512
        %v3514 = vpop.f32.mrb[0].mxu0
        %3515 = vmatprep.mubr.bf16.mxu0 %v2602
        %3516 = vmatmul.mubr.bf16.gmra.mrb[0].mxu0 %v2601
        %v3517 = vpop.f32.mrb[0].mxu0
        %v3518 = vadd.f32 %v3357, %v3517
        %v3519 = vpop.f32.mrb[0].mxu0
        %v3520 = vpop.f32.mrb[0].mxu0
        %v3521 = vadd.f32 %v3360, %v3520
        %v3522 = vpop.f32.mrb[0].mxu0
        %3523 = vmatprep.mubr.bf16.mxu0 %v2611
        %3524 = vmatmul.mubr.bf16.gmra.mrb[0].mxu0 %v2610
        %v3525 = vpop.f32.mrb[0].mxu0
        %v3526 = vadd.f32 %v3365, %v3525
        %v3527 = vpop.f32.mrb[0].mxu0
        %v3528 = vpop.f32.mrb[0].mxu0
        %v3529 = vadd.f32 %v3368, %v3528
        %v3530 = vpop.f32.mrb[0].mxu0
        %3531 = vmatprep.mubr.bf16.mxu0 %v2620
        %3532 = vmatmul.mubr.bf16.gmra.mrb[0].mxu0 %v2619
        %v3533 = vpop.f32.mrb[0].mxu0
        %v3534 = vadd.f32 %v3373, %v3533
        %v3535 = vpop.f32.mrb[0].mxu0
        %v3536 = vpop.f32.mrb[0].mxu0
        %v3537 = vadd.f32 %v3376, %v3536
        %v3538 = vpop.f32.mrb[0].mxu0
        %3539 = vmatprep.mubr.bf16.mxu0 %v2629
        %3540 = vmatmul.mubr.bf16.gmra.mrb[0].mxu0 %v2628
        %v3541 = vpop.f32.mrb[0].mxu0
        %v3542 = vadd.f32 %v3381, %v3541
        %v3543 = vpop.f32.mrb[0].mxu0
        %v3544 = vpop.f32.mrb[0].mxu0
        %v3545 = vadd.f32 %v3384, %v3544
        %v3546 = vpop.f32.mrb[0].mxu0
        %3547 = vmatprep.mubr.bf16.mxu0 %v2638
        %3548 = vmatmul.mubr.bf16.gmra.mrb[0].mxu0 %v2637
        %v3549 = vpop.f32.mrb[0].mxu0
        %v3550 = vadd.f32 %v3389, %v3549
        %v3551 = vpop.f32.mrb[0].mxu0
        %v3552 = vpop.f32.mrb[0].mxu0
        %v3553 = vadd.f32 %v3392, %v3552
        %v3554 = vpop.f32.mrb[0].mxu0
        %3555 = vmatprep.mubr.bf16.mxu0 %v2647
        %3556 = vmatmul.mubr.bf16.gmra.mrb[0].mxu0 %v2646
        %v3557 = vpop.f32.mrb[0].mxu0
        %v3558 = vadd.f32 %v3397, %v3557
        %v3559 = vpop.f32.mrb[0].mxu0
        %v3560 = vpop.f32.mrb[0].mxu0
        %v3561 = vadd.f32 %v3400, %v3560
        %v3562 = vpop.f32.mrb[0].mxu0
        %3563 = vmatprep.mubr.bf16.mxu0 %v2656
        %3564 = vmatmul.mubr.bf16.gmra.mrb[0].mxu0 %v2655
        %v3565 = vpop.f32.mrb[0].mxu0
        %v3566 = vadd.f32 %v3405, %v3565
        %v3567 = vpop.f32.mrb[0].mxu0
        %v3568 = vpop.f32.mrb[0].mxu0
        %v3569 = vadd.f32 %v3408, %v3568
        %v3570 = vpop.f32.mrb[0].mxu0
        %3571 = vmatprep.mubr.bf16.mxu0 %v2665
        %3572 = vmatmul.mubr.bf16.gmra.mrb[0].mxu0 %v2664
        %v3573 = vpop.f32.mrb[0].mxu0
        %v3574 = vadd.f32 %v3413, %v3573
        %v3575 = vpop.f32.mrb[0].mxu0
        %v3576 = vpop.f32.mrb[0].mxu0
        %v3577 = vadd.f32 %v3416, %v3576
        %v3578 = vpop.f32.mrb[0].mxu0
        %3579 = vmatprep.mubr.bf16.mxu0 %v2674
        %3580 = vmatmul.mubr.bf16.gmra.mrb[0].mxu0 %v2673
        %v3581 = vpop.f32.mrb[0].mxu0
        %v3582 = vadd.f32 %v3421, %v3581
        %v3583 = vpop.f32.mrb[0].mxu0
        %v3584 = vpop.f32.mrb[0].mxu0
        %v3585 = vadd.f32 %v3424, %v3584
        %v3586 = vpop.f32.mrb[0].mxu0
        %3587 = vmatprep.mubr.bf16.mxu0 %v2683
        %3588 = vmatmul.mubr.bf16.gmra.mrb[0].mxu0 %v2682
        %v3589 = vpop.f32.mrb[0].mxu0
        %v3590 = vadd.f32 %v3429, %v3589
        %v3591 = vpop.f32.mrb[0].mxu0
        %v3592 = vpop.f32.mrb[0].mxu0
        %v3593 = vadd.f32 %v3432, %v3592
        %v3594 = vpop.f32.mrb[0].mxu0
        %3595 = vmatprep.mubr.bf16.mxu0 %v2692
        %3596 = vmatmul.mubr.bf16.gmra.mrb[0].mxu0 %v2691
        %v3597 = vpop.f32.mrb[0].mxu0
        %v3598 = vadd.f32 %v3437, %v3597
        %v3599 = vpop.f32.mrb[0].mxu0
        %v3600 = vpop.f32.mrb[0].mxu0
        %v3601 = vadd.f32 %v3440, %v3600
        %v3602 = vpop.f32.mrb[0].mxu0
        %3603 = vmatprep.mubr.bf16.mxu0 %v2701
        %3604 = vmatmul.mubr.bf16.gmra.mrb[0].mxu0 %v2700
        %v3605 = vpop.f32.mrb[0].mxu0
        %v3606 = vadd.f32 %v3445, %v3605
        %v3607 = vpop.f32.mrb[0].mxu0
        %v3608 = vpop.f32.mrb[0].mxu0
        %v3609 = vadd.f32 %v3448, %v3608
        %v3610 = vpop.f32.mrb[0].mxu0
        %3611 = vdwg.mxu0
        %3612 = vmatprep.subr.bf16.mxu0 0
        %3613 = vmatpush1.bf16.msra.mxu0 %v3178
        %3614 = vmatprep.subr.bf16.mxu0 0
        %3615 = vmatpush1.bf16.msra.mxu0 %v3179
        %3616 = vmatprep.subr.bf16.mxu0 0
        %3617 = vmatpush1.bf16.msra.mxu0 %v3180
        %3618 = vmatprep.subr.bf16.mxu0 0
        %3619 = vmatpush1.bf16.msra.mxu0 %v3181
        %3620 = vmatprep.subr.bf16.mxu0 0
        %3621 = vmatpush1.bf16.msra.mxu0 %v3182
        %3622 = vmatprep.subr.bf16.mxu0 0
        %3623 = vmatpush1.bf16.msra.mxu0 %v3183
        %3624 = vmatprep.subr.bf16.mxu0 0
        %3625 = vmatpush1.bf16.msra.mxu0 %v3184
        %3626 = vmatprep.subr.bf16.mxu0 0
        %3627 = vmatpush1.bf16.msra.mxu0 %v3185
        %3628 = vmatprep.subr.bf16.mxu0 0
        %3629 = vmatpush1.bf16.msra.mxu0 %v3186
        %3630 = vmatprep.subr.bf16.mxu0 0
        %3631 = vmatpush1.bf16.msra.mxu0 %v3187
        %3632 = vmatprep.subr.bf16.mxu0 0
        %3633 = vmatpush1.bf16.msra.mxu0 %v3188
        %3634 = vmatprep.subr.bf16.mxu0 0
        %3635 = vmatpush1.bf16.msra.mxu0 %v3189
        %3636 = vmatprep.subr.bf16.mxu0 0
        %3637 = vmatpush1.bf16.msra.mxu0 %v3190
        %3638 = vmatprep.subr.bf16.mxu0 0
        %3639 = vmatpush1.bf16.msra.mxu0 %v3191
        %3640 = vmatprep.subr.bf16.mxu0 0
        %3641 = vmatpush1.bf16.msra.mxu0 %v3192
        %3642 = vmatprep.subr.bf16.mxu0 0
        %3643 = vmatpush1.bf16.msra.mxu0 %v3193
        %3644 = vmatprep.mubr.bf16.mxu0 %v2568
        %3645 = vmatmul.mubr.bf16.gmra.mrb[0].mxu0 %v2567
        %v3646 = vpop.f32.mrb[0].mxu0
        %v3647 = vadd.f32 %v3486, %v3646
        %v3648 = vpop.f32.mrb[0].mxu0
        %v3649 = vpop.f32.mrb[0].mxu0
        %v3650 = vadd.f32 %v3489, %v3649
        %v3651 = vpop.f32.mrb[0].mxu0
        %3652 = vmatprep.mubr.bf16.mxu0 %v2577
        %3653 = vmatmul.mubr.bf16.gmra.mrb[0].mxu0 %v2576
        %v3654 = vpop.f32.mrb[0].mxu0
        %v3655 = vadd.f32 %v3494, %v3654
        %v3656 = vpop.f32.mrb[0].mxu0
        %v3657 = vpop.f32.mrb[0].mxu0
        %v3658 = vadd.f32 %v3497, %v3657
        %v3659 = vpop.f32.mrb[0].mxu0
        %3660 = vmatprep.mubr.bf16.mxu0 %v2586
        %3661 = vmatmul.mubr.bf16.gmra.mrb[0].mxu0 %v2585
        %v3662 = vpop.f32.mrb[0].mxu0
        %v3663 = vadd.f32 %v3502, %v3662
        %v3664 = vpop.f32.mrb[0].mxu0
        %v3665 = vpop.f32.mrb[0].mxu0
        %v3666 = vadd.f32 %v3505, %v3665
        %v3667 = vpop.f32.mrb[0].mxu0
        %3668 = vmatprep.mubr.bf16.mxu0 %v2595
        %3669 = vmatmul.mubr.bf16.gmra.mrb[0].mxu0 %v2594
        %v3670 = vpop.f32.mrb[0].mxu0
        %v3671 = vadd.f32 %v3510, %v3670
        %v3672 = vpop.f32.mrb[0].mxu0
        %v3673 = vpop.f32.mrb[0].mxu0
        %v3674 = vadd.f32 %v3513, %v3673
        %v3675 = vpop.f32.mrb[0].mxu0
        %3676 = vmatprep.mubr.bf16.mxu0 %v2604
        %3677 = vmatmul.mubr.bf16.gmra.mrb[0].mxu0 %v2603
        %v3678 = vpop.f32.mrb[0].mxu0
        %v3679 = vadd.f32 %v3518, %v3678
        %v3680 = vpop.f32.mrb[0].mxu0
        %v3681 = vpop.f32.mrb[0].mxu0
        %v3682 = vadd.f32 %v3521, %v3681
        %v3683 = vpop.f32.mrb[0].mxu0
        %3684 = vmatprep.mubr.bf16.mxu0 %v2613
        %3685 = vmatmul.mubr.bf16.gmra.mrb[0].mxu0 %v2612
        %v3686 = vpop.f32.mrb[0].mxu0
        %v3687 = vadd.f32 %v3526, %v3686
        %v3688 = vpop.f32.mrb[0].mxu0
        %v3689 = vpop.f32.mrb[0].mxu0
        %v3690 = vadd.f32 %v3529, %v3689
        %v3691 = vpop.f32.mrb[0].mxu0
        %3692 = vmatprep.mubr.bf16.mxu0 %v2622
        %3693 = vmatmul.mubr.bf16.gmra.mrb[0].mxu0 %v2621
        %v3694 = vpop.f32.mrb[0].mxu0
        %v3695 = vadd.f32 %v3534, %v3694
        %v3696 = vpop.f32.mrb[0].mxu0
        %v3697 = vpop.f32.mrb[0].mxu0
        %v3698 = vadd.f32 %v3537, %v3697
        %v3699 = vpop.f32.mrb[0].mxu0
        %3700 = vmatprep.mubr.bf16.mxu0 %v2631
        %3701 = vmatmul.mubr.bf16.gmra.mrb[0].mxu0 %v2630
        %v3702 = vpop.f32.mrb[0].mxu0
        %v3703 = vadd.f32 %v3542, %v3702
        %v3704 = vpop.f32.mrb[0].mxu0
        %v3705 = vpop.f32.mrb[0].mxu0
        %v3706 = vadd.f32 %v3545, %v3705
        %v3707 = vpop.f32.mrb[0].mxu0
        %3708 = vmatprep.mubr.bf16.mxu0 %v2640
        %3709 = vmatmul.mubr.bf16.gmra.mrb[0].mxu0 %v2639
        %v3710 = vpop.f32.mrb[0].mxu0
        %v3711 = vadd.f32 %v3550, %v3710
        %v3712 = vpop.f32.mrb[0].mxu0
        %v3713 = vpop.f32.mrb[0].mxu0
        %v3714 = vadd.f32 %v3553, %v3713
        %v3715 = vpop.f32.mrb[0].mxu0
        %3716 = vmatprep.mubr.bf16.mxu0 %v2649
        %3717 = vmatmul.mubr.bf16.gmra.mrb[0].mxu0 %v2648
        %v3718 = vpop.f32.mrb[0].mxu0
        %v3719 = vadd.f32 %v3558, %v3718
        %v3720 = vpop.f32.mrb[0].mxu0
        %v3721 = vpop.f32.mrb[0].mxu0
        %v3722 = vadd.f32 %v3561, %v3721
        %v3723 = vpop.f32.mrb[0].mxu0
        %3724 = vmatprep.mubr.bf16.mxu0 %v2658
        %3725 = vmatmul.mubr.bf16.gmra.mrb[0].mxu0 %v2657
        %v3726 = vpop.f32.mrb[0].mxu0
        %v3727 = vadd.f32 %v3566, %v3726
        %v3728 = vpop.f32.mrb[0].mxu0
        %v3729 = vpop.f32.mrb[0].mxu0
        %v3730 = vadd.f32 %v3569, %v3729
        %v3731 = vpop.f32.mrb[0].mxu0
        %3732 = vmatprep.mubr.bf16.mxu0 %v2667
        %3733 = vmatmul.mubr.bf16.gmra.mrb[0].mxu0 %v2666
        %v3734 = vpop.f32.mrb[0].mxu0
        %v3735 = vadd.f32 %v3574, %v3734
        %v3736 = vpop.f32.mrb[0].mxu0
        %v3737 = vpop.f32.mrb[0].mxu0
        %v3738 = vadd.f32 %v3577, %v3737
        %v3739 = vpop.f32.mrb[0].mxu0
        %3740 = vmatprep.mubr.bf16.mxu0 %v2676
        %3741 = vmatmul.mubr.bf16.gmra.mrb[0].mxu0 %v2675
        %v3742 = vpop.f32.mrb[0].mxu0
        %v3743 = vadd.f32 %v3582, %v3742
        %v3744 = vpop.f32.mrb[0].mxu0
        %v3745 = vpop.f32.mrb[0].mxu0
        %v3746 = vadd.f32 %v3585, %v3745
        %v3747 = vpop.f32.mrb[0].mxu0
        %3748 = vmatprep.mubr.bf16.mxu0 %v2685
        %3749 = vmatmul.mubr.bf16.gmra.mrb[0].mxu0 %v2684
        %v3750 = vpop.f32.mrb[0].mxu0
        %v3751 = vadd.f32 %v3590, %v3750
        %v3752 = vpop.f32.mrb[0].mxu0
        %v3753 = vpop.f32.mrb[0].mxu0
        %v3754 = vadd.f32 %v3593, %v3753
        %v3755 = vpop.f32.mrb[0].mxu0
        %3756 = vmatprep.mubr.bf16.mxu0 %v2694
        %3757 = vmatmul.mubr.bf16.gmra.mrb[0].mxu0 %v2693
        %v3758 = vpop.f32.mrb[0].mxu0
        %v3759 = vadd.f32 %v3598, %v3758
        %v3760 = vpop.f32.mrb[0].mxu0
        %v3761 = vpop.f32.mrb[0].mxu0
        %v3762 = vadd.f32 %v3601, %v3761
        %v3763 = vpop.f32.mrb[0].mxu0
        %3764 = vmatprep.mubr.bf16.mxu0 %v2703
        %3765 = vmatmul.mubr.bf16.gmra.mrb[0].mxu0 %v2702
        %v3766 = vpop.f32.mrb[0].mxu0
        %v3767 = vadd.f32 %v3606, %v3766
        %v3768 = vpop.f32.mrb[0].mxu0
        %v3769 = vpop.f32.mrb[0].mxu0
        %v3770 = vadd.f32 %v3609, %v3769
        %v3771 = vpop.f32.mrb[0].mxu0
        %3772 = vdwg.mxu0
        %3773 = vmatprep.subr.bf16.mxu0 0
        %3774 = vmatpush1.bf16.msra.mxu0 %v3194
        %3775 = vmatprep.subr.bf16.mxu0 0
        %3776 = vmatpush1.bf16.msra.mxu0 %v3195
        %3777 = vmatprep.subr.bf16.mxu0 0
        %3778 = vmatpush1.bf16.msra.mxu0 %v3196
        %3779 = vmatprep.subr.bf16.mxu0 0
        %3780 = vmatpush1.bf16.msra.mxu0 %v3197
        %3781 = vmatprep.subr.bf16.mxu0 0
        %3782 = vmatpush1.bf16.msra.mxu0 %v3198
        %3783 = vmatprep.subr.bf16.mxu0 0
        %3784 = vmatpush1.bf16.msra.mxu0 %v3199
        %3785 = vmatprep.subr.bf16.mxu0 0
        %3786 = vmatpush1.bf16.msra.mxu0 %v3200
        %3787 = vmatprep.subr.bf16.mxu0 0
        %3788 = vmatpush1.bf16.msra.mxu0 %v3201
        %3789 = vmatprep.subr.bf16.mxu0 0
        %3790 = vmatpush1.bf16.msra.mxu0 %v3202
        %3791 = vmatprep.subr.bf16.mxu0 0
        %3792 = vmatpush1.bf16.msra.mxu0 %v3203
        %3793 = vmatprep.subr.bf16.mxu0 0
        %3794 = vmatpush1.bf16.msra.mxu0 %v3204
        %3795 = vmatprep.subr.bf16.mxu0 0
        %3796 = vmatpush1.bf16.msra.mxu0 %v3205
        %3797 = vmatprep.subr.bf16.mxu0 0
        %3798 = vmatpush1.bf16.msra.mxu0 %v3206
        %3799 = vmatprep.subr.bf16.mxu0 0
        %3800 = vmatpush1.bf16.msra.mxu0 %v3207
        %3801 = vmatprep.subr.bf16.mxu0 0
        %3802 = vmatpush1.bf16.msra.mxu0 %v3208
        %3803 = vmatprep.subr.bf16.mxu0 0
        %3804 = vmatpush1.bf16.msra.mxu0 %v3209
        %3805 = vmatprep.mubr.bf16.mxu0 %v2570
        %3806 = vmatmul.mubr.bf16.gmra.mrb[0].mxu0 %v2569
        %v3807 = vpop.f32.mrb[0].mxu0
        %v3808 = vadd.f32 %v3647, %v3807
        %v3809 = vpop.f32.mrb[0].mxu0
        %v3810 = vpop.f32.mrb[0].mxu0
        %v3811 = vadd.f32 %v3650, %v3810
        %v3812 = vpop.f32.mrb[0].mxu0
        %3813 = vmatprep.mubr.bf16.mxu0 %v2579
        %3814 = vmatmul.mubr.bf16.gmra.mrb[0].mxu0 %v2578
        %v3815 = vpop.f32.mrb[0].mxu0
        %v3816 = vadd.f32 %v3655, %v3815
        %v3817 = vpop.f32.mrb[0].mxu0
        %v3818 = vpop.f32.mrb[0].mxu0
        %v3819 = vadd.f32 %v3658, %v3818
        %v3820 = vpop.f32.mrb[0].mxu0
        %3821 = vmatprep.mubr.bf16.mxu0 %v2588
        %3822 = vmatmul.mubr.bf16.gmra.mrb[0].mxu0 %v2587
        %v3823 = vpop.f32.mrb[0].mxu0
        %v3824 = vadd.f32 %v3663, %v3823
        %v3825 = vpop.f32.mrb[0].mxu0
        %v3826 = vpop.f32.mrb[0].mxu0
        %v3827 = vadd.f32 %v3666, %v3826
        %v3828 = vpop.f32.mrb[0].mxu0
        %3829 = vmatprep.mubr.bf16.mxu0 %v2597
        %3830 = vmatmul.mubr.bf16.gmra.mrb[0].mxu0 %v2596
        %v3831 = vpop.f32.mrb[0].mxu0
        %v3832 = vadd.f32 %v3671, %v3831
        %v3833 = vpop.f32.mrb[0].mxu0
        %v3834 = vpop.f32.mrb[0].mxu0
        %v3835 = vadd.f32 %v3674, %v3834
        %v3836 = vpop.f32.mrb[0].mxu0
        %3837 = vmatprep.mubr.bf16.mxu0 %v2606
        %3838 = vmatmul.mubr.bf16.gmra.mrb[0].mxu0 %v2605
        %v3839 = vpop.f32.mrb[0].mxu0
        %v3840 = vadd.f32 %v3679, %v3839
        %v3841 = vpop.f32.mrb[0].mxu0
        %v3842 = vpop.f32.mrb[0].mxu0
        %v3843 = vadd.f32 %v3682, %v3842
        %v3844 = vpop.f32.mrb[0].mxu0
        %3845 = vmatprep.mubr.bf16.mxu0 %v2615
        %3846 = vmatmul.mubr.bf16.gmra.mrb[0].mxu0 %v2614
        %v3847 = vpop.f32.mrb[0].mxu0
        %v3848 = vadd.f32 %v3687, %v3847
        %v3849 = vpop.f32.mrb[0].mxu0
        %v3850 = vpop.f32.mrb[0].mxu0
        %v3851 = vadd.f32 %v3690, %v3850
        %v3852 = vpop.f32.mrb[0].mxu0
        %3853 = vmatprep.mubr.bf16.mxu0 %v2624
        %3854 = vmatmul.mubr.bf16.gmra.mrb[0].mxu0 %v2623
        %v3855 = vpop.f32.mrb[0].mxu0
        %v3856 = vadd.f32 %v3695, %v3855
        %v3857 = vpop.f32.mrb[0].mxu0
        %v3858 = vpop.f32.mrb[0].mxu0
        %v3859 = vadd.f32 %v3698, %v3858
        %v3860 = vpop.f32.mrb[0].mxu0
        %3861 = vmatprep.mubr.bf16.mxu0 %v2633
        %3862 = vmatmul.mubr.bf16.gmra.mrb[0].mxu0 %v2632
        %v3863 = vpop.f32.mrb[0].mxu0
        %v3864 = vadd.f32 %v3703, %v3863
        %v3865 = vpop.f32.mrb[0].mxu0
        %v3866 = vpop.f32.mrb[0].mxu0
        %v3867 = vadd.f32 %v3706, %v3866
        %v3868 = vpop.f32.mrb[0].mxu0
        %3869 = vmatprep.mubr.bf16.mxu0 %v2642
        %3870 = vmatmul.mubr.bf16.gmra.mrb[0].mxu0 %v2641
        %v3871 = vpop.f32.mrb[0].mxu0
        %v3872 = vadd.f32 %v3711, %v3871
        %v3873 = vpop.f32.mrb[0].mxu0
        %v3874 = vpop.f32.mrb[0].mxu0
        %v3875 = vadd.f32 %v3714, %v3874
        %v3876 = vpop.f32.mrb[0].mxu0
        %3877 = vmatprep.mubr.bf16.mxu0 %v2651
        %3878 = vmatmul.mubr.bf16.gmra.mrb[0].mxu0 %v2650
        %v3879 = vpop.f32.mrb[0].mxu0
        %v3880 = vadd.f32 %v3719, %v3879
        %v3881 = vpop.f32.mrb[0].mxu0
        %v3882 = vpop.f32.mrb[0].mxu0
        %v3883 = vadd.f32 %v3722, %v3882
        %v3884 = vpop.f32.mrb[0].mxu0
        %3885 = vmatprep.mubr.bf16.mxu0 %v2660
        %3886 = vmatmul.mubr.bf16.gmra.mrb[0].mxu0 %v2659
        %v3887 = vpop.f32.mrb[0].mxu0
        %v3888 = vadd.f32 %v3727, %v3887
        %v3889 = vpop.f32.mrb[0].mxu0
        %v3890 = vpop.f32.mrb[0].mxu0
        %v3891 = vadd.f32 %v3730, %v3890
        %v3892 = vpop.f32.mrb[0].mxu0
        %3893 = vmatprep.mubr.bf16.mxu0 %v2669
        %3894 = vmatmul.mubr.bf16.gmra.mrb[0].mxu0 %v2668
        %v3895 = vpop.f32.mrb[0].mxu0
        %v3896 = vadd.f32 %v3735, %v3895
        %v3897 = vpop.f32.mrb[0].mxu0
        %v3898 = vpop.f32.mrb[0].mxu0
        %v3899 = vadd.f32 %v3738, %v3898
        %v3900 = vpop.f32.mrb[0].mxu0
        %3901 = vmatprep.mubr.bf16.mxu0 %v2678
        %3902 = vmatmul.mubr.bf16.gmra.mrb[0].mxu0 %v2677
        %v3903 = vpop.f32.mrb[0].mxu0
        %v3904 = vadd.f32 %v3743, %v3903
        %v3905 = vpop.f32.mrb[0].mxu0
        %v3906 = vpop.f32.mrb[0].mxu0
        %v3907 = vadd.f32 %v3746, %v3906
        %v3908 = vpop.f32.mrb[0].mxu0
        %3909 = vmatprep.mubr.bf16.mxu0 %v2687
        %3910 = vmatmul.mubr.bf16.gmra.mrb[0].mxu0 %v2686
        %v3911 = vpop.f32.mrb[0].mxu0
        %v3912 = vadd.f32 %v3751, %v3911
        %v3913 = vpop.f32.mrb[0].mxu0
        %v3914 = vpop.f32.mrb[0].mxu0
        %v3915 = vadd.f32 %v3754, %v3914
        %v3916 = vpop.f32.mrb[0].mxu0
        %3917 = vmatprep.mubr.bf16.mxu0 %v2696
        %3918 = vmatmul.mubr.bf16.gmra.mrb[0].mxu0 %v2695
        %v3919 = vpop.f32.mrb[0].mxu0
        %v3920 = vadd.f32 %v3759, %v3919
        %v3921 = vpop.f32.mrb[0].mxu0
        %v3922 = vpop.f32.mrb[0].mxu0
        %v3923 = vadd.f32 %v3762, %v3922
        %v3924 = vpop.f32.mrb[0].mxu0
        %3925 = vmatprep.mubr.bf16.mxu0 %v2705
        %3926 = vmatmul.mubr.bf16.gmra.mrb[0].mxu0 %v2704
        %v3927 = vpop.f32.mrb[0].mxu0
        %v3928 = vadd.f32 %v3767, %v3927
        %v3929 = vpop.f32.mrb[0].mxu0
        %v3930 = vpop.f32.mrb[0].mxu0
        %v3931 = vadd.f32 %v3770, %v3930
        %v3932 = vpop.f32.mrb[0].mxu0
        %3933 = vdwg.mxu0
        %3934 = vmatprep.subr.bf16.mxu0 0
        %3935 = vmatpush1.bf16.msra.mxu0 %v3210
        %3936 = vmatprep.subr.bf16.mxu0 0
        %3937 = vmatpush1.bf16.msra.mxu0 %v3211
        %3938 = vmatprep.subr.bf16.mxu0 0
        %3939 = vmatpush1.bf16.msra.mxu0 %v3212
        %3940 = vmatprep.subr.bf16.mxu0 0
        %3941 = vmatpush1.bf16.msra.mxu0 %v3213
        %3942 = vmatprep.subr.bf16.mxu0 0
        %3943 = vmatpush1.bf16.msra.mxu0 %v3214
        %3944 = vmatprep.subr.bf16.mxu0 0
        %3945 = vmatpush1.bf16.msra.mxu0 %v3215
        %3946 = vmatprep.subr.bf16.mxu0 0
        %3947 = vmatpush1.bf16.msra.mxu0 %v3216
        %3948 = vmatprep.subr.bf16.mxu0 0
        %3949 = vmatpush1.bf16.msra.mxu0 %v3217
        %3950 = vmatprep.subr.bf16.mxu0 0
        %3951 = vmatpush1.bf16.msra.mxu0 0
        %3952 = vmatprep.subr.bf16.mxu0 0
        %3953 = vmatpush1.bf16.msra.mxu0 0
        %3954 = vmatprep.subr.bf16.mxu0 0
        %3955 = vmatpush1.bf16.msra.mxu0 0
        %3956 = vmatprep.subr.bf16.mxu0 0
        %3957 = vmatpush1.bf16.msra.mxu0 0
        %3958 = vmatprep.subr.bf16.mxu0 0
        %3959 = vmatpush1.bf16.msra.mxu0 0
        %3960 = vmatprep.subr.bf16.mxu0 0
        %3961 = vmatpush1.bf16.msra.mxu0 0
        %3962 = vmatprep.subr.bf16.mxu0 0
        %3963 = vmatpush1.bf16.msra.mxu0 0
        %3964 = vmatprep.subr.bf16.mxu0 0
        %3965 = vmatpush1.bf16.msra.mxu0 0
        %3966 = vmatprep.mubr.bf16.mxu0 0
        %3967 = vmatmul.mubr.bf16.gmra.mrb[0].mxu0 %v2571
        %v3968 = vpop.f32.mrb[0].mxu0
        %v3969 = vadd.f32 %v3808, %v3968
        %v3970 = vpop.f32.mrb[0].mxu0
        %v3971 = vpop.f32.mrb[0].mxu0
        %v3972 = vadd.f32 %v3811, %v3971
        %v3973 = vpop.f32.mrb[0].mxu0
        %3974 = vmatprep.mubr.bf16.mxu0 0
        %3975 = vmatmul.mubr.bf16.gmra.mrb[0].mxu0 %v2580
        %v3976 = vpop.f32.mrb[0].mxu0
        %v3977 = vadd.f32 %v3816, %v3976
        %v3978 = vpop.f32.mrb[0].mxu0
        %v3979 = vpop.f32.mrb[0].mxu0
        %v3980 = vadd.f32 %v3819, %v3979
        %v3981 = vpop.f32.mrb[0].mxu0
        %3982 = vmatprep.mubr.bf16.mxu0 0
        %3983 = vmatmul.mubr.bf16.gmra.mrb[0].mxu0 %v2589
        %v3984 = vpop.f32.mrb[0].mxu0
        %v3985 = vadd.f32 %v3824, %v3984
        %v3986 = vpop.f32.mrb[0].mxu0
        %v3987 = vpop.f32.mrb[0].mxu0
        %v3988 = vadd.f32 %v3827, %v3987
        %v3989 = vpop.f32.mrb[0].mxu0
        %3990 = vmatprep.mubr.bf16.mxu0 0
        %3991 = vmatmul.mubr.bf16.gmra.mrb[0].mxu0 %v2598
        %v3992 = vpop.f32.mrb[0].mxu0
        %v3993 = vadd.f32 %v3832, %v3992
        %v3994 = vpop.f32.mrb[0].mxu0
        %v3995 = vpop.f32.mrb[0].mxu0
        %v3996 = vadd.f32 %v3835, %v3995
        %v3997 = vpop.f32.mrb[0].mxu0
        %3998 = vmatprep.mubr.bf16.mxu0 0
        %3999 = vmatmul.mubr.bf16.gmra.mrb[0].mxu0 %v2607
        %v4000 = vpop.f32.mrb[0].mxu0
        %v4001 = vadd.f32 %v3840, %v4000
        %v4002 = vpop.f32.mrb[0].mxu0
        %v4003 = vpop.f32.mrb[0].mxu0
        %v4004 = vadd.f32 %v3843, %v4003
        %v4005 = vpop.f32.mrb[0].mxu0
        %4006 = vmatprep.mubr.bf16.mxu0 0
        %4007 = vmatmul.mubr.bf16.gmra.mrb[0].mxu0 %v2616
        %v4008 = vpop.f32.mrb[0].mxu0
        %v4009 = vadd.f32 %v3848, %v4008
        %v4010 = vpop.f32.mrb[0].mxu0
        %v4011 = vpop.f32.mrb[0].mxu0
        %v4012 = vadd.f32 %v3851, %v4011
        %v4013 = vpop.f32.mrb[0].mxu0
        %4014 = vmatprep.mubr.bf16.mxu0 0
        %4015 = vmatmul.mubr.bf16.gmra.mrb[0].mxu0 %v2625
        %v4016 = vpop.f32.mrb[0].mxu0
        %v4017 = vadd.f32 %v3856, %v4016
        %v4018 = vpop.f32.mrb[0].mxu0
        %v4019 = vpop.f32.mrb[0].mxu0
        %v4020 = vadd.f32 %v3859, %v4019
        %v4021 = vpop.f32.mrb[0].mxu0
        %4022 = vmatprep.mubr.bf16.mxu0 0
        %4023 = vmatmul.mubr.bf16.gmra.mrb[0].mxu0 %v2634
        %v4024 = vpop.f32.mrb[0].mxu0
        %v4025 = vadd.f32 %v3864, %v4024
        %v4026 = vpop.f32.mrb[0].mxu0
        %v4027 = vpop.f32.mrb[0].mxu0
        %v4028 = vadd.f32 %v3867, %v4027
        %v4029 = vpop.f32.mrb[0].mxu0
        %4030 = vmatprep.mubr.bf16.mxu0 0
        %4031 = vmatmul.mubr.bf16.gmra.mrb[0].mxu0 %v2643
        %v4032 = vpop.f32.mrb[0].mxu0
        %v4033 = vadd.f32 %v3872, %v4032
        %v4034 = vpop.f32.mrb[0].mxu0
        %v4035 = vpop.f32.mrb[0].mxu0
        %v4036 = vadd.f32 %v3875, %v4035
        %v4037 = vpop.f32.mrb[0].mxu0
        %4038 = vmatprep.mubr.bf16.mxu0 0
        %4039 = vmatmul.mubr.bf16.gmra.mrb[0].mxu0 %v2652
        %v4040 = vpop.f32.mrb[0].mxu0
        %v4041 = vadd.f32 %v3880, %v4040
        %v4042 = vpop.f32.mrb[0].mxu0
        %v4043 = vpop.f32.mrb[0].mxu0
        %v4044 = vadd.f32 %v3883, %v4043
        %v4045 = vpop.f32.mrb[0].mxu0
        %4046 = vmatprep.mubr.bf16.mxu0 0
        %4047 = vmatmul.mubr.bf16.gmra.mrb[0].mxu0 %v2661
        %v4048 = vpop.f32.mrb[0].mxu0
        %v4049 = vadd.f32 %v3888, %v4048
        %v4050 = vpop.f32.mrb[0].mxu0
        %v4051 = vpop.f32.mrb[0].mxu0
        %v4052 = vadd.f32 %v3891, %v4051
        %v4053 = vpop.f32.mrb[0].mxu0
        %4054 = vmatprep.mubr.bf16.mxu0 0
        %4055 = vmatmul.mubr.bf16.gmra.mrb[0].mxu0 %v2670
        %v4056 = vpop.f32.mrb[0].mxu0
        %v4057 = vadd.f32 %v3896, %v4056
        %v4058 = vpop.f32.mrb[0].mxu0
        %v4059 = vpop.f32.mrb[0].mxu0
        %v4060 = vadd.f32 %v3899, %v4059
        %v4061 = vpop.f32.mrb[0].mxu0
        %4062 = vmatprep.mubr.bf16.mxu0 0
        %4063 = vmatmul.mubr.bf16.gmra.mrb[0].mxu0 %v2679
        %v4064 = vpop.f32.mrb[0].mxu0
        %v4065 = vadd.f32 %v3904, %v4064
        %v4066 = vpop.f32.mrb[0].mxu0
        %v4067 = vpop.f32.mrb[0].mxu0
        %v4068 = vadd.f32 %v3907, %v4067
        %v4069 = vpop.f32.mrb[0].mxu0
        %4070 = vmatprep.mubr.bf16.mxu0 0
        %4071 = vmatmul.mubr.bf16.gmra.mrb[0].mxu0 %v2688
        %v4072 = vpop.f32.mrb[0].mxu0
        %v4073 = vadd.f32 %v3912, %v4072
        %v4074 = vpop.f32.mrb[0].mxu0
        %v4075 = vpop.f32.mrb[0].mxu0
        %v4076 = vadd.f32 %v3915, %v4075
        %v4077 = vpop.f32.mrb[0].mxu0
        %4078 = vmatprep.mubr.bf16.mxu0 0
        %4079 = vmatmul.mubr.bf16.gmra.mrb[0].mxu0 %v2697
        %v4080 = vpop.f32.mrb[0].mxu0
        %v4081 = vadd.f32 %v3920, %v4080
        %v4082 = vpop.f32.mrb[0].mxu0
        %v4083 = vpop.f32.mrb[0].mxu0
        %v4084 = vadd.f32 %v3923, %v4083
        %v4085 = vpop.f32.mrb[0].mxu0
        %4086 = vmatprep.mubr.bf16.mxu0 0
        %4087 = vmatmul.mubr.bf16.gmra.mrb[0].mxu0 %v2706
        %v4088 = vpop.f32.mrb[0].mxu0
        %v4089 = vadd.f32 %v3928, %v4088
        %v4090 = vpop.f32.mrb[0].mxu0
        %v4091 = vpop.f32.mrb[0].mxu0
        %v4092 = vadd.f32 %v3931, %v4091
        %v4093 = vpop.f32.mrb[0].mxu0
        %4094 = vdwg.mxu0
        %v4095 = vmax.f32 %v3969, 0.0
        %v4096 = vmax.f32 %v3972, 0.0
        %v4097 = vmax.f32 %v3977, 0.0
        %v4098 = vmax.f32 %v3980, 0.0
        %v4099 = vmax.f32 %v3985, 0.0
        %v4100 = vmax.f32 %v3988, 0.0
        %v4101 = vmax.f32 %v3993, 0.0
        %v4102 = vmax.f32 %v3996, 0.0
        %v4103 = vmax.f32 %v4001, 0.0
        %v4104 = vmax.f32 %v4004, 0.0
        %v4105 = vmax.f32 %v4009, 0.0
        %v4106 = vmax.f32 %v4012, 0.0
        %v4107 = vmax.f32 %v4017, 0.0
        %v4108 = vmax.f32 %v4020, 0.0
        %v4109 = vmax.f32 %v4025, 0.0
        %v4110 = vmax.f32 %v4028, 0.0
        %v4111 = vmax.f32 %v4033, 0.0
        %v4112 = vmax.f32 %v4036, 0.0
        %v4113 = vmax.f32 %v4041, 0.0
        %v4114 = vmax.f32 %v4044, 0.0
        %v4115 = vmax.f32 %v4049, 0.0
        %v4116 = vmax.f32 %v4052, 0.0
        %v4117 = vmax.f32 %v4057, 0.0
        %v4118 = vmax.f32 %v4060, 0.0
        %v4119 = vmax.f32 %v4065, 0.0
        %v4120 = vmax.f32 %v4068, 0.0
        %v4121 = vmax.f32 %v4073, 0.0
        %v4122 = vmax.f32 %v4076, 0.0
        %v4123 = vmax.f32 %v4081, 0.0
        %v4124 = vmax.f32 %v4084, 0.0
        %v4125 = vmax.f32 %v4089, 0.0
        %v4126 = vmax.f32 %v4092, 0.0
        %v4127 = vpack.c.bf16 %v4096, %v4095
        %v4128 = vpack.c.bf16 %v4098, %v4097
        %v4129 = vpack.c.bf16 %v4100, %v4099
        %v4130 = vpack.c.bf16 %v4102, %v4101
        %v4131 = vpack.c.bf16 %v4104, %v4103
        %v4132 = vpack.c.bf16 %v4106, %v4105
        %v4133 = vpack.c.bf16 %v4108, %v4107
        %v4134 = vpack.c.bf16 %v4110, %v4109
        %v4135 = vpack.c.bf16 %v4112, %v4111
        %v4136 = vpack.c.bf16 %v4114, %v4113
        %v4137 = vpack.c.bf16 %v4116, %v4115
        %v4138 = vpack.c.bf16 %v4118, %v4117
        %v4139 = vpack.c.bf16 %v4120, %v4119
        %v4140 = vpack.c.bf16 %v4122, %v4121
        %v4141 = vpack.c.bf16 %v4124, %v4123
        %v4142 = vpack.c.bf16 %v4126, %v4125
        %v4143 = vld [vmem:[#allocation11] sm:$0xf]
        %v4144 = vld [vmem:[#allocation11 + $0x4] sm:$0xf]
        %v4145 = vld [vmem:[#allocation11 + $0x8] sm:$0xf]
        %v4146 = vld [vmem:[#allocation11 + $0xc] sm:$0xf]
        %v4147 = vld [vmem:[#allocation11 + $0x10] sm:$0xf]
        %v4148 = vld [vmem:[#allocation11 + $0x14] sm:$0xf]
        %v4149 = vld [vmem:[#allocation11 + $0x18] sm:$0xf]
        %v4150 = vld [vmem:[#allocation11 + $0x1c] sm:$0xf]
        %v4151 = vld [vmem:[#allocation11 + $0x20] sm:$0xf]
        %v4152 = vld [vmem:[#allocation11 + $0x24] sm:$0xf]
        %v4153 = vld [vmem:[#allocation11 + $0x28] sm:$0xf]
        %v4154 = vld [vmem:[#allocation11 + $0x2c] sm:$0xf]
        %v4155 = vld [vmem:[#allocation11 + $0x30] sm:$0xf]
        %v4156 = vld [vmem:[#allocation11 + $0x34] sm:$0xf]
        %v4157 = vld [vmem:[#allocation11 + $0x38] sm:$0xf]
        %v4158 = vld [vmem:[#allocation11 + $0x3c] sm:$0xf]
        %v4159 = vld [vmem:[%s6] sm:$0x1]
        %v4161 = vlaneseq
        %v4162 = vshrl.u32 %v4161, 7
        %v4163 = vsub.s32 0, %v4162
        %v4164 = vrot.slane %v4159, %v4163
        %v4182 = vunpack.c.l.b16 %v4143
        %v4183 = vunpack.c.l.b16 %v4144
        %v4184 = vunpack.c.l.b16 %v4145
        %v4185 = vunpack.c.l.b16 %v4146
        %v4186 = vunpack.c.l.b16 %v4147
        %v4187 = vunpack.c.l.b16 %v4148
        %v4188 = vunpack.c.l.b16 %v4149
        %v4189 = vunpack.c.l.b16 %v4150
        %v4190 = vunpack.c.l.b16 %v4151
        %v4191 = vunpack.c.l.b16 %v4152
        %v4192 = vunpack.c.l.b16 %v4153
        %v4193 = vunpack.c.l.b16 %v4154
        %v4194 = vunpack.c.l.b16 %v4155
        %v4195 = vunpack.c.l.b16 %v4156
        %v4196 = vunpack.c.l.b16 %v4157
        %v4197 = vunpack.c.l.b16 %v4158
        %v4198 = vpack.c.b16 %v4183, %v4182
        %v4199 = vpack.c.b16 %v4185, %v4184
        %v4200 = vpack.c.b16 %v4187, %v4186
        %v4201 = vpack.c.b16 %v4189, %v4188
        %v4202 = vpack.c.b16 %v4191, %v4190
        %v4203 = vpack.c.b16 %v4193, %v4192
        %v4204 = vpack.c.b16 %v4195, %v4194
        %v4205 = vpack.c.b16 %v4197, %v4196
        %4214 = vmatprep.subr.bf16.mxu0 0
        %4215 = vmatpush1.bf16.msra.mxu0 %v4198
        %4216 = vmatprep.subr.bf16.mxu0 0
        %4217 = vmatpush1.bf16.msra.mxu0 %v4199
        %4218 = vmatprep.subr.bf16.mxu0 0
        %4219 = vmatpush1.bf16.msra.mxu0 %v4200
        %4220 = vmatprep.subr.bf16.mxu0 0
        %4221 = vmatpush1.bf16.msra.mxu0 %v4201
        %4222 = vmatprep.subr.bf16.mxu0 0
        %4223 = vmatpush1.bf16.msra.mxu0 %v4202
        %4224 = vmatprep.subr.bf16.mxu0 0
        %4225 = vmatpush1.bf16.msra.mxu0 %v4203
        %4226 = vmatprep.subr.bf16.mxu0 0
        %4227 = vmatpush1.bf16.msra.mxu0 %v4204
        %4228 = vmatprep.subr.bf16.mxu0 0
        %4229 = vmatpush1.bf16.msra.mxu0 %v4205
        %4230 = vmatprep.subr.bf16.mxu0 0
        %4231 = vmatpush1.bf16.msra.mxu0 0
        %4232 = vmatprep.subr.bf16.mxu0 0
        %4233 = vmatpush1.bf16.msra.mxu0 0
        %4234 = vmatprep.subr.bf16.mxu0 0
        %4235 = vmatpush1.bf16.msra.mxu0 0
        %4236 = vmatprep.subr.bf16.mxu0 0
        %4237 = vmatpush1.bf16.msra.mxu0 0
        %4238 = vmatprep.subr.bf16.mxu0 0
        %4239 = vmatpush1.bf16.msra.mxu0 0
        %4240 = vmatprep.subr.bf16.mxu0 0
        %4241 = vmatpush1.bf16.msra.mxu0 0
        %4242 = vmatprep.subr.bf16.mxu0 0
        %4243 = vmatpush1.bf16.msra.mxu0 0
        %4244 = vmatprep.subr.bf16.mxu0 0
        %4245 = vmatpush1.bf16.msra.mxu0 0
        %4246 = vmatprep.mubr.bf16.mxu0 0
        %4247 = vmatmul.mubr.bf16.gmra.mrb[0].mxu0 %v4127
        %v4248 = vpop.f32.mrb[0].mxu0
        %v4249 = vadd.f32 %v4164, %v4248
        %v4250 = vpop.f32.mrb[0].mxu0
        %v4251 = vpop.f32.mrb[0].mxu0
        %v4252 = vadd.f32 %v4164, %v4251
        %v4253 = vpop.f32.mrb[0].mxu0
        %4254 = vmatprep.mubr.bf16.mxu0 0
        %4255 = vmatmul.mubr.bf16.gmra.mrb[0].mxu0 %v4128
        %v4256 = vpop.f32.mrb[0].mxu0
        %v4257 = vadd.f32 %v4164, %v4256
        %v4258 = vpop.f32.mrb[0].mxu0
        %v4259 = vpop.f32.mrb[0].mxu0
        %v4260 = vadd.f32 %v4164, %v4259
        %v4261 = vpop.f32.mrb[0].mxu0
        %4262 = vmatprep.mubr.bf16.mxu0 0
        %4263 = vmatmul.mubr.bf16.gmra.mrb[0].mxu0 %v4129
        %v4264 = vpop.f32.mrb[0].mxu0
        %v4265 = vadd.f32 %v4164, %v4264
        %v4266 = vpop.f32.mrb[0].mxu0
        %v4267 = vpop.f32.mrb[0].mxu0
        %v4268 = vadd.f32 %v4164, %v4267
        %v4269 = vpop.f32.mrb[0].mxu0
        %4270 = vmatprep.mubr.bf16.mxu0 0
        %4271 = vmatmul.mubr.bf16.gmra.mrb[0].mxu0 %v4130
        %v4272 = vpop.f32.mrb[0].mxu0
        %v4273 = vadd.f32 %v4164, %v4272
        %v4274 = vpop.f32.mrb[0].mxu0
        %v4275 = vpop.f32.mrb[0].mxu0
        %v4276 = vadd.f32 %v4164, %v4275
        %v4277 = vpop.f32.mrb[0].mxu0
        %4278 = vmatprep.mubr.bf16.mxu0 0
        %4279 = vmatmul.mubr.bf16.gmra.mrb[0].mxu0 %v4131
        %v4280 = vpop.f32.mrb[0].mxu0
        %v4281 = vadd.f32 %v4164, %v4280
        %v4282 = vpop.f32.mrb[0].mxu0
        %v4283 = vpop.f32.mrb[0].mxu0
        %v4284 = vadd.f32 %v4164, %v4283
        %v4285 = vpop.f32.mrb[0].mxu0
        %4286 = vmatprep.mubr.bf16.mxu0 0
        %4287 = vmatmul.mubr.bf16.gmra.mrb[0].mxu0 %v4132
        %v4288 = vpop.f32.mrb[0].mxu0
        %v4289 = vadd.f32 %v4164, %v4288
        %v4290 = vpop.f32.mrb[0].mxu0
        %v4291 = vpop.f32.mrb[0].mxu0
        %v4292 = vadd.f32 %v4164, %v4291
        %v4293 = vpop.f32.mrb[0].mxu0
        %4294 = vmatprep.mubr.bf16.mxu0 0
        %4295 = vmatmul.mubr.bf16.gmra.mrb[0].mxu0 %v4133
        %v4296 = vpop.f32.mrb[0].mxu0
        %v4297 = vadd.f32 %v4164, %v4296
        %v4298 = vpop.f32.mrb[0].mxu0
        %v4299 = vpop.f32.mrb[0].mxu0
        %v4300 = vadd.f32 %v4164, %v4299
        %v4301 = vpop.f32.mrb[0].mxu0
        %4302 = vmatprep.mubr.bf16.mxu0 0
        %4303 = vmatmul.mubr.bf16.gmra.mrb[0].mxu0 %v4134
        %v4304 = vpop.f32.mrb[0].mxu0
        %v4305 = vadd.f32 %v4164, %v4304
        %v4306 = vpop.f32.mrb[0].mxu0
        %v4307 = vpop.f32.mrb[0].mxu0
        %v4308 = vadd.f32 %v4164, %v4307
        %v4309 = vpop.f32.mrb[0].mxu0
        %4310 = vmatprep.mubr.bf16.mxu0 0
        %4311 = vmatmul.mubr.bf16.gmra.mrb[0].mxu0 %v4135
        %v4312 = vpop.f32.mrb[0].mxu0
        %v4313 = vadd.f32 %v4164, %v4312
        %v4314 = vpop.f32.mrb[0].mxu0
        %v4315 = vpop.f32.mrb[0].mxu0
        %v4316 = vadd.f32 %v4164, %v4315
        %v4317 = vpop.f32.mrb[0].mxu0
        %4318 = vmatprep.mubr.bf16.mxu0 0
        %4319 = vmatmul.mubr.bf16.gmra.mrb[0].mxu0 %v4136
        %v4320 = vpop.f32.mrb[0].mxu0
        %v4321 = vadd.f32 %v4164, %v4320
        %v4322 = vpop.f32.mrb[0].mxu0
        %v4323 = vpop.f32.mrb[0].mxu0
        %v4324 = vadd.f32 %v4164, %v4323
        %v4325 = vpop.f32.mrb[0].mxu0
        %4326 = vmatprep.mubr.bf16.mxu0 0
        %4327 = vmatmul.mubr.bf16.gmra.mrb[0].mxu0 %v4137
        %v4328 = vpop.f32.mrb[0].mxu0
        %v4329 = vadd.f32 %v4164, %v4328
        %v4330 = vpop.f32.mrb[0].mxu0
        %v4331 = vpop.f32.mrb[0].mxu0
        %v4332 = vadd.f32 %v4164, %v4331
        %v4333 = vpop.f32.mrb[0].mxu0
        %4334 = vmatprep.mubr.bf16.mxu0 0
        %4335 = vmatmul.mubr.bf16.gmra.mrb[0].mxu0 %v4138
        %v4336 = vpop.f32.mrb[0].mxu0
        %v4337 = vadd.f32 %v4164, %v4336
        %v4338 = vpop.f32.mrb[0].mxu0
        %v4339 = vpop.f32.mrb[0].mxu0
        %v4340 = vadd.f32 %v4164, %v4339
        %v4341 = vpop.f32.mrb[0].mxu0
        %4342 = vmatprep.mubr.bf16.mxu0 0
        %4343 = vmatmul.mubr.bf16.gmra.mrb[0].mxu0 %v4139
        %v4344 = vpop.f32.mrb[0].mxu0
        %v4345 = vadd.f32 %v4164, %v4344
        %v4346 = vpop.f32.mrb[0].mxu0
        %v4347 = vpop.f32.mrb[0].mxu0
        %v4348 = vadd.f32 %v4164, %v4347
        %v4349 = vpop.f32.mrb[0].mxu0
        %4350 = vmatprep.mubr.bf16.mxu0 0
        %4351 = vmatmul.mubr.bf16.gmra.mrb[0].mxu0 %v4140
        %v4352 = vpop.f32.mrb[0].mxu0
        %v4353 = vadd.f32 %v4164, %v4352
        %v4354 = vpop.f32.mrb[0].mxu0
        %v4355 = vpop.f32.mrb[0].mxu0
        %v4356 = vadd.f32 %v4164, %v4355
        %v4357 = vpop.f32.mrb[0].mxu0
        %4358 = vmatprep.mubr.bf16.mxu0 0
        %4359 = vmatmul.mubr.bf16.gmra.mrb[0].mxu0 %v4141
        %v4360 = vpop.f32.mrb[0].mxu0
        %v4361 = vadd.f32 %v4164, %v4360
        %v4362 = vpop.f32.mrb[0].mxu0
        %v4363 = vpop.f32.mrb[0].mxu0
        %v4364 = vadd.f32 %v4164, %v4363
        %v4365 = vpop.f32.mrb[0].mxu0
        %4366 = vmatprep.mubr.bf16.mxu0 0
        %4367 = vmatmul.mubr.bf16.gmra.mrb[0].mxu0 %v4142
        %v4368 = vpop.f32.mrb[0].mxu0
        %v4369 = vadd.f32 %v4164, %v4368
        %v4370 = vpop.f32.mrb[0].mxu0
        %v4371 = vpop.f32.mrb[0].mxu0
        %v4372 = vadd.f32 %v4164, %v4371
        %v4373 = vpop.f32.mrb[0].mxu0
        %4374 = vdwg.mxu0
        %v4375 = vadd.f32 %v4249, %v440
        %v4376 = vadd.f32 %v4252, %v441
        %v4377 = vadd.f32 %v4257, %v442
        %v4378 = vadd.f32 %v4260, %v443
        %v4379 = vadd.f32 %v4265, %v444
        %v4380 = vadd.f32 %v4268, %v445
        %v4381 = vadd.f32 %v4273, %v446
        %v4382 = vadd.f32 %v4276, %v447
        %v4383 = vadd.f32 %v4281, %v448
        %v4384 = vadd.f32 %v4284, %v449
        %v4385 = vadd.f32 %v4289, %v450
        %v4386 = vadd.f32 %v4292, %v451
        %v4387 = vadd.f32 %v4297, %v452
        %v4388 = vadd.f32 %v4300, %v453
        %v4389 = vadd.f32 %v4305, %v454
        %v4390 = vadd.f32 %v4308, %v455
        %v4391 = vadd.f32 %v4313, %v456
        %v4392 = vadd.f32 %v4316, %v457
        %v4393 = vadd.f32 %v4321, %v458
        %v4394 = vadd.f32 %v4324, %v459
        %v4395 = vadd.f32 %v4329, %v460
        %v4396 = vadd.f32 %v4332, %v461
        %v4397 = vadd.f32 %v4337, %v462
        %v4398 = vadd.f32 %v4340, %v463
        %v4399 = vadd.f32 %v4345, %v464
        %v4400 = vadd.f32 %v4348, %v465
        %v4401 = vadd.f32 %v4353, %v466
        %v4402 = vadd.f32 %v4356, %v467
        %v4403 = vadd.f32 %v4361, %v468
        %v4404 = vadd.f32 %v4364, %v469
        %v4405 = vadd.f32 %v4369, %v470
        %v4406 = vadd.f32 %v4372, %v471
        %v4407 = vmax.f32 %v4375, 0.0
        %v4408 = vmax.f32 %v4376, 0.0
        %v4409 = vmax.f32 %v4377, 0.0
        %v4410 = vmax.f32 %v4378, 0.0
        %v4411 = vmax.f32 %v4379, 0.0
        %v4412 = vmax.f32 %v4380, 0.0
        %v4413 = vmax.f32 %v4381, 0.0
        %v4414 = vmax.f32 %v4382, 0.0
        %v4415 = vmax.f32 %v4383, 0.0
        %v4416 = vmax.f32 %v4384, 0.0
        %v4417 = vmax.f32 %v4385, 0.0
        %v4418 = vmax.f32 %v4386, 0.0
        %v4419 = vmax.f32 %v4387, 0.0
        %v4420 = vmax.f32 %v4388, 0.0
        %v4421 = vmax.f32 %v4389, 0.0
        %v4422 = vmax.f32 %v4390, 0.0
        %v4423 = vmax.f32 %v4391, 0.0
        %v4424 = vmax.f32 %v4392, 0.0
        %v4425 = vmax.f32 %v4393, 0.0
        %v4426 = vmax.f32 %v4394, 0.0
        %v4427 = vmax.f32 %v4395, 0.0
        %v4428 = vmax.f32 %v4396, 0.0
        %v4429 = vmax.f32 %v4397, 0.0
        %v4430 = vmax.f32 %v4398, 0.0
        %v4431 = vmax.f32 %v4399, 0.0
        %v4432 = vmax.f32 %v4400, 0.0
        %v4433 = vmax.f32 %v4401, 0.0
        %v4434 = vmax.f32 %v4402, 0.0
        %v4435 = vmax.f32 %v4403, 0.0
        %v4436 = vmax.f32 %v4404, 0.0
        %v4437 = vmax.f32 %v4405, 0.0
        %v4438 = vmax.f32 %v4406, 0.0
        %4439 = vst [vmem:[%s340] sm:$0xff] %v4407
        %4440 = vst [vmem:[%s340 + $0x8] sm:$0xff] %v4408
        %4441 = vst [vmem:[%s340 + $0x10] sm:$0xff] %v4409
        %4442 = vst [vmem:[%s340 + $0x18] sm:$0xff] %v4410
        %4443 = vst [vmem:[%s340 + $0x20] sm:$0xff] %v4411
        %4444 = vst [vmem:[%s340 + $0x28] sm:$0xff] %v4412
        %4445 = vst [vmem:[%s340 + $0x30] sm:$0xff] %v4413
        %4446 = vst [vmem:[%s340 + $0x38] sm:$0xff] %v4414
        %4447 = vst [vmem:[%s340 + $0x40] sm:$0xff] %v4415
        %4448 = vst [vmem:[%s340 + $0x48] sm:$0xff] %v4416
        %4449 = vst [vmem:[%s340 + $0x50] sm:$0xff] %v4417
        %4450 = vst [vmem:[%s340 + $0x58] sm:$0xff] %v4418
        %4451 = vst [vmem:[%s340 + $0x60] sm:$0xff] %v4419
        %4452 = vst [vmem:[%s340 + $0x68] sm:$0xff] %v4420
        %4453 = vst [vmem:[%s340 + $0x70] sm:$0xff] %v4421
        %4454 = vst [vmem:[%s340 + $0x78] sm:$0xff] %v4422
        %4455 = vst [vmem:[%s340 + $0x80] sm:$0xff] %v4423
        %4456 = vst [vmem:[%s340 + $0x88] sm:$0xff] %v4424
        %4457 = vst [vmem:[%s340 + $0x90] sm:$0xff] %v4425
        %4458 = vst [vmem:[%s340 + $0x98] sm:$0xff] %v4426
        %4459 = vst [vmem:[%s340 + $0xa0] sm:$0xff] %v4427
        %4460 = vst [vmem:[%s340 + $0xa8] sm:$0xff] %v4428
        %4461 = vst [vmem:[%s340 + $0xb0] sm:$0xff] %v4429
        %4462 = vst [vmem:[%s340 + $0xb8] sm:$0xff] %v4430
        %4463 = vst [vmem:[%s340 + $0xc0] sm:$0xff] %v4431
        %4464 = vst [vmem:[%s340 + $0xc8] sm:$0xff] %v4432
        %4465 = vst [vmem:[%s340 + $0xd0] sm:$0xff] %v4433
        %4466 = vst [vmem:[%s340 + $0xd8] sm:$0xff] %v4434
        %4467 = vst [vmem:[%s340 + $0xe0] sm:$0xff] %v4435
        %4468 = vst [vmem:[%s340 + $0xe8] sm:$0xff] %v4436
        %4469 = vst [vmem:[%s340 + $0xf0] sm:$0xff] %v4437
        %4470 = vst [vmem:[%s340 + $0xf8] sm:$0xff] %v4438
        %s4471 = sand.u32 %s186, 1
        %s4472 = scalar_lea.sflag [#allocation7], %s4471
        %s4473 = sand.u32 %s186, 1
        %s4474 = smul.addr %s4473, 256
        %s4475 = scalar_lea.vmem [#allocation13], %s4474
        // Predicated region
        $region65: #{tpu_custom_call.1} parent=47 // pred_check
          %p4476 = pneg %p196
        $region66: #{tpu_custom_call.1} parent=47 // pred_check_branch
          %4478 = sbr.rel (%p4476) target = $region68
        $region67: #{tpu_custom_call.1} parent=47 // pred_region
          %s4480 = ssub.s32 4096, 4096
          %4481 = vsyncadd %s4472, %s4480
          %s4482 = smul.addr %s26, 32
          %s4483 = smul.addr %s4482, 128
          %s4484 = scalar_lea.hbm %s7, %s4483
          %s4485 = sshll.u32 %s4475, 4
          %s4486 = int_to_ptr.vmem [resolvable:$true] %s4485
          %4491 = dma.vmem_to_hbm [thread:$0]  %s4486, 4096, %s4484, %s4472, 128, 128, 8
        $region68: #{tpu_custom_call.1} parent=47 // pred_fallthru
          _
      $region48: #{tpu_custom_call.1} parent=5 // pred_fallthru
        _
      %p4492 = scmp.le.s32.totalorder 2, %s21
      // Predicated region
      $region69: #{tpu_custom_call.1} parent=5 // pred_check
        %p4493 = pneg %p4492
      $region70: #{tpu_custom_call.1} parent=5 // pred_check_branch
        %4495 = sbr.rel (%p4493) target = $region72
      $region71: #{tpu_custom_call.1} parent=5 // pred_region
        %s4496 = ssub.s32 %s21, 2
        // Predicated region
        $region73: #{tpu_custom_call.1} parent=71 // pred_check
          %p4497 = pneg %p202
        $region74: #{tpu_custom_call.1} parent=71 // pred_check_branch
          %4499 = sbr.rel (%p4497) target = $region76
        $region75: #{tpu_custom_call.1} parent=71 // pred_region
          %s4500 = sand.u32 %s187, 1
          %s4501 = scalar_lea.sflag [#allocation7], %s4500
          %s4502 = sand.u32 %s187, 1
          %s4503 = smul.addr %s4502, 256
          %s4504 = scalar_lea.vmem [#allocation13], %s4503
          %4505 = dma.done %s4501, 4096
        $region76: #{tpu_custom_call.1} parent=71 // pred_fallthru
          _
      $region72: #{tpu_custom_call.1} parent=5 // pred_fallthru
        _
    $region6: #{tpu_custom_call.1} parent=1 // loop_footer
      %s25 = sadd.s32 1, %s21
    $region7: #{tpu_custom_call.1} parent=1 // loop_footer_branch
      %20 = sbr.rel target = $region3
    $region8: #{tpu_custom_call.1} parent=1 // loop_exit
      _
    %4506 = vsyncpa [#allocation6], 1
    %s4507 = scalar_lea.sflag [#allocation6], 1
    %4508 = vsyncpa %s4507, 1
    %4509 = vsyncpa [#allocation9], 1
    %4510 = vsyncpa [#allocation12], 1
    %4511 = vsyncpa [#allocation7], 1
    %s4512 = scalar_lea.sflag [#allocation7], 1
    %4513 = vsyncpa %s4512, 1

</llo_original>
